<compile_context>
chip_gen: v6e
topology: v6e:2x2x1
jax: 0.10.0
libtpu: 0.0.40
codegen_flags: <defaults>
</compile_context>

<pallas_src>
import functools

import jax
import jax.numpy as jnp
from jax import lax
from jax.experimental import pallas as pl
from jax.experimental.pallas import tpu as pltpu

LANE = 128
NEG_INF = -1e30


def _round_up(x, m):
    return (x + m - 1) // m * m


def _pick_tile(hwp, cap):
    t = cap
    while t > LANE and hwp % t != 0:
        t //= 2
    return t


def _self_attention_kernel(hw, xq_ref, xkv_ref, wq_ref, bq_ref, wkv_ref,
                           bkv_ref, gamma_ref, o_ref,
                           q_sc, m_sc, l_sc, acc_sc):
    ki = pl.program_id(2)
    tk = xkv_ref.shape[1]                       # kv tile size (static)
    dqk = wq_ref.shape[1]                       # padded q/k width (static)

    @pl.when(ki == 0)
    def _():
        m_sc[...] = jnp.full_like(m_sc, NEG_INF)
        l_sc[...] = jnp.zeros_like(l_sc)
        acc_sc[...] = jnp.zeros_like(acc_sc)
        # Q projection only depends on (b, qi): compute once per query tile.
        q = jnp.dot(xq_ref[0].astype(jnp.bfloat16), wq_ref[...],
                    preferred_element_type=jnp.float32) + bq_ref[...]
        q_sc[...] = q.astype(jnp.bfloat16)       # (tq, Dqk) bf16

    # Fused K|V 1x1 "conv" for this kv tile (bf16 operands, f32 accumulation).
    kv = jnp.dot(xkv_ref[0], wkv_ref[...],
                 preferred_element_type=jnp.float32) + bkv_ref[...]   # (tk, Dqk+Cp)
    k = kv[:, :dqk]                              # (tk, Dqk)
    v = kv[:, dqk:]                              # (tk, Cp)

    # energy[i, j] = <q_i, k_j>: contract last dims directly (no transpose).
    s = lax.dot_general(q_sc[...], k.astype(jnp.bfloat16),
                        dimension_numbers=(((1,), (1,)), ((), ())),
                        preferred_element_type=jnp.float32)           # (tq, tk)

    if hw % tk != 0:
        # Only emitted when the spatial size is not tile-aligned: mask the
        # zero-padded kv positions (they live in the last kv tile only).
        col = ki * tk + lax.broadcasted_iota(jnp.int32, s.shape, 1)
        s = jnp.where(col < hw, s, NEG_INF)

    # Online softmax over the kv axis (elementwise math in f32).
    m_prev = m_sc[...]
    m_new = jnp.maximum(m_prev, jnp.max(s, axis=-1, keepdims=True))
    alpha = jnp.exp(m_prev - m_new)
    p = jnp.exp(s - m_new)
    l_sc[...] = alpha * l_sc[...] + jnp.sum(p, axis=-1, keepdims=True)
    acc_sc[...] = alpha * acc_sc[...] + jnp.dot(
        p.astype(jnp.bfloat16), v.astype(jnp.bfloat16),
        preferred_element_type=jnp.float32)
    m_sc[...] = m_new

    @pl.when(ki == pl.num_programs(2) - 1)
    def _():
        inv_l = pl.reciprocal(l_sc[...], approx=True)
        o_ref[0] = gamma_ref[0] * (acc_sc[...] * inv_l) + xq_ref[0]


def self_attention_pallas(x_nchw, wq, bq, wk, bk, wv, bv, gamma):
    """x_nchw: (B, C, H, W) f32.  wq/wk: (C, C//8); wv: (C, C); biases 1-D."""
    B, C, H, W = x_nchw.shape
    HW = H * W
    C8 = wq.shape[1]

    Cp = _round_up(C, LANE)                     # lane-dense channel width
    Dqk = _round_up(C8, LANE)                   # lane-dense q/k width
    HWp = _round_up(HW, LANE)                   # tile-aligned spatial size
    tq = _pick_tile(HWp, 512)                   # query tile
    tk = _pick_tile(HWp, 256)                   # kv tile

    # NCHW -> (B, HWp, Cp): zero-padded channels + spatial positions.
    x_flat = jnp.transpose(x_nchw, (0, 2, 3, 1)).reshape(B, HW, C)
    x_pad = jnp.pad(x_flat.astype(jnp.float32),
                    ((0, 0), (0, HWp - HW), (0, Cp - C)))
    x_kv_bf = x_pad.astype(jnp.bfloat16)        # bf16 stream for the kv path

    # Padded Q weights and fused (K | V) weights; bf16 for the MXU.  Padded
    # output channels of Q/K contribute 0 to the energy; padded V channels
    # stay 0 and are sliced off after the kernel.
    wq_p = jnp.zeros((Cp, Dqk), jnp.float32).at[:C, :C8].set(wq)
    wkv_p = (jnp.zeros((Cp, Dqk + Cp), jnp.float32)
             .at[:C, :C8].set(wk)
             .at[:C, Dqk:Dqk + C].set(wv))
    bq_p = jnp.zeros((1, Dqk), jnp.float32).at[0, :C8].set(bq)
    bkv_p = (jnp.zeros((1, Dqk + Cp), jnp.float32)
             .at[0, :C8].set(bk)
             .at[0, Dqk:Dqk + C].set(bv))
    wq_bf = wq_p.astype(jnp.bfloat16)
    wkv_bf = wkv_p.astype(jnp.bfloat16)
    gamma_s = jnp.reshape(gamma, (1,)).astype(jnp.float32)

    grid = (B, HWp // tq, HWp // tk)
    kernel = functools.partial(_self_attention_kernel, HW)

    out_pad = pl.pallas_call(
        kernel,
        out_shape=jax.ShapeDtypeStruct((B, HWp, Cp), jnp.float32),
        grid=grid,
        in_specs=[
            pl.BlockSpec((1, tq, Cp), lambda b, qi, ki: (b, qi, 0)),    # x query rows (f32)
            pl.BlockSpec((1, tk, Cp), lambda b, qi, ki: (b, ki, 0)),    # x kv rows (bf16)
            pl.BlockSpec((Cp, Dqk), lambda b, qi, ki: (0, 0)),          # Wq (bf16)
            pl.BlockSpec((1, Dqk), lambda b, qi, ki: (0, 0)),           # bq
            pl.BlockSpec((Cp, Dqk + Cp), lambda b, qi, ki: (0, 0)),     # Wk|Wv (bf16)
            pl.BlockSpec((1, Dqk + Cp), lambda b, qi, ki: (0, 0)),      # bk|bv
            pl.BlockSpec(memory_space=pltpu.MemorySpace.SMEM),          # gamma scalar
        ],
        out_specs=pl.BlockSpec((1, tq, Cp), lambda b, qi, ki: (b, qi, 0)),
        scratch_shapes=[
            pltpu.VMEM((tq, Dqk), jnp.bfloat16),   # cached Q projection
            pltpu.VMEM((tq, 1), jnp.float32),      # running max m
            pltpu.VMEM((tq, 1), jnp.float32),      # running sum l
            pltpu.VMEM((tq, Cp), jnp.float32),     # output accumulator
        ],
        compiler_params=pltpu.CompilerParams(
            dimension_semantics=("parallel", "parallel", "arbitrary")),
    )(x_pad, x_kv_bf, wq_bf, bq_p, wkv_bf, bkv_p, gamma_s)

    out_flat = out_pad[:, :HW, :C]
    return jnp.transpose(out_flat.reshape(B, H, W, C), (0, 3, 1, 2))


def self_attention_ref(x_nchw, wq, bq, wk, bk, wv, bv, gamma):
    """Pure-JAX f32 reference following the torch forward exactly."""
    B, C, H, W = x_nchw.shape
    HW = H * W
    x_bcn = x_nchw.reshape(B, C, HW)                                   # (B, C, HW)
    q = jnp.einsum('bcn,cd->bnd', x_bcn, wq) + bq                      # (B, HW, C8)
    k = jnp.einsum('bcn,cd->bdn', x_bcn, wk) + bk[None, :, None]       # (B, C8, HW)
    energy = jnp.einsum('bnd,bdm->bnm', q, k)                          # (B, HW, HW)
    attn = jax.nn.softmax(energy, axis=2)
    v = jnp.einsum('bcn,cd->bdn', x_bcn, wv) + bv[None, :, None]       # (B, C, HW)
    out = jnp.einsum('bcn,bmn->bcm', v, attn)                          # (B, C, HW)
    out = out.reshape(B, C, H, W)
    return gamma * out + x_nchw


if __name__ == "__main__":
    B, C, H, W = 2, 16, 16, 16          # in_channels must be >= 8 (C//8 conv out channels)
    C8 = C // 8

    key = jax.random.PRNGKey(0)
    kx, kq, kk, kv, kbq, kbk, kbv = jax.random.split(key, 7)

    x = jax.random.normal(kx, (B, C, H, W), dtype=jnp.float32)

    # Deterministic parameter init (1x1 conv weights stored as (Cin, Cout) matmul weights).
    wq = 0.1 * jax.random.normal(kq, (C, C8), dtype=jnp.float32)
    wk = 0.1 * jax.random.normal(kk, (C, C8), dtype=jnp.float32)
    wv = 0.1 * jax.random.normal(kv, (C, C), dtype=jnp.float32)
    bq = 0.05 * jax.random.normal(kbq, (C8,), dtype=jnp.float32)
    bk = 0.05 * jax.random.normal(kbk, (C8,), dtype=jnp.float32)
    bv = 0.05 * jax.random.normal(kbv, (C,), dtype=jnp.float32)
    # Module init is gamma = 0; use a nonzero deterministic value so the
    # attention path actually contributes to the output being checked.
    gamma = jnp.float32(0.5)

    y = jax.block_until_ready(self_attention_pallas(x, wq, bq, wk, bk, wv, bv, gamma))
    y_ref = self_attention_ref(x, wq, bq, wk, bk, wv, bv, gamma)

    assert y.shape == (B, C, H, W)
    # Matmul operands run in bf16 on the MXU -> compare against the f32
    # reference with a bf16-level tolerance.
    max_err = jnp.max(jnp.abs(y - y_ref))
    assert jnp.allclose(y, y_ref, atol=2e-2, rtol=2e-2), f"mismatch vs reference, max abs err {max_err}"

    print("KERNEL_OK")
</pallas_src>

<mosaic_0001>
module attributes {stable_mosaic.version = 11 : i64} {
  func.func @_self_attention_kernel(%arg0: i32, %arg1: i32, %arg2: i32, %arg3: memref<1x256x128xf32, #tpu.memory_space<vmem>>, %arg4: memref<1x256x128xbf16, #tpu.memory_space<vmem>>, %arg5: memref<128x128xbf16, #tpu.memory_space<vmem>>, %arg6: memref<1x128xf32, #tpu.memory_space<vmem>>, %arg7: memref<128x256xbf16, #tpu.memory_space<vmem>>, %arg8: memref<1x256xf32, #tpu.memory_space<vmem>>, %arg9: memref<1xf32, #tpu.memory_space<smem>>, %arg10: memref<1x256x128xf32, #tpu.memory_space<vmem>>, %arg11: memref<256x128xbf16, #tpu.memory_space<vmem>>, %arg12: memref<256x1xf32, #tpu.memory_space<vmem>>, %arg13: memref<256x1xf32, #tpu.memory_space<vmem>>, %arg14: memref<256x128xf32, #tpu.memory_space<vmem>>) attributes {dimension_semantics = [#tpu.dimension_semantics<parallel>, #tpu.dimension_semantics<parallel>, #tpu.dimension_semantics<arbitrary>], iteration_bounds = array<i64: 2, 1, 1>, scalar_prefetch = 0 : i64, scratch_operands = 4 : i64, tpu.core_type = #tpu.core_type<tc>, window_params = [{transform_indices = @transform_0, window_bounds = array<i64: 1, 256, 128>}, {transform_indices = @transform_1, window_bounds = array<i64: 1, 256, 128>}, {pipeline_mode = #tpu.pipeline_mode<synchronous>, transform_indices = @transform_2, window_bounds = array<i64: 128, 128>}, {pipeline_mode = #tpu.pipeline_mode<synchronous>, transform_indices = @transform_3, window_bounds = array<i64: 1, 128>}, {pipeline_mode = #tpu.pipeline_mode<synchronous>, transform_indices = @transform_4, window_bounds = array<i64: 128, 256>}, {pipeline_mode = #tpu.pipeline_mode<synchronous>, transform_indices = @transform_5, window_bounds = array<i64: 1, 256>}, {transform_indices = @transform_6, window_bounds = array<i64: 1>}, {transform_indices = @transform_7, window_bounds = array<i64: 1, 256, 128>}]} {
    %c0_i32 = arith.constant 0 : i32
    %0 = arith.cmpi eq, %arg2, %c0_i32 : i32
    %1 = arith.extui %0 : i1 to i32
    %c0_i32_0 = arith.constant 0 : i32
    %2 = arith.cmpi ne, %1, %c0_i32_0 : i32
    scf.if %2 {
      %cst_27 = arith.constant -1.000000e+30 : f32
      %42 = vector.broadcast %cst_27 : f32 to vector<256x1xf32>
      %c0_28 = arith.constant 0 : index
      %c0_29 = arith.constant 0 : index
      %43 = vector.load %arg12[%c0_28, %c0_29] : memref<256x1xf32, #tpu.memory_space<vmem>>, vector<256x1xf32>
      tpu.vector_store %arg12[%c0_28, %c0_29], %42 {strides = array<i32>} : memref<256x1xf32, #tpu.memory_space<vmem>>, vector<256x1xf32>,
      %cst_30 = arith.constant 0.000000e+00 : f32
      %44 = vector.broadcast %cst_30 : f32 to vector<256x1xf32>
      %c0_31 = arith.constant 0 : index
      %c0_32 = arith.constant 0 : index
      %45 = vector.load %arg13[%c0_31, %c0_32] : memref<256x1xf32, #tpu.memory_space<vmem>>, vector<256x1xf32>
      tpu.vector_store %arg13[%c0_31, %c0_32], %44 {strides = array<i32>} : memref<256x1xf32, #tpu.memory_space<vmem>>, vector<256x1xf32>,
      %cst_33 = arith.constant 0.000000e+00 : f32
      %46 = vector.broadcast %cst_33 : f32 to vector<256x128xf32>
      %c0_34 = arith.constant 0 : index
      %c0_35 = arith.constant 0 : index
      %47 = vector.load %arg14[%c0_34, %c0_35] : memref<256x128xf32, #tpu.memory_space<vmem>>, vector<256x128xf32>
      tpu.vector_store %arg14[%c0_34, %c0_35], %46 {strides = array<i32>} : memref<256x128xf32, #tpu.memory_space<vmem>>, vector<256x128xf32>,
      %c0_36 = arith.constant 0 : index
      %c0_37 = arith.constant 0 : index
      %c0_38 = arith.constant 0 : index
      %48 = vector.load %arg3[%c0_36, %c0_37, %c0_38] : memref<1x256x128xf32, #tpu.memory_space<vmem>>, vector<1x256x128xf32>
      %49 = vector.shape_cast %48 : vector<1x256x128xf32> to vector<256x128xf32>
      %50 = arith.truncf %49 : vector<256x128xf32> to vector<256x128xbf16>
      %c0_39 = arith.constant 0 : index
      %c0_40 = arith.constant 0 : index
      %51 = vector.load %arg5[%c0_39, %c0_40] : memref<128x128xbf16, #tpu.memory_space<vmem>>, vector<128x128xbf16>
      %cst_41 = arith.constant dense<0.000000e+00> : vector<256x128xf32>
      %52 = tpu.matmul %50, %51, %cst_41 {dimension_numbers = #tpu.dot_dimension_numbers<[1], [0], [0], [1], [0, 0, 1, 1], [], []>} : vector<256x128xbf16>, vector<128x128xbf16>, vector<256x128xf32> -> vector<256x128xf32>
      %c0_42 = arith.constant 0 : index
      %c0_43 = arith.constant 0 : index
      %53 = vector.load %arg6[%c0_42, %c0_43] : memref<1x128xf32, #tpu.memory_space<vmem>>, vector<1x128xf32>
      %54 = vector.broadcast %53 : vector<1x128xf32> to vector<256x128xf32>
      %55 = arith.addf %52, %54 : vector<256x128xf32>
      %56 = arith.truncf %55 : vector<256x128xf32> to vector<256x128xbf16>
      %c0_44 = arith.constant 0 : index
      %c0_45 = arith.constant 0 : index
      %57 = vector.load %arg11[%c0_44, %c0_45] : memref<256x128xbf16, #tpu.memory_space<vmem>>, vector<256x128xbf16>
      tpu.vector_store %arg11[%c0_44, %c0_45], %56 {strides = array<i32>} : memref<256x128xbf16, #tpu.memory_space<vmem>>, vector<256x128xbf16>,
    } else {
    }
    %c0 = arith.constant 0 : index
    %c0_1 = arith.constant 0 : index
    %c0_2 = arith.constant 0 : index
    %3 = vector.load %arg4[%c0, %c0_1, %c0_2] : memref<1x256x128xbf16, #tpu.memory_space<vmem>>, vector<1x256x128xbf16>
    %4 = vector.shape_cast %3 : vector<1x256x128xbf16> to vector<256x128xbf16>
    %c0_3 = arith.constant 0 : index
    %c0_4 = arith.constant 0 : index
    %5 = vector.load %arg7[%c0_3, %c0_4] : memref<128x256xbf16, #tpu.memory_space<vmem>>, vector<128x256xbf16>
    %cst = arith.constant dense<0.000000e+00> : vector<256x256xf32>
    %6 = tpu.matmul %4, %5, %cst {dimension_numbers = #tpu.dot_dimension_numbers<[1], [0], [0], [1], [0, 0, 1, 1], [], []>} : vector<256x128xbf16>, vector<128x256xbf16>, vector<256x256xf32> -> vector<256x256xf32>
    %c0_5 = arith.constant 0 : index
    %c0_6 = arith.constant 0 : index
    %7 = vector.load %arg8[%c0_5, %c0_6] : memref<1x256xf32, #tpu.memory_space<vmem>>, vector<1x256xf32>
    %8 = vector.broadcast %7 : vector<1x256xf32> to vector<256x256xf32>
    %9 = arith.addf %6, %8 : vector<256x256xf32>
    %10 = vector.extract_strided_slice %9 {offsets = [0, 0], sizes = [256, 128], strides = [1, 1]} : vector<256x256xf32> to vector<256x128xf32>
    %11 = vector.extract_strided_slice %9 {offsets = [0, 128], sizes = [256, 128], strides = [1, 1]} : vector<256x256xf32> to vector<256x128xf32>
    %c0_7 = arith.constant 0 : index
    %c0_8 = arith.constant 0 : index
    %12 = vector.load %arg11[%c0_7, %c0_8] : memref<256x128xbf16, #tpu.memory_space<vmem>>, vector<256x128xbf16>
    %13 = arith.truncf %10 : vector<256x128xf32> to vector<256x128xbf16>
    %cst_9 = arith.constant dense<0.000000e+00> : vector<256x256xf32>
    %14 = tpu.matmul %12, %13, %cst_9 {dimension_numbers = #tpu.dot_dimension_numbers<[1], [1], [0], [0], [0, 0, 1, 0], [], []>} : vector<256x128xbf16>, vector<256x128xbf16>, vector<256x256xf32> -> vector<256x256xf32>
    %c0_10 = arith.constant 0 : index
    %c0_11 = arith.constant 0 : index
    %15 = vector.load %arg12[%c0_10, %c0_11] : memref<256x1xf32, #tpu.memory_space<vmem>>, vector<256x1xf32>
    %cst_12 = arith.constant dense<0xFF800000> : vector<256xf32>
    %16 = vector.multi_reduction <maximumf>, %14, %cst_12 [1] : vector<256x256xf32> to vector<256xf32>
    %17 = vector.shape_cast %16 : vector<256xf32> to vector<256x1xf32>
    %18 = arith.maximumf %15, %17 : vector<256x1xf32>
    %19 = arith.subf %15, %18 : vector<256x1xf32>
    %20 = math.exp %19 : vector<256x1xf32>
    %21 = vector.broadcast %18 : vector<256x1xf32> to vector<256x256xf32>
    %22 = arith.subf %14, %21 : vector<256x256xf32>
    %23 = math.exp %22 : vector<256x256xf32>
    %c0_13 = arith.constant 0 : index
    %c0_14 = arith.constant 0 : index
    %24 = vector.load %arg13[%c0_13, %c0_14] : memref<256x1xf32, #tpu.memory_space<vmem>>, vector<256x1xf32>
    %25 = arith.mulf %20, %24 : vector<256x1xf32>
    %cst_15 = arith.constant dense<0.000000e+00> : vector<256xf32>
    %26 = vector.multi_reduction <add>, %23, %cst_15 [1] : vector<256x256xf32> to vector<256xf32>
    %27 = vector.shape_cast %26 : vector<256xf32> to vector<256x1xf32>
    %28 = arith.addf %25, %27 : vector<256x1xf32>
    %c0_16 = arith.constant 0 : index
    %c0_17 = arith.constant 0 : index
    %29 = vector.load %arg13[%c0_16, %c0_17] : memref<256x1xf32, #tpu.memory_space<vmem>>, vector<256x1xf32>
    tpu.vector_store %arg13[%c0_16, %c0_17], %28 {strides = array<i32>} : memref<256x1xf32, #tpu.memory_space<vmem>>, vector<256x1xf32>,
    %c0_18 = arith.constant 0 : index
    %c0_19 = arith.constant 0 : index
    %30 = vector.load %arg14[%c0_18, %c0_19] : memref<256x128xf32, #tpu.memory_space<vmem>>, vector<256x128xf32>
    %31 = vector.broadcast %20 : vector<256x1xf32> to vector<256x128xf32>
    %32 = arith.mulf %31, %30 : vector<256x128xf32>
    %33 = arith.truncf %23 : vector<256x256xf32> to vector<256x256xbf16>
    %34 = arith.truncf %11 : vector<256x128xf32> to vector<256x128xbf16>
    %cst_20 = arith.constant dense<0.000000e+00> : vector<256x128xf32>
    %35 = tpu.matmul %33, %34, %cst_20 {dimension_numbers = #tpu.dot_dimension_numbers<[1], [0], [0], [1], [0, 0, 1, 1], [], []>} : vector<256x256xbf16>, vector<256x128xbf16>, vector<256x128xf32> -> vector<256x128xf32>
    %36 = arith.addf %32, %35 : vector<256x128xf32>
    %c0_21 = arith.constant 0 : index
    %c0_22 = arith.constant 0 : index
    %37 = vector.load %arg14[%c0_21, %c0_22] : memref<256x128xf32, #tpu.memory_space<vmem>>, vector<256x128xf32>
    tpu.vector_store %arg14[%c0_21, %c0_22], %36 {strides = array<i32>} : memref<256x128xf32, #tpu.memory_space<vmem>>, vector<256x128xf32>,
    %c0_23 = arith.constant 0 : index
    %c0_24 = arith.constant 0 : index
    %38 = vector.load %arg12[%c0_23, %c0_24] : memref<256x1xf32, #tpu.memory_space<vmem>>, vector<256x1xf32>
    tpu.vector_store %arg12[%c0_23, %c0_24], %18 {strides = array<i32>} : memref<256x1xf32, #tpu.memory_space<vmem>>, vector<256x1xf32>,
    %c0_i32_25 = arith.constant 0 : i32
    %39 = arith.cmpi eq, %arg2, %c0_i32_25 : i32
    %40 = arith.extui %39 : i1 to i32
    %c0_i32_26 = arith.constant 0 : i32
    %41 = arith.cmpi ne, %40, %c0_i32_26 : i32
    scf.if %41 {
      %c0_27 = arith.constant 0 : index
      %c0_28 = arith.constant 0 : index
      %42 = vector.load %arg13[%c0_27, %c0_28] : memref<256x1xf32, #tpu.memory_space<vmem>>, vector<256x1xf32>
      %43 = tpu.reciprocal %42 {approx = true} : vector<256x1xf32> -> vector<256x1xf32>
      %c0_29 = arith.constant 0 : index
      %44 = memref.load %arg9[%c0_29] : memref<1xf32, #tpu.memory_space<smem>>
      %c0_30 = arith.constant 0 : index
      %c0_31 = arith.constant 0 : index
      %45 = vector.load %arg14[%c0_30, %c0_31] : memref<256x128xf32, #tpu.memory_space<vmem>>, vector<256x128xf32>
      %46 = vector.broadcast %43 : vector<256x1xf32> to vector<256x128xf32>
      %47 = arith.mulf %45, %46 : vector<256x128xf32>
      %48 = vector.broadcast %44 : f32 to vector<256x128xf32>
      %49 = arith.mulf %48, %47 : vector<256x128xf32>
      %c0_32 = arith.constant 0 : index
      %c0_33 = arith.constant 0 : index
      %c0_34 = arith.constant 0 : index
      %50 = vector.load %arg3[%c0_32, %c0_33, %c0_34] : memref<1x256x128xf32, #tpu.memory_space<vmem>>, vector<1x256x128xf32>
      %51 = vector.shape_cast %50 : vector<1x256x128xf32> to vector<256x128xf32>
      %52 = arith.addf %49, %51 : vector<256x128xf32>
      %c0_35 = arith.constant 0 : index
      %c0_36 = arith.constant 0 : index
      %c0_37 = arith.constant 0 : index
      %53 = vector.load %arg10[%c0_35, %c0_36, %c0_37] : memref<1x256x128xf32, #tpu.memory_space<vmem>>, vector<1x256x128xf32>
      %54 = vector.shape_cast %53 : vector<1x256x128xf32> to vector<256x128xf32>
      %55 = vector.shape_cast %52 : vector<256x128xf32> to vector<1x256x128xf32>
      tpu.vector_store %arg10[%c0_35, %c0_36, %c0_37], %55 {strides = array<i32>} : memref<1x256x128xf32, #tpu.memory_space<vmem>>, vector<1x256x128xf32>,
    } else {
    }
    return
  }
  func.func @transform_0(%arg0: i32, %arg1: i32, %arg2: i32) -> (i32, i32, i32) {
    %c0_i32 = arith.constant 0 : i32
    %c0_i32_0 = arith.constant 0 : i32
    return %arg0, %arg1, %c0_i32 : i32, i32, i32
  }
  func.func @transform_1(%arg0: i32, %arg1: i32, %arg2: i32) -> (i32, i32, i32) {
    %c0_i32 = arith.constant 0 : i32
    %c0_i32_0 = arith.constant 0 : i32
    return %arg0, %arg2, %c0_i32 : i32, i32, i32
  }
  func.func @transform_2(%arg0: i32, %arg1: i32, %arg2: i32) -> (i32, i32) {
    %c0_i32 = arith.constant 0 : i32
    %c0_i32_0 = arith.constant 0 : i32
    %c0_i32_1 = arith.constant 0 : i32
    return %c0_i32, %c0_i32_0 : i32, i32
  }
  func.func @transform_3(%arg0: i32, %arg1: i32, %arg2: i32) -> (i32, i32) {
    %c0_i32 = arith.constant 0 : i32
    %c0_i32_0 = arith.constant 0 : i32
    %c0_i32_1 = arith.constant 0 : i32
    return %c0_i32, %c0_i32_0 : i32, i32
  }
  func.func @transform_4(%arg0: i32, %arg1: i32, %arg2: i32) -> (i32, i32) {
    %c0_i32 = arith.constant 0 : i32
    %c0_i32_0 = arith.constant 0 : i32
    %c0_i32_1 = arith.constant 0 : i32
    return %c0_i32, %c0_i32_0 : i32, i32
  }
  func.func @transform_5(%arg0: i32, %arg1: i32, %arg2: i32) -> (i32, i32) {
    %c0_i32 = arith.constant 0 : i32
    %c0_i32_0 = arith.constant 0 : i32
    %c0_i32_1 = arith.constant 0 : i32
    return %c0_i32, %c0_i32_0 : i32, i32
  }
  func.func @transform_6(%arg0: i32, %arg1: i32, %arg2: i32) -> i32 {
    %c0_i32 = arith.constant 0 : i32
    %c0_i32_0 = arith.constant 0 : i32
    return %c0_i32 : i32
  }
  func.func @transform_7(%arg0: i32, %arg1: i32, %arg2: i32) -> (i32, i32, i32) {
    %c0_i32 = arith.constant 0 : i32
    %c0_i32_0 = arith.constant 0 : i32
    return %arg0, %arg1, %c0_i32 : i32, i32, i32
  }
}

</mosaic_0001>

<llo_original>
// kernel: tpu_custom_call.1
$region0: #{tpu_custom_call.1}
  #allocation0 [shape = 'u32[]', space=smem, size = 0x4, offset = 0x4, fixed_abs, tag = 'smem constant byte address 0x4 - core index']
  #allocation1 [shape = 'u32[144,128]{1,0:T(1,128)}', space=vmem, size = 0x12000, scoped, tag = 'internal scratch']
  #allocation2 [shape = 'bf16[256,128]{1,0:T(8,128)(2,1)}', space=vmem, size = 0x10000, scoped, tag = 'scratch operand']
  #allocation3 [shape = 'f32[256,1]{1,0:T(8,128)}', space=vmem, size = 0x20000, scoped, tag = 'scratch operand']
  #allocation4 [shape = 'f32[256,1]{1,0:T(8,128)}', space=vmem, size = 0x20000, scoped, tag = 'scratch operand']
  #allocation5 [shape = 'f32[256,128]{1,0:T(8,128)}', space=vmem, size = 0x20000, scoped, tag = 'scratch operand']
  #allocation6 [shape = 'f32[1]{0:T(128)S(6)}', space=smem, size = 0x200, scoped, tag = 'scoped memory for tpu_custom_call.1']
  %s0 = inlined_call_operand.hbm [shape: f32[2,256,128], index: 0, kind: input, shape index: {}]
  %s1 = inlined_call_operand.hbm [shape: bf16[2,256,128], index: 1, kind: input, shape index: {}]
  %s2 = inlined_call_operand.hbm [shape: bf16[128,128], index: 2, kind: input, shape index: {}]
  %s3 = inlined_call_operand.vmem [shape: f32[1,128], index: 3, kind: input, shape index: {}]
  %s4 = inlined_call_operand.hbm [shape: bf16[128,256], index: 4, kind: input, shape index: {}]
  %s5 = inlined_call_operand.vmem [shape: f32[1,256], index: 5, kind: input, shape index: {}]
  %s6 = inlined_call_operand.<no memory space> [shape: f32[1], index: 6, kind: input, shape index: {}]
  %s7 = inlined_call_operand.hbm [shape: f32[2,256,128], index: 7, kind: output, shape index: {}]
  %s8 = sld [smem:[#allocation0]]
  $region85: #{tpu_custom_call.1} parent=0
    _
  %s10 = ssub.s32 1, %s8
  %s11 = scalar_select 0, %s10, %s8
  %12 = sst [smem:[#allocation6]] %s6
  $region1: #{tpu_custom_call.1} parent=0
    #allocation7 [shape = 'u8[262144]{0}', space=vmem, size = 0x40000, scoped, tag = 'input window, operand 0']
    #allocation8 [shape = 's32[2]{0}', space=sflag, size = 0x8, scoped, tag = 'scoped memory for tpu_custom_call.1']
    #allocation9 [shape = 's32[2]{0}', space=sflag, size = 0x8, scoped, tag = 'scoped memory for tpu_custom_call.1']
    #allocation10 [shape = 'u8[131072]{0}', space=vmem, size = 0x20000, scoped, tag = 'input window, operand 1']
    #allocation11 [shape = 's32[2]{0}', space=sflag, size = 0x8, scoped, tag = 'scoped memory for tpu_custom_call.1']
    #allocation12 [shape = 'u8[32768]{0}', space=vmem, size = 0x8000, scoped, tag = 'input window, operand 2, single buffered']
    #allocation13 [shape = 'u8[65536]{0}', space=vmem, size = 0x10000, scoped, tag = 'input window, operand 4, single buffered']
    #allocation14 [shape = 's32[1]{0}', space=sflag, size = 0x4, scoped, tag = 'scoped memory for tpu_custom_call.1']
    #allocation15 [shape = 'u8[262144]{0}', space=vmem, size = 0x40000, scoped, tag = 'output window, operand 0']
    %13 = vsyncpa [#allocation8], 0
    %s14 = scalar_lea.sflag [#allocation8], 1
    %15 = vsyncpa %s14, 0
    %16 = vsyncpa [#allocation11], 0
    %s17 = scalar_lea.sflag [#allocation11], 1
    %18 = vsyncpa %s17, 0
    %19 = vsyncpa [#allocation14], 0
    %20 = vsyncpa [#allocation9], 0
    %s21 = scalar_lea.sflag [#allocation9], 1
    %22 = vsyncpa %s21, 0
    loop: start=0, step=1, limit=4
    $region2: #{tpu_custom_call.1} parent=1 // loop_pre_header
      _
    $region3: #{tpu_custom_call.1} parent=1 // loop_header
      %s24 = sphi 0, %s28
      %p25 = scmp.ge.s32.totalorder %s24, 4
      %s31 = sphi 0, %s50
      %s32 = sphi 0, %s46
      %s33 = sphi 0, %s42
      %s34 = sphi 0, %s31
      %s35 = sphi 0, %s32
      %s36 = sphi 0, %s33
      %s37 = sphi 0, %s34
      %s38 = sphi 0, %s35
      %s39 = sphi 0, %s36
      %s55 = sphi 0, %s57
      %s58 = sphi 0, %s55
      %s59 = sphi 0, %s58
      %s75 = sphi 0, %s59
      %s83 = sphi 0, %s85
      %s86 = sphi 0, %s83
      %s87 = sphi 0, %s86
      %s103 = sphi 0, %s87
      %s107 = sphi 0, %s107
      %s109 = sphi 0, %s107
      %s110 = sphi 0, %s109
      %s124 = sphi 0, %s110
      %s128 = sphi 0, %s128
      %s130 = sphi 0, %s128
      %s131 = sphi 0, %s130
      %s145 = sphi 0, %s131
      %s149 = sphi 0, %s149
      %s151 = sphi 0, %s149
      %s152 = sphi 0, %s151
      %s166 = sphi 0, %s152
      %s170 = sphi 0, %s170
      %s172 = sphi 0, %s170
      %s173 = sphi 0, %s172
      %s187 = sphi 0, %s173
      %s191 = sphi 0, %s191
      %s193 = sphi 0, %s191
      %s194 = sphi 0, %s193
      %s208 = sphi 0, %s194
      %s216 = sphi 0, %s218
      %s219 = sphi 0, %s216
      %s220 = sphi 0, %s219
      %s236 = sphi 0, %s220
    $region4: #{tpu_custom_call.1} parent=1 // loop_header_branch
      %27 = sbr.rel (%p25) target = $region8
    $region5: #{tpu_custom_call.1} parent=1 // loop_body
      %s29 = ssub.s32 %s24, 1
      %s30 = ssub.s32 %s24, 2
      %s40 = sadd.s32 1, %s33
      %p41 = scmp.ge.s32.totalorder %s40, 1
      %s42 = scalar_select %p41, 0, %s40
      %s43 = sadd.s32 1, %s32
      %s44 = scalar_select %p41, %s43, %s32
      %p45 = scmp.ge.s32.totalorder %s44, 1
      %s46 = scalar_select %p45, 0, %s44
      %s47 = sadd.s32 1, %s31
      %s48 = scalar_select %p45, %s47, %s31
      %p49 = scmp.ge.s32.totalorder %s48, 2
      %s50 = scalar_select %p49, 0, %s48
      %s51 = ssub.s32 %s31, %s50
      %s52 = ssub.s32 %s32, %s46
      %s53 = sor.u32 %s51, %s52
      %p54 = scmp.eq.s32.totalorder %s53, 0
      %s56 = sadd.s32 %s55, 1
      %s57 = scalar_select %p54, %s55, %s56
      %p60 = pneg %p54
      %p61 = scmp.eq.s32.totalorder %s24, 1
      %p62 = por %p60, %p61
      %p63 = scmp.ne.s32.totalorder %s55, %s58
      %p64 = scmp.eq.s32.totalorder %s24, 0
      %p65 = por %p63, %p64
      %p66 = scmp.ne.s32.totalorder %s55, %s58
      %p67 = scmp.eq.s32.totalorder %s29, 1
      %p68 = por %p66, %p67
      %p69 = scmp.ne.s32.totalorder %s58, %s59
      %p70 = scmp.eq.s32.totalorder %s29, 0
      %p71 = por %p69, %p70
      %p72 = scmp.ne.s32.totalorder %s58, %s59
      %p73 = scmp.eq.s32.totalorder %s30, 1
      %p74 = por %p72, %p73
      %p76 = scmp.ne.s32.totalorder %s59, %s75
      %p77 = scmp.eq.s32.totalorder %s30, 0
      %p78 = por %p76, %p77
      %s79 = ssub.s32 %s31, %s50
      %s80 = ssub.s32 %s33, %s42
      %s81 = sor.u32 %s79, %s80
      %p82 = scmp.eq.s32.totalorder %s81, 0
      %s84 = sadd.s32 %s83, 1
      %s85 = scalar_select %p82, %s83, %s84
      %p88 = pneg %p82
      %p89 = scmp.eq.s32.totalorder %s24, 1
      %p90 = por %p88, %p89
      %p91 = scmp.ne.s32.totalorder %s83, %s86
      %p92 = scmp.eq.s32.totalorder %s24, 0
      %p93 = por %p91, %p92
      %p94 = scmp.ne.s32.totalorder %s83, %s86
      %p95 = scmp.eq.s32.totalorder %s29, 1
      %p96 = por %p94, %p95
      %p97 = scmp.ne.s32.totalorder %s86, %s87
      %p98 = scmp.eq.s32.totalorder %s29, 0
      %p99 = por %p97, %p98
      %p100 = scmp.ne.s32.totalorder %s86, %s87
      %p101 = scmp.eq.s32.totalorder %s30, 1
      %p102 = por %p100, %p101
      %p104 = scmp.ne.s32.totalorder %s87, %s103
      %p105 = scmp.eq.s32.totalorder %s30, 0
      %p106 = por %p104, %p105
      %s108 = sadd.s32 %s107, 1
      %p111 = scmp.eq.s32.totalorder %s24, 1
      %p112 = scmp.ne.s32.totalorder %s107, %s109
      %p113 = scmp.eq.s32.totalorder %s24, 0
      %p114 = por %p112, %p113
      %p115 = scmp.ne.s32.totalorder %s107, %s109
      %p116 = scmp.eq.s32.totalorder %s29, 1
      %p117 = por %p115, %p116
      %p118 = scmp.ne.s32.totalorder %s109, %s110
      %p119 = scmp.eq.s32.totalorder %s29, 0
      %p120 = por %p118, %p119
      %p121 = scmp.ne.s32.totalorder %s109, %s110
      %p122 = scmp.eq.s32.totalorder %s30, 1
      %p123 = por %p121, %p122
      %p125 = scmp.ne.s32.totalorder %s110, %s124
      %p126 = scmp.eq.s32.totalorder %s30, 0
      %p127 = por %p125, %p126
      %s129 = sadd.s32 %s128, 1
      %p132 = scmp.eq.s32.totalorder %s24, 1
      %p133 = scmp.ne.s32.totalorder %s128, %s130
      %p134 = scmp.eq.s32.totalorder %s24, 0
      %p135 = por %p133, %p134
      %p136 = scmp.ne.s32.totalorder %s128, %s130
      %p137 = scmp.eq.s32.totalorder %s29, 1
      %p138 = por %p136, %p137
      %p139 = scmp.ne.s32.totalorder %s130, %s131
      %p140 = scmp.eq.s32.totalorder %s29, 0
      %p141 = por %p139, %p140
      %p142 = scmp.ne.s32.totalorder %s130, %s131
      %p143 = scmp.eq.s32.totalorder %s30, 1
      %p144 = por %p142, %p143
      %p146 = scmp.ne.s32.totalorder %s131, %s145
      %p147 = scmp.eq.s32.totalorder %s30, 0
      %p148 = por %p146, %p147
      %s150 = sadd.s32 %s149, 1
      %p153 = scmp.eq.s32.totalorder %s24, 1
      %p154 = scmp.ne.s32.totalorder %s149, %s151
      %p155 = scmp.eq.s32.totalorder %s24, 0
      %p156 = por %p154, %p155
      %p157 = scmp.ne.s32.totalorder %s149, %s151
      %p158 = scmp.eq.s32.totalorder %s29, 1
      %p159 = por %p157, %p158
      %p160 = scmp.ne.s32.totalorder %s151, %s152
      %p161 = scmp.eq.s32.totalorder %s29, 0
      %p162 = por %p160, %p161
      %p163 = scmp.ne.s32.totalorder %s151, %s152
      %p164 = scmp.eq.s32.totalorder %s30, 1
      %p165 = por %p163, %p164
      %p167 = scmp.ne.s32.totalorder %s152, %s166
      %p168 = scmp.eq.s32.totalorder %s30, 0
      %p169 = por %p167, %p168
      %s171 = sadd.s32 %s170, 1
      %p174 = scmp.eq.s32.totalorder %s24, 1
      %p175 = scmp.ne.s32.totalorder %s170, %s172
      %p176 = scmp.eq.s32.totalorder %s24, 0
      %p177 = por %p175, %p176
      %p178 = scmp.ne.s32.totalorder %s170, %s172
      %p179 = scmp.eq.s32.totalorder %s29, 1
      %p180 = por %p178, %p179
      %p181 = scmp.ne.s32.totalorder %s172, %s173
      %p182 = scmp.eq.s32.totalorder %s29, 0
      %p183 = por %p181, %p182
      %p184 = scmp.ne.s32.totalorder %s172, %s173
      %p185 = scmp.eq.s32.totalorder %s30, 1
      %p186 = por %p184, %p185
      %p188 = scmp.ne.s32.totalorder %s173, %s187
      %p189 = scmp.eq.s32.totalorder %s30, 0
      %p190 = por %p188, %p189
      %s192 = sadd.s32 %s191, 1
      %p195 = scmp.eq.s32.totalorder %s24, 1
      %p196 = scmp.ne.s32.totalorder %s191, %s193
      %p197 = scmp.eq.s32.totalorder %s24, 0
      %p198 = por %p196, %p197
      %p199 = scmp.ne.s32.totalorder %s191, %s193
      %p200 = scmp.eq.s32.totalorder %s29, 1
      %p201 = por %p199, %p200
      %p202 = scmp.ne.s32.totalorder %s193, %s194
      %p203 = scmp.eq.s32.totalorder %s29, 0
      %p204 = por %p202, %p203
      %p205 = scmp.ne.s32.totalorder %s193, %s194
      %p206 = scmp.eq.s32.totalorder %s30, 1
      %p207 = por %p205, %p206
      %p209 = scmp.ne.s32.totalorder %s194, %s208
      %p210 = scmp.eq.s32.totalorder %s30, 0
      %p211 = por %p209, %p210
      %s212 = ssub.s32 %s31, %s50
      %s213 = ssub.s32 %s32, %s46
      %s214 = sor.u32 %s212, %s213
      %p215 = scmp.eq.s32.totalorder %s214, 0
      %s217 = sadd.s32 %s216, 1
      %s218 = scalar_select %p215, %s216, %s217
      %p221 = pneg %p215
      %p222 = scmp.eq.s32.totalorder %s24, 1
      %p223 = por %p221, %p222
      %p224 = scmp.ne.s32.totalorder %s216, %s219
      %p225 = scmp.eq.s32.totalorder %s24, 0
      %p226 = por %p224, %p225
      %p227 = scmp.ne.s32.totalorder %s216, %s219
      %p228 = scmp.eq.s32.totalorder %s29, 1
      %p229 = por %p227, %p228
      %p230 = scmp.ne.s32.totalorder %s219, %s220
      %p231 = scmp.eq.s32.totalorder %s29, 0
      %p232 = por %p230, %p231
      %p233 = scmp.ne.s32.totalorder %s219, %s220
      %p234 = scmp.eq.s32.totalorder %s30, 1
      %p235 = por %p233, %p234
      %p237 = scmp.ne.s32.totalorder %s220, %s236
      %p238 = scmp.eq.s32.totalorder %s30, 0
      %p239 = por %p237, %p238
      %p240 = scmp.le.s32.totalorder 1, %s24
      %p241 = scmp.lt.s32.totalorder %s24, 3
      %p242 = pnand %p240, %p241
      %p243 = pneg %p242
      // Predicated region
      $region9: #{tpu_custom_call.1} parent=5 // pred_check
        _
      $region10: #{tpu_custom_call.1} parent=5 // pred_check_branch
        %245 = sbr.rel (%p242) target = $region12
      $region11: #{tpu_custom_call.1} parent=5 // pred_region
        %s246 = ssub.s32 %s24, 1
        // Predicated region
        $region13: #{tpu_custom_call.1} parent=11 // pred_check
          %p247 = pneg %p120
        $region14: #{tpu_custom_call.1} parent=11 // pred_check_branch
          %249 = sbr.rel (%p247) target = $region16
        $region15: #{tpu_custom_call.1} parent=11 // pred_region
          %s251 = ssub.s32 1024, 1024
          %252 = vsyncadd [#allocation11], %s251
          %s253 = sshll.u32 [#allocation12], 4
          %s254 = int_to_ptr.vmem [resolvable:$true] %s253
          %259 = dma.hbm_to_vmem [thread:$0]  %s2, 1024, %s254, [#allocation11], 64, 64, 4
        $region16: #{tpu_custom_call.1} parent=11 // pred_fallthru
          _
        // Predicated region
        $region17: #{tpu_custom_call.1} parent=11 // pred_check
          %p260 = pneg %p141
        $region18: #{tpu_custom_call.1} parent=11 // pred_check_branch
          %262 = sbr.rel (%p260) target = $region20
        $region19: #{tpu_custom_call.1} parent=11 // pred_region
          _
        $region20: #{tpu_custom_call.1} parent=11 // pred_fallthru
          _
        // Predicated region
        $region21: #{tpu_custom_call.1} parent=11 // pred_check
          %p263 = pneg %p162
        $region22: #{tpu_custom_call.1} parent=11 // pred_check_branch
          %265 = sbr.rel (%p263) target = $region24
        $region23: #{tpu_custom_call.1} parent=11 // pred_region
          %s267 = ssub.s32 2048, 2048
          %268 = vsyncadd [#allocation14], %s267
          %s269 = sshll.u32 [#allocation13], 4
          %s270 = int_to_ptr.vmem [resolvable:$true] %s269
          %275 = dma.hbm_to_vmem [thread:$0]  %s4, 2048, %s270, [#allocation14], 128, 128, 8
        $region24: #{tpu_custom_call.1} parent=11 // pred_fallthru
          _
        // Predicated region
        $region25: #{tpu_custom_call.1} parent=11 // pred_check
          %p276 = pneg %p183
        $region26: #{tpu_custom_call.1} parent=11 // pred_check_branch
          %278 = sbr.rel (%p276) target = $region28
        $region27: #{tpu_custom_call.1} parent=11 // pred_region
          _
        $region28: #{tpu_custom_call.1} parent=11 // pred_fallthru
          _
        // Predicated region
        $region29: #{tpu_custom_call.1} parent=11 // pred_check
          %p279 = pneg %p204
        $region30: #{tpu_custom_call.1} parent=11 // pred_check_branch
          %281 = sbr.rel (%p279) target = $region32
        $region31: #{tpu_custom_call.1} parent=11 // pred_region
          _
        $region32: #{tpu_custom_call.1} parent=11 // pred_fallthru
          _
      $region12: #{tpu_custom_call.1} parent=5 // pred_fallthru
        _
      %p282 = scmp.lt.s32.totalorder %s24, 2
      // Predicated region
      $region33: #{tpu_custom_call.1} parent=5 // pred_check
        %p283 = pneg %p282
      $region34: #{tpu_custom_call.1} parent=5 // pred_check_branch
        %285 = sbr.rel (%p283) target = $region36
      $region35: #{tpu_custom_call.1} parent=5 // pred_region
        // Predicated region
        $region37: #{tpu_custom_call.1} parent=35 // pred_check
          %p286 = pneg %p65
        $region38: #{tpu_custom_call.1} parent=35 // pred_check_branch
          %288 = sbr.rel (%p286) target = $region40
        $region39: #{tpu_custom_call.1} parent=35 // pred_region
          %s289 = sand.u32 %s55, 1
          %s290 = scalar_lea.sflag [#allocation8], %s289
          %s291 = sand.u32 %s55, 1
          %s292 = smul.addr %s291, 256
          %s293 = scalar_lea.vmem [#allocation7], %s292
          %s294 = smul.u32 32, %s32
          %s296 = ssub.s32 4096, 4096
          %297 = vsyncadd %s290, %s296
          %s298 = smul.addr %s31, 32
          %s299 = sadd.s32 %s294, %s298
          %s300 = smul.addr %s299, 128
          %s301 = scalar_lea.hbm %s0, %s300
          %s302 = sshll.u32 %s293, 4
          %s303 = int_to_ptr.vmem [resolvable:$true] %s302
          %308 = dma.hbm_to_vmem [thread:$0]  %s301, 4096, %s303, %s290, 128, 128, 8
        $region40: #{tpu_custom_call.1} parent=35 // pred_fallthru
          _
        // Predicated region
        $region41: #{tpu_custom_call.1} parent=35 // pred_check
          %p309 = pneg %p93
        $region42: #{tpu_custom_call.1} parent=35 // pred_check_branch
          %311 = sbr.rel (%p309) target = $region44
        $region43: #{tpu_custom_call.1} parent=35 // pred_region
          %s312 = sand.u32 %s24, 1
          %s313 = scalar_lea.sflag [#allocation11], %s312
          %s314 = sand.u32 %s83, 1
          %s315 = smul.addr %s314, 128
          %s316 = scalar_lea.vmem [#allocation10], %s315
          %s317 = smul.u32 32, %s33
          %s319 = ssub.s32 2048, 2048
          %320 = vsyncadd %s313, %s319
          %s321 = smul.addr %s31, 32
          %s322 = sadd.s32 %s317, %s321
          %s323 = smul.addr %s322, 64
          %s324 = scalar_lea.hbm %s1, %s323
          %s325 = sshll.u32 %s316, 4
          %s326 = int_to_ptr.vmem [resolvable:$true] %s325
          %331 = dma.hbm_to_vmem [thread:$0]  %s324, 2048, %s326, %s313, 64, 64, 4
        $region44: #{tpu_custom_call.1} parent=35 // pred_fallthru
          _
      $region36: #{tpu_custom_call.1} parent=5 // pred_fallthru
        _
      %p332 = scmp.le.s32.totalorder 1, %s24
      %p333 = scmp.lt.s32.totalorder %s24, 3
      %p334 = pnand %p332, %p333
      %p335 = pneg %p334
      // Predicated region
      $region45: #{tpu_custom_call.1} parent=5 // pred_check
        _
      $region46: #{tpu_custom_call.1} parent=5 // pred_check_branch
        %337 = sbr.rel (%p334) target = $region48
      $region47: #{tpu_custom_call.1} parent=5 // pred_region
        %s338 = ssub.s32 %s24, 1
        %s339 = sand.u32 %s58, 1
        %s340 = scalar_lea.sflag [#allocation8], %s339
        %s341 = sand.u32 %s58, 1
        %s342 = smul.addr %s341, 256
        %s343 = scalar_lea.vmem [#allocation7], %s342
        // Predicated region
        $region49: #{tpu_custom_call.1} parent=47 // pred_check
          %p344 = pneg %p71
        $region50: #{tpu_custom_call.1} parent=47 // pred_check_branch
          %346 = sbr.rel (%p344) target = $region52
        $region51: #{tpu_custom_call.1} parent=47 // pred_region
          %347 = dma.done %s340, 4096
        $region52: #{tpu_custom_call.1} parent=47 // pred_fallthru
          _
        %s348 = sand.u32 %s29, 1
        %s349 = scalar_lea.sflag [#allocation11], %s348
        %s350 = sand.u32 %s86, 1
        %s351 = smul.addr %s350, 128
        %s352 = scalar_lea.vmem [#allocation10], %s351
        // Predicated region
        $region53: #{tpu_custom_call.1} parent=47 // pred_check
          %p353 = pneg %p99
        $region54: #{tpu_custom_call.1} parent=47 // pred_check_branch
          %355 = sbr.rel (%p353) target = $region56
        $region55: #{tpu_custom_call.1} parent=47 // pred_region
          %356 = dma.done %s349, 2048
        $region56: #{tpu_custom_call.1} parent=47 // pred_fallthru
          _
        // Predicated region
        $region57: #{tpu_custom_call.1} parent=47 // pred_check
          %p357 = pneg %p120
        $region58: #{tpu_custom_call.1} parent=47 // pred_check_branch
          %359 = sbr.rel (%p357) target = $region60
        $region59: #{tpu_custom_call.1} parent=47 // pred_region
          %360 = dma.done [#allocation11], 1024
        $region60: #{tpu_custom_call.1} parent=47 // pred_fallthru
          _
        // Predicated region
        $region61: #{tpu_custom_call.1} parent=47 // pred_check
          %p361 = pneg %p162
        $region62: #{tpu_custom_call.1} parent=47 // pred_check_branch
          %363 = sbr.rel (%p361) target = $region64
        $region63: #{tpu_custom_call.1} parent=47 // pred_region
          %364 = dma.done [#allocation14], 2048
        $region64: #{tpu_custom_call.1} parent=47 // pred_fallthru
          _
        %s365 = sand.u32 %s58, 1
        %s366 = scalar_lea.sflag [#allocation8], %s365
        %s367 = sand.u32 %s58, 1
        %s368 = smul.addr %s367, 256
        %s369 = scalar_lea.vmem [#allocation7], %s368
        %p370 = pneg %p71
        %p371 = pneg %p68
        %s372 = sand.u32 %s29, 1
        %s373 = scalar_lea.sflag [#allocation11], %s372
        %s374 = sand.u32 %s86, 1
        %s375 = smul.addr %s374, 128
        %s376 = scalar_lea.vmem [#allocation10], %s375
        %p377 = pneg %p99
        %p378 = pneg %p96
        %p379 = pneg %p120
        %p380 = pneg %p117
        %p381 = pneg %p141
        %p382 = pneg %p138
        %p383 = pneg %p162
        %p384 = pneg %p159
        %p385 = pneg %p183
        %p386 = pneg %p180
        %p387 = pneg %p204
        %p388 = pneg %p201
        %p389 = pneg %p232
        %p390 = pneg %p229
        %s391 = sand.u32 %s219, 1
        %s392 = scalar_lea.sflag [#allocation9], %s391
        %s393 = sand.u32 %s219, 1
        %s394 = smul.addr %s393, 256
        %s395 = scalar_lea.vmem [#allocation15], %s394
        %s396 = smul.u32 32, %s35
        %s397 = smul.u32 32, %s36
        %s398 = smul.u32 32, %s35
        %p400 = scmp.eq.s32.totalorder %s36, 0
        // Predicated region
        $region65: #{tpu_custom_call.1} parent=47 // pred_check
          %p401 = pneg %p400
        $region66: #{tpu_custom_call.1} parent=47 // pred_check_branch
          %403 = sbr.rel (%p401) target = $region68
        $region67: #{tpu_custom_call.1} parent=47 // pred_region
          %vm404 = vcmask 7168
          %405 = vst.msk [vmem:[#allocation3] sm:$0xff] %vm404, -1e+30
          %406 = vst.msk [vmem:[#allocation3 + $0x8] sm:$0xff] %vm404, -1e+30
          %407 = vst.msk [vmem:[#allocation3 + $0x10] sm:$0xff] %vm404, -1e+30
          %408 = vst.msk [vmem:[#allocation3 + $0x18] sm:$0xff] %vm404, -1e+30
          %409 = vst.msk [vmem:[#allocation3 + $0x20] sm:$0xff] %vm404, -1e+30
          %410 = vst.msk [vmem:[#allocation3 + $0x28] sm:$0xff] %vm404, -1e+30
          %411 = vst.msk [vmem:[#allocation3 + $0x30] sm:$0xff] %vm404, -1e+30
          %412 = vst.msk [vmem:[#allocation3 + $0x38] sm:$0xff] %vm404, -1e+30
          %413 = vst.msk [vmem:[#allocation3 + $0x40] sm:$0xff] %vm404, -1e+30
          %414 = vst.msk [vmem:[#allocation3 + $0x48] sm:$0xff] %vm404, -1e+30
          %415 = vst.msk [vmem:[#allocation3 + $0x50] sm:$0xff] %vm404, -1e+30
          %416 = vst.msk [vmem:[#allocation3 + $0x58] sm:$0xff] %vm404, -1e+30
          %417 = vst.msk [vmem:[#allocation3 + $0x60] sm:$0xff] %vm404, -1e+30
          %418 = vst.msk [vmem:[#allocation3 + $0x68] sm:$0xff] %vm404, -1e+30
          %419 = vst.msk [vmem:[#allocation3 + $0x70] sm:$0xff] %vm404, -1e+30
          %420 = vst.msk [vmem:[#allocation3 + $0x78] sm:$0xff] %vm404, -1e+30
          %421 = vst.msk [vmem:[#allocation3 + $0x80] sm:$0xff] %vm404, -1e+30
          %422 = vst.msk [vmem:[#allocation3 + $0x88] sm:$0xff] %vm404, -1e+30
          %423 = vst.msk [vmem:[#allocation3 + $0x90] sm:$0xff] %vm404, -1e+30
          %424 = vst.msk [vmem:[#allocation3 + $0x98] sm:$0xff] %vm404, -1e+30
          %425 = vst.msk [vmem:[#allocation3 + $0xa0] sm:$0xff] %vm404, -1e+30
          %426 = vst.msk [vmem:[#allocation3 + $0xa8] sm:$0xff] %vm404, -1e+30
          %427 = vst.msk [vmem:[#allocation3 + $0xb0] sm:$0xff] %vm404, -1e+30
          %428 = vst.msk [vmem:[#allocation3 + $0xb8] sm:$0xff] %vm404, -1e+30
          %429 = vst.msk [vmem:[#allocation3 + $0xc0] sm:$0xff] %vm404, -1e+30
          %430 = vst.msk [vmem:[#allocation3 + $0xc8] sm:$0xff] %vm404, -1e+30
          %431 = vst.msk [vmem:[#allocation3 + $0xd0] sm:$0xff] %vm404, -1e+30
          %432 = vst.msk [vmem:[#allocation3 + $0xd8] sm:$0xff] %vm404, -1e+30
          %433 = vst.msk [vmem:[#allocation3 + $0xe0] sm:$0xff] %vm404, -1e+30
          %434 = vst.msk [vmem:[#allocation3 + $0xe8] sm:$0xff] %vm404, -1e+30
          %435 = vst.msk [vmem:[#allocation3 + $0xf0] sm:$0xff] %vm404, -1e+30
          %436 = vst.msk [vmem:[#allocation3 + $0xf8] sm:$0xff] %vm404, -1e+30
          %437 = vst.msk [vmem:[#allocation4] sm:$0xff] %vm404, 0.0
          %438 = vst.msk [vmem:[#allocation4 + $0x8] sm:$0xff] %vm404, 0.0
          %439 = vst.msk [vmem:[#allocation4 + $0x10] sm:$0xff] %vm404, 0.0
          %440 = vst.msk [vmem:[#allocation4 + $0x18] sm:$0xff] %vm404, 0.0
          %441 = vst.msk [vmem:[#allocation4 + $0x20] sm:$0xff] %vm404, 0.0
          %442 = vst.msk [vmem:[#allocation4 + $0x28] sm:$0xff] %vm404, 0.0
          %443 = vst.msk [vmem:[#allocation4 + $0x30] sm:$0xff] %vm404, 0.0
          %444 = vst.msk [vmem:[#allocation4 + $0x38] sm:$0xff] %vm404, 0.0
          %445 = vst.msk [vmem:[#allocation4 + $0x40] sm:$0xff] %vm404, 0.0
          %446 = vst.msk [vmem:[#allocation4 + $0x48] sm:$0xff] %vm404, 0.0
          %447 = vst.msk [vmem:[#allocation4 + $0x50] sm:$0xff] %vm404, 0.0
          %448 = vst.msk [vmem:[#allocation4 + $0x58] sm:$0xff] %vm404, 0.0
          %449 = vst.msk [vmem:[#allocation4 + $0x60] sm:$0xff] %vm404, 0.0
          %450 = vst.msk [vmem:[#allocation4 + $0x68] sm:$0xff] %vm404, 0.0
          %451 = vst.msk [vmem:[#allocation4 + $0x70] sm:$0xff] %vm404, 0.0
          %452 = vst.msk [vmem:[#allocation4 + $0x78] sm:$0xff] %vm404, 0.0
          %453 = vst.msk [vmem:[#allocation4 + $0x80] sm:$0xff] %vm404, 0.0
          %454 = vst.msk [vmem:[#allocation4 + $0x88] sm:$0xff] %vm404, 0.0
          %455 = vst.msk [vmem:[#allocation4 + $0x90] sm:$0xff] %vm404, 0.0
          %456 = vst.msk [vmem:[#allocation4 + $0x98] sm:$0xff] %vm404, 0.0
          %457 = vst.msk [vmem:[#allocation4 + $0xa0] sm:$0xff] %vm404, 0.0
          %458 = vst.msk [vmem:[#allocation4 + $0xa8] sm:$0xff] %vm404, 0.0
          %459 = vst.msk [vmem:[#allocation4 + $0xb0] sm:$0xff] %vm404, 0.0
          %460 = vst.msk [vmem:[#allocation4 + $0xb8] sm:$0xff] %vm404, 0.0
          %461 = vst.msk [vmem:[#allocation4 + $0xc0] sm:$0xff] %vm404, 0.0
          %462 = vst.msk [vmem:[#allocation4 + $0xc8] sm:$0xff] %vm404, 0.0
          %463 = vst.msk [vmem:[#allocation4 + $0xd0] sm:$0xff] %vm404, 0.0
          %464 = vst.msk [vmem:[#allocation4 + $0xd8] sm:$0xff] %vm404, 0.0
          %465 = vst.msk [vmem:[#allocation4 + $0xe0] sm:$0xff] %vm404, 0.0
          %466 = vst.msk [vmem:[#allocation4 + $0xe8] sm:$0xff] %vm404, 0.0
          %467 = vst.msk [vmem:[#allocation4 + $0xf0] sm:$0xff] %vm404, 0.0
          %468 = vst.msk [vmem:[#allocation4 + $0xf8] sm:$0xff] %vm404, 0.0
          %469 = vst [vmem:[#allocation5] sm:$0xff] 0.0
          %470 = vst [vmem:[#allocation5 + $0x8] sm:$0xff] 0.0
          %471 = vst [vmem:[#allocation5 + $0x10] sm:$0xff] 0.0
          %472 = vst [vmem:[#allocation5 + $0x18] sm:$0xff] 0.0
          %473 = vst [vmem:[#allocation5 + $0x20] sm:$0xff] 0.0
          %474 = vst [vmem:[#allocation5 + $0x28] sm:$0xff] 0.0
          %475 = vst [vmem:[#allocation5 + $0x30] sm:$0xff] 0.0
          %476 = vst [vmem:[#allocation5 + $0x38] sm:$0xff] 0.0
          %477 = vst [vmem:[#allocation5 + $0x40] sm:$0xff] 0.0
          %478 = vst [vmem:[#allocation5 + $0x48] sm:$0xff] 0.0
          %479 = vst [vmem:[#allocation5 + $0x50] sm:$0xff] 0.0
          %480 = vst [vmem:[#allocation5 + $0x58] sm:$0xff] 0.0
          %481 = vst [vmem:[#allocation5 + $0x60] sm:$0xff] 0.0
          %482 = vst [vmem:[#allocation5 + $0x68] sm:$0xff] 0.0
          %483 = vst [vmem:[#allocation5 + $0x70] sm:$0xff] 0.0
          %484 = vst [vmem:[#allocation5 + $0x78] sm:$0xff] 0.0
          %485 = vst [vmem:[#allocation5 + $0x80] sm:$0xff] 0.0
          %486 = vst [vmem:[#allocation5 + $0x88] sm:$0xff] 0.0
          %487 = vst [vmem:[#allocation5 + $0x90] sm:$0xff] 0.0
          %488 = vst [vmem:[#allocation5 + $0x98] sm:$0xff] 0.0
          %489 = vst [vmem:[#allocation5 + $0xa0] sm:$0xff] 0.0
          %490 = vst [vmem:[#allocation5 + $0xa8] sm:$0xff] 0.0
          %491 = vst [vmem:[#allocation5 + $0xb0] sm:$0xff] 0.0
          %492 = vst [vmem:[#allocation5 + $0xb8] sm:$0xff] 0.0
          %493 = vst [vmem:[#allocation5 + $0xc0] sm:$0xff] 0.0
          %494 = vst [vmem:[#allocation5 + $0xc8] sm:$0xff] 0.0
          %495 = vst [vmem:[#allocation5 + $0xd0] sm:$0xff] 0.0
          %496 = vst [vmem:[#allocation5 + $0xd8] sm:$0xff] 0.0
          %497 = vst [vmem:[#allocation5 + $0xe0] sm:$0xff] 0.0
          %498 = vst [vmem:[#allocation5 + $0xe8] sm:$0xff] 0.0
          %499 = vst [vmem:[#allocation5 + $0xf0] sm:$0xff] 0.0
          %500 = vst [vmem:[#allocation5 + $0xf8] sm:$0xff] 0.0
          %v501 = vld [vmem:[%s343] sm:$0xff]
          %v502 = vld [vmem:[%s343 + $0x8] sm:$0xff]
          %v503 = vld [vmem:[%s343 + $0x10] sm:$0xff]
          %v504 = vld [vmem:[%s343 + $0x18] sm:$0xff]
          %v505 = vld [vmem:[%s343 + $0x20] sm:$0xff]
          %v506 = vld [vmem:[%s343 + $0x28] sm:$0xff]
          %v507 = vld [vmem:[%s343 + $0x30] sm:$0xff]
          %v508 = vld [vmem:[%s343 + $0x38] sm:$0xff]
          %v509 = vld [vmem:[%s343 + $0x40] sm:$0xff]
          %v510 = vld [vmem:[%s343 + $0x48] sm:$0xff]
          %v511 = vld [vmem:[%s343 + $0x50] sm:$0xff]
          %v512 = vld [vmem:[%s343 + $0x58] sm:$0xff]
          %v513 = vld [vmem:[%s343 + $0x60] sm:$0xff]
          %v514 = vld [vmem:[%s343 + $0x68] sm:$0xff]
          %v515 = vld [vmem:[%s343 + $0x70] sm:$0xff]
          %v516 = vld [vmem:[%s343 + $0x78] sm:$0xff]
          %v517 = vld [vmem:[%s343 + $0x80] sm:$0xff]
          %v518 = vld [vmem:[%s343 + $0x88] sm:$0xff]
          %v519 = vld [vmem:[%s343 + $0x90] sm:$0xff]
          %v520 = vld [vmem:[%s343 + $0x98] sm:$0xff]
          %v521 = vld [vmem:[%s343 + $0xa0] sm:$0xff]
          %v522 = vld [vmem:[%s343 + $0xa8] sm:$0xff]
          %v523 = vld [vmem:[%s343 + $0xb0] sm:$0xff]
          %v524 = vld [vmem:[%s343 + $0xb8] sm:$0xff]
          %v525 = vld [vmem:[%s343 + $0xc0] sm:$0xff]
          %v526 = vld [vmem:[%s343 + $0xc8] sm:$0xff]
          %v527 = vld [vmem:[%s343 + $0xd0] sm:$0xff]
          %v528 = vld [vmem:[%s343 + $0xd8] sm:$0xff]
          %v529 = vld [vmem:[%s343 + $0xe0] sm:$0xff]
          %v530 = vld [vmem:[%s343 + $0xe8] sm:$0xff]
          %v531 = vld [vmem:[%s343 + $0xf0] sm:$0xff]
          %v532 = vld [vmem:[%s343 + $0xf8] sm:$0xff]
          %v533 = vpack.c.bf16 %v502, %v501
          %v534 = vpack.c.bf16 %v504, %v503
          %v535 = vpack.c.bf16 %v506, %v505
          %v536 = vpack.c.bf16 %v508, %v507
          %v537 = vpack.c.bf16 %v510, %v509
          %v538 = vpack.c.bf16 %v512, %v511
          %v539 = vpack.c.bf16 %v514, %v513
          %v540 = vpack.c.bf16 %v516, %v515
          %v541 = vpack.c.bf16 %v518, %v517
          %v542 = vpack.c.bf16 %v520, %v519
          %v543 = vpack.c.bf16 %v522, %v521
          %v544 = vpack.c.bf16 %v524, %v523
          %v545 = vpack.c.bf16 %v526, %v525
          %v546 = vpack.c.bf16 %v528, %v527
          %v547 = vpack.c.bf16 %v530, %v529
          %v548 = vpack.c.bf16 %v532, %v531
          %v549 = vld [vmem:[#allocation12] sm:$0xf]
          %v550 = vld [vmem:[#allocation12 + $0x4] sm:$0xf]
          %v551 = vld [vmem:[#allocation12 + $0x8] sm:$0xf]
          %v552 = vld [vmem:[#allocation12 + $0xc] sm:$0xf]
          %v553 = vld [vmem:[#allocation12 + $0x10] sm:$0xf]
          %v554 = vld [vmem:[#allocation12 + $0x14] sm:$0xf]
          %v555 = vld [vmem:[#allocation12 + $0x18] sm:$0xf]
          %v556 = vld [vmem:[#allocation12 + $0x1c] sm:$0xf]
          %v557 = vld [vmem:[#allocation12 + $0x20] sm:$0xf]
          %v558 = vld [vmem:[#allocation12 + $0x24] sm:$0xf]
          %v559 = vld [vmem:[#allocation12 + $0x28] sm:$0xf]
          %v560 = vld [vmem:[#allocation12 + $0x2c] sm:$0xf]
          %v561 = vld [vmem:[#allocation12 + $0x30] sm:$0xf]
          %v562 = vld [vmem:[#allocation12 + $0x34] sm:$0xf]
          %v563 = vld [vmem:[#allocation12 + $0x38] sm:$0xf]
          %v564 = vld [vmem:[#allocation12 + $0x3c] sm:$0xf]
          %v565 = vld [vmem:[%s3] sm:$0x1]
          %v567 = vlaneseq
          %v568 = vshrl.u32 %v567, 7
          %v569 = vsub.s32 0, %v568
          %v570 = vrot.slane %v565, %v569
          %v588 = vunpack.c.l.b16 %v549
          %v589 = vunpack.c.l.b16 %v550
          %v590 = vunpack.c.l.b16 %v551
          %v591 = vunpack.c.l.b16 %v552
          %v592 = vunpack.c.l.b16 %v553
          %v593 = vunpack.c.l.b16 %v554
          %v594 = vunpack.c.l.b16 %v555
          %v595 = vunpack.c.l.b16 %v556
          %v596 = vunpack.c.l.b16 %v557
          %v597 = vunpack.c.l.b16 %v558
          %v598 = vunpack.c.l.b16 %v559
          %v599 = vunpack.c.l.b16 %v560
          %v600 = vunpack.c.l.b16 %v561
          %v601 = vunpack.c.l.b16 %v562
          %v602 = vunpack.c.l.b16 %v563
          %v603 = vunpack.c.l.b16 %v564
          %v604 = vpack.c.b16 %v589, %v588
          %v605 = vpack.c.b16 %v591, %v590
          %v606 = vpack.c.b16 %v593, %v592
          %v607 = vpack.c.b16 %v595, %v594
          %v608 = vpack.c.b16 %v597, %v596
          %v609 = vpack.c.b16 %v599, %v598
          %v610 = vpack.c.b16 %v601, %v600
          %v611 = vpack.c.b16 %v603, %v602
          %620 = vmatprep.subr.bf16.mxu0 0
          %621 = vmatpush1.bf16.msra.mxu0 %v611
          %622 = vmatprep.subr.bf16.mxu0 0
          %623 = vmatpush1.bf16.msra.mxu0 %v610
          %624 = vmatprep.subr.bf16.mxu0 0
          %625 = vmatpush1.bf16.msra.mxu0 %v609
          %626 = vmatprep.subr.bf16.mxu0 0
          %627 = vmatpush1.bf16.msra.mxu0 %v608
          %628 = vmatprep.subr.bf16.mxu0 0
          %629 = vmatpush1.bf16.msra.mxu0 %v607
          %630 = vmatprep.subr.bf16.mxu0 0
          %631 = vmatpush1.bf16.msra.mxu0 %v606
          %632 = vmatprep.subr.bf16.mxu0 0
          %633 = vmatpush1.bf16.msra.mxu0 %v605
          %634 = vmatprep.subr.bf16.mxu0 0
          %635 = vmatpush1.bf16.msra.mxu0 %v604
          %636 = vmatprep.subr.bf16.mxu0 0
          %637 = vmatpush2.bf16.msra.mxu0 0
          %638 = vmatprep.subr.bf16.mxu0 0
          %639 = vmatpush2.bf16.msra.mxu0 0
          %640 = vmatprep.subr.bf16.mxu0 0
          %641 = vmatpush2.bf16.msra.mxu0 0
          %642 = vmatprep.subr.bf16.mxu0 0
          %643 = vmatpush2.bf16.msra.mxu0 0
          %644 = vmatprep.subr.bf16.mxu0 0
          %645 = vmatpush2.bf16.msra.mxu0 0
          %646 = vmatprep.subr.bf16.mxu0 0
          %647 = vmatpush2.bf16.msra.mxu0 0
          %648 = vmatprep.subr.bf16.mxu0 0
          %649 = vmatpush2.bf16.msra.mxu0 0
          %650 = vmatprep.subr.bf16.mxu0 0
          %651 = vmatpush2.bf16.msra.mxu0 0
          %652 = vmatprep.mubr.bf16.mxu0 0
          %653 = vmatmul.mubr.bf16.gmra.mxu0 %v533
          %v654 = vpop.f32.mrf.mxu0
          %v655 = vadd.f32 %v570, %v654
          %v656 = vpop.f32.mrf.mxu0
          %v657 = vpop.f32.mrf.mxu0
          %v658 = vadd.f32 %v570, %v657
          %v659 = vpop.f32.mrf.mxu0
          %660 = vmatprep.mubr.bf16.mxu0 0
          %661 = vmatmul.mubr.bf16.gmra.mxu0 %v534
          %v662 = vpop.f32.mrf.mxu0
          %v663 = vadd.f32 %v570, %v662
          %v664 = vpop.f32.mrf.mxu0
          %v665 = vpop.f32.mrf.mxu0
          %v666 = vadd.f32 %v570, %v665
          %v667 = vpop.f32.mrf.mxu0
          %668 = vmatprep.mubr.bf16.mxu0 0
          %669 = vmatmul.mubr.bf16.gmra.mxu0 %v535
          %v670 = vpop.f32.mrf.mxu0
          %v671 = vadd.f32 %v570, %v670
          %v672 = vpop.f32.mrf.mxu0
          %v673 = vpop.f32.mrf.mxu0
          %v674 = vadd.f32 %v570, %v673
          %v675 = vpop.f32.mrf.mxu0
          %676 = vmatprep.mubr.bf16.mxu0 0
          %677 = vmatmul.mubr.bf16.gmra.mxu0 %v536
          %v678 = vpop.f32.mrf.mxu0
          %v679 = vadd.f32 %v570, %v678
          %v680 = vpop.f32.mrf.mxu0
          %v681 = vpop.f32.mrf.mxu0
          %v682 = vadd.f32 %v570, %v681
          %v683 = vpop.f32.mrf.mxu0
          %684 = vmatprep.mubr.bf16.mxu0 0
          %685 = vmatmul.mubr.bf16.gmra.mxu0 %v537
          %v686 = vpop.f32.mrf.mxu0
          %v687 = vadd.f32 %v570, %v686
          %v688 = vpop.f32.mrf.mxu0
          %v689 = vpop.f32.mrf.mxu0
          %v690 = vadd.f32 %v570, %v689
          %v691 = vpop.f32.mrf.mxu0
          %692 = vmatprep.mubr.bf16.mxu0 0
          %693 = vmatmul.mubr.bf16.gmra.mxu0 %v538
          %v694 = vpop.f32.mrf.mxu0
          %v695 = vadd.f32 %v570, %v694
          %v696 = vpop.f32.mrf.mxu0
          %v697 = vpop.f32.mrf.mxu0
          %v698 = vadd.f32 %v570, %v697
          %v699 = vpop.f32.mrf.mxu0
          %700 = vmatprep.mubr.bf16.mxu0 0
          %701 = vmatmul.mubr.bf16.gmra.mxu0 %v539
          %v702 = vpop.f32.mrf.mxu0
          %v703 = vadd.f32 %v570, %v702
          %v704 = vpop.f32.mrf.mxu0
          %v705 = vpop.f32.mrf.mxu0
          %v706 = vadd.f32 %v570, %v705
          %v707 = vpop.f32.mrf.mxu0
          %708 = vmatprep.mubr.bf16.mxu0 0
          %709 = vmatmul.mubr.bf16.gmra.mxu0 %v540
          %v710 = vpop.f32.mrf.mxu0
          %v711 = vadd.f32 %v570, %v710
          %v712 = vpop.f32.mrf.mxu0
          %v713 = vpop.f32.mrf.mxu0
          %v714 = vadd.f32 %v570, %v713
          %v715 = vpop.f32.mrf.mxu0
          %716 = vmatprep.mubr.bf16.mxu0 0
          %717 = vmatmul.mubr.bf16.gmra.mxu0 %v541
          %v718 = vpop.f32.mrf.mxu0
          %v719 = vadd.f32 %v570, %v718
          %v720 = vpop.f32.mrf.mxu0
          %v721 = vpop.f32.mrf.mxu0
          %v722 = vadd.f32 %v570, %v721
          %v723 = vpop.f32.mrf.mxu0
          %724 = vmatprep.mubr.bf16.mxu0 0
          %725 = vmatmul.mubr.bf16.gmra.mxu0 %v542
          %v726 = vpop.f32.mrf.mxu0
          %v727 = vadd.f32 %v570, %v726
          %v728 = vpop.f32.mrf.mxu0
          %v729 = vpop.f32.mrf.mxu0
          %v730 = vadd.f32 %v570, %v729
          %v731 = vpop.f32.mrf.mxu0
          %732 = vmatprep.mubr.bf16.mxu0 0
          %733 = vmatmul.mubr.bf16.gmra.mxu0 %v543
          %v734 = vpop.f32.mrf.mxu0
          %v735 = vadd.f32 %v570, %v734
          %v736 = vpop.f32.mrf.mxu0
          %v737 = vpop.f32.mrf.mxu0
          %v738 = vadd.f32 %v570, %v737
          %v739 = vpop.f32.mrf.mxu0
          %740 = vmatprep.mubr.bf16.mxu0 0
          %741 = vmatmul.mubr.bf16.gmra.mxu0 %v544
          %v742 = vpop.f32.mrf.mxu0
          %v743 = vadd.f32 %v570, %v742
          %v744 = vpop.f32.mrf.mxu0
          %v745 = vpop.f32.mrf.mxu0
          %v746 = vadd.f32 %v570, %v745
          %v747 = vpop.f32.mrf.mxu0
          %748 = vmatprep.mubr.bf16.mxu0 0
          %749 = vmatmul.mubr.bf16.gmra.mxu0 %v545
          %v750 = vpop.f32.mrf.mxu0
          %v751 = vadd.f32 %v570, %v750
          %v752 = vpop.f32.mrf.mxu0
          %v753 = vpop.f32.mrf.mxu0
          %v754 = vadd.f32 %v570, %v753
          %v755 = vpop.f32.mrf.mxu0
          %756 = vmatprep.mubr.bf16.mxu0 0
          %757 = vmatmul.mubr.bf16.gmra.mxu0 %v546
          %v758 = vpop.f32.mrf.mxu0
          %v759 = vadd.f32 %v570, %v758
          %v760 = vpop.f32.mrf.mxu0
          %v761 = vpop.f32.mrf.mxu0
          %v762 = vadd.f32 %v570, %v761
          %v763 = vpop.f32.mrf.mxu0
          %764 = vmatprep.mubr.bf16.mxu0 0
          %765 = vmatmul.mubr.bf16.gmra.mxu0 %v547
          %v766 = vpop.f32.mrf.mxu0
          %v767 = vadd.f32 %v570, %v766
          %v768 = vpop.f32.mrf.mxu0
          %v769 = vpop.f32.mrf.mxu0
          %v770 = vadd.f32 %v570, %v769
          %v771 = vpop.f32.mrf.mxu0
          %772 = vmatprep.mubr.bf16.mxu0 0
          %773 = vmatmul.mubr.bf16.gmra.mxu0 %v548
          %v774 = vpop.f32.mrf.mxu0
          %v775 = vadd.f32 %v570, %v774
          %v776 = vpop.f32.mrf.mxu0
          %v777 = vpop.f32.mrf.mxu0
          %v778 = vadd.f32 %v570, %v777
          %v779 = vpop.f32.mrf.mxu0
          %780 = vdwg.mxu0
          %v781 = vpack.c.bf16 %v658, %v655
          %v782 = vpack.c.bf16 %v666, %v663
          %v783 = vpack.c.bf16 %v674, %v671
          %v784 = vpack.c.bf16 %v682, %v679
          %v785 = vpack.c.bf16 %v690, %v687
          %v786 = vpack.c.bf16 %v698, %v695
          %v787 = vpack.c.bf16 %v706, %v703
          %v788 = vpack.c.bf16 %v714, %v711
          %v789 = vpack.c.bf16 %v722, %v719
          %v790 = vpack.c.bf16 %v730, %v727
          %v791 = vpack.c.bf16 %v738, %v735
          %v792 = vpack.c.bf16 %v746, %v743
          %v793 = vpack.c.bf16 %v754, %v751
          %v794 = vpack.c.bf16 %v762, %v759
          %v795 = vpack.c.bf16 %v770, %v767
          %v796 = vpack.c.bf16 %v778, %v775
          %v813 = vunpack.c.l.b16 %v781
          %v814 = vunpack.c.h.b16 %v781
          %v815 = vunpack.c.l.b16 %v782
          %v816 = vunpack.c.h.b16 %v782
          %v817 = vunpack.c.l.b16 %v783
          %v818 = vunpack.c.h.b16 %v783
          %v819 = vunpack.c.l.b16 %v784
          %v820 = vunpack.c.h.b16 %v784
          %v821 = vunpack.c.l.b16 %v785
          %v822 = vunpack.c.h.b16 %v785
          %v823 = vunpack.c.l.b16 %v786
          %v824 = vunpack.c.h.b16 %v786
          %v825 = vunpack.c.l.b16 %v787
          %v826 = vunpack.c.h.b16 %v787
          %v827 = vunpack.c.l.b16 %v788
          %v828 = vunpack.c.h.b16 %v788
          %v829 = vunpack.c.l.b16 %v789
          %v830 = vunpack.c.h.b16 %v789
          %v831 = vunpack.c.l.b16 %v790
          %v832 = vunpack.c.h.b16 %v790
          %v833 = vunpack.c.l.b16 %v791
          %v834 = vunpack.c.h.b16 %v791
          %v835 = vunpack.c.l.b16 %v792
          %v836 = vunpack.c.h.b16 %v792
          %v837 = vunpack.c.l.b16 %v793
          %v838 = vunpack.c.h.b16 %v793
          %v839 = vunpack.c.l.b16 %v794
          %v840 = vunpack.c.h.b16 %v794
          %v841 = vunpack.c.l.b16 %v795
          %v842 = vunpack.c.h.b16 %v795
          %v843 = vunpack.c.l.b16 %v796
          %v844 = vunpack.c.h.b16 %v796
          %v845 = vpack.c.b16 %v813, %v813
          %v846 = vpack.c.b16 %v814, %v814
          %v847 = vpack.c.b16 %v815, %v815
          %v848 = vpack.c.b16 %v816, %v816
          %v849 = vpack.c.b16 %v817, %v817
          %v850 = vpack.c.b16 %v818, %v818
          %v851 = vpack.c.b16 %v819, %v819
          %v852 = vpack.c.b16 %v820, %v820
          %v853 = vpack.c.b16 %v821, %v821
          %v854 = vpack.c.b16 %v822, %v822
          %v855 = vpack.c.b16 %v823, %v823
          %v856 = vpack.c.b16 %v824, %v824
          %v857 = vpack.c.b16 %v825, %v825
          %v858 = vpack.c.b16 %v826, %v826
          %v859 = vpack.c.b16 %v827, %v827
          %v860 = vpack.c.b16 %v828, %v828
          %v861 = vpack.c.b16 %v829, %v829
          %v862 = vpack.c.b16 %v830, %v830
          %v863 = vpack.c.b16 %v831, %v831
          %v864 = vpack.c.b16 %v832, %v832
          %v865 = vpack.c.b16 %v833, %v833
          %v866 = vpack.c.b16 %v834, %v834
          %v867 = vpack.c.b16 %v835, %v835
          %v868 = vpack.c.b16 %v836, %v836
          %v869 = vpack.c.b16 %v837, %v837
          %v870 = vpack.c.b16 %v838, %v838
          %v871 = vpack.c.b16 %v839, %v839
          %v872 = vpack.c.b16 %v840, %v840
          %v873 = vpack.c.b16 %v841, %v841
          %v874 = vpack.c.b16 %v842, %v842
          %v875 = vpack.c.b16 %v843, %v843
          %v876 = vpack.c.b16 %v844, %v844
          %909 = vst [vmem:[#allocation2] sm:$0xf] %v845
          %910 = vst [vmem:[#allocation2 + $0x4] sm:$0xf] %v846
          %911 = vst [vmem:[#allocation2 + $0x8] sm:$0xf] %v847
          %912 = vst [vmem:[#allocation2 + $0xc] sm:$0xf] %v848
          %913 = vst [vmem:[#allocation2 + $0x10] sm:$0xf] %v849
          %914 = vst [vmem:[#allocation2 + $0x14] sm:$0xf] %v850
          %915 = vst [vmem:[#allocation2 + $0x18] sm:$0xf] %v851
          %916 = vst [vmem:[#allocation2 + $0x1c] sm:$0xf] %v852
          %917 = vst [vmem:[#allocation2 + $0x20] sm:$0xf] %v853
          %918 = vst [vmem:[#allocation2 + $0x24] sm:$0xf] %v854
          %919 = vst [vmem:[#allocation2 + $0x28] sm:$0xf] %v855
          %920 = vst [vmem:[#allocation2 + $0x2c] sm:$0xf] %v856
          %921 = vst [vmem:[#allocation2 + $0x30] sm:$0xf] %v857
          %922 = vst [vmem:[#allocation2 + $0x34] sm:$0xf] %v858
          %923 = vst [vmem:[#allocation2 + $0x38] sm:$0xf] %v859
          %924 = vst [vmem:[#allocation2 + $0x3c] sm:$0xf] %v860
          %925 = vst [vmem:[#allocation2 + $0x40] sm:$0xf] %v861
          %926 = vst [vmem:[#allocation2 + $0x44] sm:$0xf] %v862
          %927 = vst [vmem:[#allocation2 + $0x48] sm:$0xf] %v863
          %928 = vst [vmem:[#allocation2 + $0x4c] sm:$0xf] %v864
          %929 = vst [vmem:[#allocation2 + $0x50] sm:$0xf] %v865
          %930 = vst [vmem:[#allocation2 + $0x54] sm:$0xf] %v866
          %931 = vst [vmem:[#allocation2 + $0x58] sm:$0xf] %v867
          %932 = vst [vmem:[#allocation2 + $0x5c] sm:$0xf] %v868
          %933 = vst [vmem:[#allocation2 + $0x60] sm:$0xf] %v869
          %934 = vst [vmem:[#allocation2 + $0x64] sm:$0xf] %v870
          %935 = vst [vmem:[#allocation2 + $0x68] sm:$0xf] %v871
          %936 = vst [vmem:[#allocation2 + $0x6c] sm:$0xf] %v872
          %937 = vst [vmem:[#allocation2 + $0x70] sm:$0xf] %v873
          %938 = vst [vmem:[#allocation2 + $0x74] sm:$0xf] %v874
          %939 = vst [vmem:[#allocation2 + $0x78] sm:$0xf] %v875
          %940 = vst [vmem:[#allocation2 + $0x7c] sm:$0xf] %v876
        $region68: #{tpu_custom_call.1} parent=47 // pred_fallthru
          _
        %v941 = vld [vmem:[%s352] sm:$0xf]
        %v942 = vld [vmem:[%s352 + $0x4] sm:$0xf]
        %v943 = vld [vmem:[%s352 + $0x8] sm:$0xf]
        %v944 = vld [vmem:[%s352 + $0xc] sm:$0xf]
        %v945 = vld [vmem:[%s352 + $0x10] sm:$0xf]
        %v946 = vld [vmem:[%s352 + $0x14] sm:$0xf]
        %v947 = vld [vmem:[%s352 + $0x18] sm:$0xf]
        %v948 = vld [vmem:[%s352 + $0x1c] sm:$0xf]
        %v949 = vld [vmem:[%s352 + $0x20] sm:$0xf]
        %v950 = vld [vmem:[%s352 + $0x24] sm:$0xf]
        %v951 = vld [vmem:[%s352 + $0x28] sm:$0xf]
        %v952 = vld [vmem:[%s352 + $0x2c] sm:$0xf]
        %v953 = vld [vmem:[%s352 + $0x30] sm:$0xf]
        %v954 = vld [vmem:[%s352 + $0x34] sm:$0xf]
        %v955 = vld [vmem:[%s352 + $0x38] sm:$0xf]
        %v956 = vld [vmem:[%s352 + $0x3c] sm:$0xf]
        %v957 = vld [vmem:[%s352 + $0x40] sm:$0xf]
        %v958 = vld [vmem:[%s352 + $0x44] sm:$0xf]
        %v959 = vld [vmem:[%s352 + $0x48] sm:$0xf]
        %v960 = vld [vmem:[%s352 + $0x4c] sm:$0xf]
        %v961 = vld [vmem:[%s352 + $0x50] sm:$0xf]
        %v962 = vld [vmem:[%s352 + $0x54] sm:$0xf]
        %v963 = vld [vmem:[%s352 + $0x58] sm:$0xf]
        %v964 = vld [vmem:[%s352 + $0x5c] sm:$0xf]
        %v965 = vld [vmem:[%s352 + $0x60] sm:$0xf]
        %v966 = vld [vmem:[%s352 + $0x64] sm:$0xf]
        %v967 = vld [vmem:[%s352 + $0x68] sm:$0xf]
        %v968 = vld [vmem:[%s352 + $0x6c] sm:$0xf]
        %v969 = vld [vmem:[%s352 + $0x70] sm:$0xf]
        %v970 = vld [vmem:[%s352 + $0x74] sm:$0xf]
        %v971 = vld [vmem:[%s352 + $0x78] sm:$0xf]
        %v972 = vld [vmem:[%s352 + $0x7c] sm:$0xf]
        %v973 = vld [vmem:[#allocation13] sm:$0xff]
        %v974 = vld [vmem:[#allocation13 + $0x8] sm:$0xff]
        %v975 = vld [vmem:[#allocation13 + $0x10] sm:$0xff]
        %v976 = vld [vmem:[#allocation13 + $0x18] sm:$0xff]
        %v977 = vld [vmem:[#allocation13 + $0x20] sm:$0xff]
        %v978 = vld [vmem:[#allocation13 + $0x28] sm:$0xff]
        %v979 = vld [vmem:[#allocation13 + $0x30] sm:$0xff]
        %v980 = vld [vmem:[#allocation13 + $0x38] sm:$0xff]
        %v981 = vld [vmem:[#allocation13 + $0x40] sm:$0xff]
        %v982 = vld [vmem:[#allocation13 + $0x48] sm:$0xff]
        %v983 = vld [vmem:[#allocation13 + $0x50] sm:$0xff]
        %v984 = vld [vmem:[#allocation13 + $0x58] sm:$0xff]
        %v985 = vld [vmem:[#allocation13 + $0x60] sm:$0xff]
        %v986 = vld [vmem:[#allocation13 + $0x68] sm:$0xff]
        %v987 = vld [vmem:[#allocation13 + $0x70] sm:$0xff]
        %v988 = vld [vmem:[#allocation13 + $0x78] sm:$0xff]
        %v989 = vld [vmem:[%s5] sm:$0x3]
        %v991 = vlaneseq
        %v992 = vshrl.u32 %v991, 7
        %v993 = vsub.s32 0, %v992
        %v994 = vrot.slane %v989, %v993
        %v995 = vlaneseq
        %v996 = vshrl.u32 %v995, 7
        %v997 = vsub.s32 1, %v996
        %v998 = vrot.slane %v989, %v997
        %v1033 = vunpack.c.l.b16 %v941
        %v1034 = vunpack.c.l.b16 %v942
        %v1035 = vunpack.c.l.b16 %v943
        %v1036 = vunpack.c.l.b16 %v944
        %v1037 = vunpack.c.l.b16 %v945
        %v1038 = vunpack.c.l.b16 %v946
        %v1039 = vunpack.c.l.b16 %v947
        %v1040 = vunpack.c.l.b16 %v948
        %v1041 = vunpack.c.l.b16 %v949
        %v1042 = vunpack.c.l.b16 %v950
        %v1043 = vunpack.c.l.b16 %v951
        %v1044 = vunpack.c.l.b16 %v952
        %v1045 = vunpack.c.l.b16 %v953
        %v1046 = vunpack.c.l.b16 %v954
        %v1047 = vunpack.c.l.b16 %v955
        %v1048 = vunpack.c.l.b16 %v956
        %v1049 = vunpack.c.l.b16 %v957
        %v1050 = vunpack.c.l.b16 %v958
        %v1051 = vunpack.c.l.b16 %v959
        %v1052 = vunpack.c.l.b16 %v960
        %v1053 = vunpack.c.l.b16 %v961
        %v1054 = vunpack.c.l.b16 %v962
        %v1055 = vunpack.c.l.b16 %v963
        %v1056 = vunpack.c.l.b16 %v964
        %v1057 = vunpack.c.l.b16 %v965
        %v1058 = vunpack.c.l.b16 %v966
        %v1059 = vunpack.c.l.b16 %v967
        %v1060 = vunpack.c.l.b16 %v968
        %v1061 = vunpack.c.l.b16 %v969
        %v1062 = vunpack.c.l.b16 %v970
        %v1063 = vunpack.c.l.b16 %v971
        %v1064 = vunpack.c.l.b16 %v972
        %v1065 = vpack.c.b16 %v1034, %v1033
        %v1066 = vpack.c.b16 %v1036, %v1035
        %v1067 = vpack.c.b16 %v1038, %v1037
        %v1068 = vpack.c.b16 %v1040, %v1039
        %v1069 = vpack.c.b16 %v1042, %v1041
        %v1070 = vpack.c.b16 %v1044, %v1043
        %v1071 = vpack.c.b16 %v1046, %v1045
        %v1072 = vpack.c.b16 %v1048, %v1047
        %v1073 = vpack.c.b16 %v1050, %v1049
        %v1074 = vpack.c.b16 %v1052, %v1051
        %v1075 = vpack.c.b16 %v1054, %v1053
        %v1076 = vpack.c.b16 %v1056, %v1055
        %v1077 = vpack.c.b16 %v1058, %v1057
        %v1078 = vpack.c.b16 %v1060, %v1059
        %v1079 = vpack.c.b16 %v1062, %v1061
        %v1080 = vpack.c.b16 %v1064, %v1063
        %v1113 = vunpack.c.l.b16 %v973
        %v1114 = vunpack.c.h.b16 %v973
        %v1115 = vunpack.c.l.b16 %v974
        %v1116 = vunpack.c.h.b16 %v974
        %v1117 = vunpack.c.l.b16 %v975
        %v1118 = vunpack.c.h.b16 %v975
        %v1119 = vunpack.c.l.b16 %v976
        %v1120 = vunpack.c.h.b16 %v976
        %v1121 = vunpack.c.l.b16 %v977
        %v1122 = vunpack.c.h.b16 %v977
        %v1123 = vunpack.c.l.b16 %v978
        %v1124 = vunpack.c.h.b16 %v978
        %v1125 = vunpack.c.l.b16 %v979
        %v1126 = vunpack.c.h.b16 %v979
        %v1127 = vunpack.c.l.b16 %v980
        %v1128 = vunpack.c.h.b16 %v980
        %v1129 = vunpack.c.l.b16 %v981
        %v1130 = vunpack.c.h.b16 %v981
        %v1131 = vunpack.c.l.b16 %v982
        %v1132 = vunpack.c.h.b16 %v982
        %v1133 = vunpack.c.l.b16 %v983
        %v1134 = vunpack.c.h.b16 %v983
        %v1135 = vunpack.c.l.b16 %v984
        %v1136 = vunpack.c.h.b16 %v984
        %v1137 = vunpack.c.l.b16 %v985
        %v1138 = vunpack.c.h.b16 %v985
        %v1139 = vunpack.c.l.b16 %v986
        %v1140 = vunpack.c.h.b16 %v986
        %v1141 = vunpack.c.l.b16 %v987
        %v1142 = vunpack.c.h.b16 %v987
        %v1143 = vunpack.c.l.b16 %v988
        %v1144 = vunpack.c.h.b16 %v988
        %v1145 = vpack.c.b16 %v1115, %v1113
        %v1146 = vpack.c.b16 %v1116, %v1114
        %v1147 = vpack.c.b16 %v1119, %v1117
        %v1148 = vpack.c.b16 %v1120, %v1118
        %v1149 = vpack.c.b16 %v1123, %v1121
        %v1150 = vpack.c.b16 %v1124, %v1122
        %v1151 = vpack.c.b16 %v1127, %v1125
        %v1152 = vpack.c.b16 %v1128, %v1126
        %v1153 = vpack.c.b16 %v1131, %v1129
        %v1154 = vpack.c.b16 %v1132, %v1130
        %v1155 = vpack.c.b16 %v1135, %v1133
        %v1156 = vpack.c.b16 %v1136, %v1134
        %v1157 = vpack.c.b16 %v1139, %v1137
        %v1158 = vpack.c.b16 %v1140, %v1138
        %v1159 = vpack.c.b16 %v1143, %v1141
        %v1160 = vpack.c.b16 %v1144, %v1142
        %1177 = vmatprep.subr.bf16.mxu0 %v1160
        %1178 = vmatpush1.bf16.msra.mxu0 %v1159
        %1179 = vmatprep.subr.bf16.mxu0 %v1158
        %1180 = vmatpush1.bf16.msra.mxu0 %v1157
        %1181 = vmatprep.subr.bf16.mxu0 %v1156
        %1182 = vmatpush1.bf16.msra.mxu0 %v1155
        %1183 = vmatprep.subr.bf16.mxu0 %v1154
        %1184 = vmatpush1.bf16.msra.mxu0 %v1153
        %1185 = vmatprep.subr.bf16.mxu0 %v1152
        %1186 = vmatpush1.bf16.msra.mxu0 %v1151
        %1187 = vmatprep.subr.bf16.mxu0 %v1150
        %1188 = vmatpush1.bf16.msra.mxu0 %v1149
        %1189 = vmatprep.subr.bf16.mxu0 %v1148
        %1190 = vmatpush1.bf16.msra.mxu0 %v1147
        %1191 = vmatprep.subr.bf16.mxu0 %v1146
        %1192 = vmatpush1.bf16.msra.mxu0 %v1145
        %1193 = vmatprep.subr.bf16.mxu0 0
        %1194 = vmatpush2.bf16.msra.mxu0 0
        %1195 = vmatprep.subr.bf16.mxu0 0
        %1196 = vmatpush2.bf16.msra.mxu0 0
        %1197 = vmatprep.subr.bf16.mxu0 0
        %1198 = vmatpush2.bf16.msra.mxu0 0
        %1199 = vmatprep.subr.bf16.mxu0 0
        %1200 = vmatpush2.bf16.msra.mxu0 0
        %1201 = vmatprep.subr.bf16.mxu0 0
        %1202 = vmatpush2.bf16.msra.mxu0 0
        %1203 = vmatprep.subr.bf16.mxu0 0
        %1204 = vmatpush2.bf16.msra.mxu0 0
        %1205 = vmatprep.subr.bf16.mxu0 0
        %1206 = vmatpush2.bf16.msra.mxu0 0
        %1207 = vmatprep.subr.bf16.mxu0 0
        %1208 = vmatpush2.bf16.msra.mxu0 0
        %1209 = vmatprep.mubr.bf16.mxu0 0
        %1210 = vmatmul.mubr.bf16.gmra.mxu0 %v1065
        %v1211 = vpop.f32.mrf.mxu0
        %v1212 = vadd.f32 %v994, %v1211
        %v1213 = vpop.f32.mrf.mxu0
        %v1214 = vadd.f32 %v998, %v1213
        %v1215 = vpop.f32.mrf.mxu0
        %v1216 = vadd.f32 %v994, %v1215
        %v1217 = vpop.f32.mrf.mxu0
        %v1218 = vadd.f32 %v998, %v1217
        %1219 = vmatprep.mubr.bf16.mxu0 0
        %1220 = vmatmul.mubr.bf16.gmra.mxu0 %v1066
        %v1221 = vpop.f32.mrf.mxu0
        %v1222 = vadd.f32 %v994, %v1221
        %v1223 = vpop.f32.mrf.mxu0
        %v1224 = vadd.f32 %v998, %v1223
        %v1225 = vpop.f32.mrf.mxu0
        %v1226 = vadd.f32 %v994, %v1225
        %v1227 = vpop.f32.mrf.mxu0
        %v1228 = vadd.f32 %v998, %v1227
        %1229 = vmatprep.mubr.bf16.mxu0 0
        %1230 = vmatmul.mubr.bf16.gmra.mxu0 %v1067
        %v1231 = vpop.f32.mrf.mxu0
        %v1232 = vadd.f32 %v994, %v1231
        %v1233 = vpop.f32.mrf.mxu0
        %v1234 = vadd.f32 %v998, %v1233
        %v1235 = vpop.f32.mrf.mxu0
        %v1236 = vadd.f32 %v994, %v1235
        %v1237 = vpop.f32.mrf.mxu0
        %v1238 = vadd.f32 %v998, %v1237
        %1239 = vmatprep.mubr.bf16.mxu0 0
        %1240 = vmatmul.mubr.bf16.gmra.mxu0 %v1068
        %v1241 = vpop.f32.mrf.mxu0
        %v1242 = vadd.f32 %v994, %v1241
        %v1243 = vpop.f32.mrf.mxu0
        %v1244 = vadd.f32 %v998, %v1243
        %v1245 = vpop.f32.mrf.mxu0
        %v1246 = vadd.f32 %v994, %v1245
        %v1247 = vpop.f32.mrf.mxu0
        %v1248 = vadd.f32 %v998, %v1247
        %1249 = vmatprep.mubr.bf16.mxu0 0
        %1250 = vmatmul.mubr.bf16.gmra.mxu0 %v1069
        %v1251 = vpop.f32.mrf.mxu0
        %v1252 = vadd.f32 %v994, %v1251
        %v1253 = vpop.f32.mrf.mxu0
        %v1254 = vadd.f32 %v998, %v1253
        %v1255 = vpop.f32.mrf.mxu0
        %v1256 = vadd.f32 %v994, %v1255
        %v1257 = vpop.f32.mrf.mxu0
        %v1258 = vadd.f32 %v998, %v1257
        %1259 = vmatprep.mubr.bf16.mxu0 0
        %1260 = vmatmul.mubr.bf16.gmra.mxu0 %v1070
        %v1261 = vpop.f32.mrf.mxu0
        %v1262 = vadd.f32 %v994, %v1261
        %v1263 = vpop.f32.mrf.mxu0
        %v1264 = vadd.f32 %v998, %v1263
        %v1265 = vpop.f32.mrf.mxu0
        %v1266 = vadd.f32 %v994, %v1265
        %v1267 = vpop.f32.mrf.mxu0
        %v1268 = vadd.f32 %v998, %v1267
        %1269 = vmatprep.mubr.bf16.mxu0 0
        %1270 = vmatmul.mubr.bf16.gmra.mxu0 %v1071
        %v1271 = vpop.f32.mrf.mxu0
        %v1272 = vadd.f32 %v994, %v1271
        %v1273 = vpop.f32.mrf.mxu0
        %v1274 = vadd.f32 %v998, %v1273
        %v1275 = vpop.f32.mrf.mxu0
        %v1276 = vadd.f32 %v994, %v1275
        %v1277 = vpop.f32.mrf.mxu0
        %v1278 = vadd.f32 %v998, %v1277
        %1279 = vmatprep.mubr.bf16.mxu0 0
        %1280 = vmatmul.mubr.bf16.gmra.mxu0 %v1072
        %v1281 = vpop.f32.mrf.mxu0
        %v1282 = vadd.f32 %v994, %v1281
        %v1283 = vpop.f32.mrf.mxu0
        %v1284 = vadd.f32 %v998, %v1283
        %v1285 = vpop.f32.mrf.mxu0
        %v1286 = vadd.f32 %v994, %v1285
        %v1287 = vpop.f32.mrf.mxu0
        %v1288 = vadd.f32 %v998, %v1287
        %1289 = vmatprep.mubr.bf16.mxu0 0
        %1290 = vmatmul.mubr.bf16.gmra.mxu0 %v1073
        %v1291 = vpop.f32.mrf.mxu0
        %v1292 = vadd.f32 %v994, %v1291
        %v1293 = vpop.f32.mrf.mxu0
        %v1294 = vadd.f32 %v998, %v1293
        %v1295 = vpop.f32.mrf.mxu0
        %v1296 = vadd.f32 %v994, %v1295
        %v1297 = vpop.f32.mrf.mxu0
        %v1298 = vadd.f32 %v998, %v1297
        %1299 = vmatprep.mubr.bf16.mxu0 0
        %1300 = vmatmul.mubr.bf16.gmra.mxu0 %v1074
        %v1301 = vpop.f32.mrf.mxu0
        %v1302 = vadd.f32 %v994, %v1301
        %v1303 = vpop.f32.mrf.mxu0
        %v1304 = vadd.f32 %v998, %v1303
        %v1305 = vpop.f32.mrf.mxu0
        %v1306 = vadd.f32 %v994, %v1305
        %v1307 = vpop.f32.mrf.mxu0
        %v1308 = vadd.f32 %v998, %v1307
        %1309 = vmatprep.mubr.bf16.mxu0 0
        %1310 = vmatmul.mubr.bf16.gmra.mxu0 %v1075
        %v1311 = vpop.f32.mrf.mxu0
        %v1312 = vadd.f32 %v994, %v1311
        %v1313 = vpop.f32.mrf.mxu0
        %v1314 = vadd.f32 %v998, %v1313
        %v1315 = vpop.f32.mrf.mxu0
        %v1316 = vadd.f32 %v994, %v1315
        %v1317 = vpop.f32.mrf.mxu0
        %v1318 = vadd.f32 %v998, %v1317
        %1319 = vmatprep.mubr.bf16.mxu0 0
        %1320 = vmatmul.mubr.bf16.gmra.mxu0 %v1076
        %v1321 = vpop.f32.mrf.mxu0
        %v1322 = vadd.f32 %v994, %v1321
        %v1323 = vpop.f32.mrf.mxu0
        %v1324 = vadd.f32 %v998, %v1323
        %v1325 = vpop.f32.mrf.mxu0
        %v1326 = vadd.f32 %v994, %v1325
        %v1327 = vpop.f32.mrf.mxu0
        %v1328 = vadd.f32 %v998, %v1327
        %1329 = vmatprep.mubr.bf16.mxu0 0
        %1330 = vmatmul.mubr.bf16.gmra.mxu0 %v1077
        %v1331 = vpop.f32.mrf.mxu0
        %v1332 = vadd.f32 %v994, %v1331
        %v1333 = vpop.f32.mrf.mxu0
        %v1334 = vadd.f32 %v998, %v1333
        %v1335 = vpop.f32.mrf.mxu0
        %v1336 = vadd.f32 %v994, %v1335
        %v1337 = vpop.f32.mrf.mxu0
        %v1338 = vadd.f32 %v998, %v1337
        %1339 = vmatprep.mubr.bf16.mxu0 0
        %1340 = vmatmul.mubr.bf16.gmra.mxu0 %v1078
        %v1341 = vpop.f32.mrf.mxu0
        %v1342 = vadd.f32 %v994, %v1341
        %v1343 = vpop.f32.mrf.mxu0
        %v1344 = vadd.f32 %v998, %v1343
        %v1345 = vpop.f32.mrf.mxu0
        %v1346 = vadd.f32 %v994, %v1345
        %v1347 = vpop.f32.mrf.mxu0
        %v1348 = vadd.f32 %v998, %v1347
        %1349 = vmatprep.mubr.bf16.mxu0 0
        %1350 = vmatmul.mubr.bf16.gmra.mxu0 %v1079
        %v1351 = vpop.f32.mrf.mxu0
        %v1352 = vadd.f32 %v994, %v1351
        %v1353 = vpop.f32.mrf.mxu0
        %v1354 = vadd.f32 %v998, %v1353
        %v1355 = vpop.f32.mrf.mxu0
        %v1356 = vadd.f32 %v994, %v1355
        %v1357 = vpop.f32.mrf.mxu0
        %v1358 = vadd.f32 %v998, %v1357
        %1359 = vmatprep.mubr.bf16.mxu0 0
        %1360 = vmatmul.mubr.bf16.gmra.mxu0 %v1080
        %v1361 = vpop.f32.mrf.mxu0
        %v1362 = vadd.f32 %v994, %v1361
        %v1363 = vpop.f32.mrf.mxu0
        %v1364 = vadd.f32 %v998, %v1363
        %v1365 = vpop.f32.mrf.mxu0
        %v1366 = vadd.f32 %v994, %v1365
        %v1367 = vpop.f32.mrf.mxu0
        %v1368 = vadd.f32 %v998, %v1367
        %1369 = vdwg.mxu0
        %v1370 = vld [vmem:[#allocation2] sm:$0xf]
        %v1371 = vld [vmem:[#allocation2 + $0x4] sm:$0xf]
        %v1372 = vld [vmem:[#allocation2 + $0x8] sm:$0xf]
        %v1373 = vld [vmem:[#allocation2 + $0xc] sm:$0xf]
        %v1374 = vld [vmem:[#allocation2 + $0x10] sm:$0xf]
        %v1375 = vld [vmem:[#allocation2 + $0x14] sm:$0xf]
        %v1376 = vld [vmem:[#allocation2 + $0x18] sm:$0xf]
        %v1377 = vld [vmem:[#allocation2 + $0x1c] sm:$0xf]
        %v1378 = vld [vmem:[#allocation2 + $0x20] sm:$0xf]
        %v1379 = vld [vmem:[#allocation2 + $0x24] sm:$0xf]
        %v1380 = vld [vmem:[#allocation2 + $0x28] sm:$0xf]
        %v1381 = vld [vmem:[#allocation2 + $0x2c] sm:$0xf]
        %v1382 = vld [vmem:[#allocation2 + $0x30] sm:$0xf]
        %v1383 = vld [vmem:[#allocation2 + $0x34] sm:$0xf]
        %v1384 = vld [vmem:[#allocation2 + $0x38] sm:$0xf]
        %v1385 = vld [vmem:[#allocation2 + $0x3c] sm:$0xf]
        %v1386 = vld [vmem:[#allocation2 + $0x40] sm:$0xf]
        %v1387 = vld [vmem:[#allocation2 + $0x44] sm:$0xf]
        %v1388 = vld [vmem:[#allocation2 + $0x48] sm:$0xf]
        %v1389 = vld [vmem:[#allocation2 + $0x4c] sm:$0xf]
        %v1390 = vld [vmem:[#allocation2 + $0x50] sm:$0xf]
        %v1391 = vld [vmem:[#allocation2 + $0x54] sm:$0xf]
        %v1392 = vld [vmem:[#allocation2 + $0x58] sm:$0xf]
        %v1393 = vld [vmem:[#allocation2 + $0x5c] sm:$0xf]
        %v1394 = vld [vmem:[#allocation2 + $0x60] sm:$0xf]
        %v1395 = vld [vmem:[#allocation2 + $0x64] sm:$0xf]
        %v1396 = vld [vmem:[#allocation2 + $0x68] sm:$0xf]
        %v1397 = vld [vmem:[#allocation2 + $0x6c] sm:$0xf]
        %v1398 = vld [vmem:[#allocation2 + $0x70] sm:$0xf]
        %v1399 = vld [vmem:[#allocation2 + $0x74] sm:$0xf]
        %v1400 = vld [vmem:[#allocation2 + $0x78] sm:$0xf]
        %v1401 = vld [vmem:[#allocation2 + $0x7c] sm:$0xf]
        %v1402 = vpack.c.bf16 %v1216, %v1212
        %v1403 = vpack.c.bf16 %v1226, %v1222
        %v1404 = vpack.c.bf16 %v1236, %v1232
        %v1405 = vpack.c.bf16 %v1246, %v1242
        %v1406 = vpack.c.bf16 %v1256, %v1252
        %v1407 = vpack.c.bf16 %v1266, %v1262
        %v1408 = vpack.c.bf16 %v1276, %v1272
        %v1409 = vpack.c.bf16 %v1286, %v1282
        %v1410 = vpack.c.bf16 %v1296, %v1292
        %v1411 = vpack.c.bf16 %v1306, %v1302
        %v1412 = vpack.c.bf16 %v1316, %v1312
        %v1413 = vpack.c.bf16 %v1326, %v1322
        %v1414 = vpack.c.bf16 %v1336, %v1332
        %v1415 = vpack.c.bf16 %v1346, %v1342
        %v1416 = vpack.c.bf16 %v1356, %v1352
        %v1417 = vpack.c.bf16 %v1366, %v1362
        %v1450 = vunpack.c.l.b16 %v1370
        %v1451 = vunpack.c.l.b16 %v1371
        %v1452 = vunpack.c.l.b16 %v1372
        %v1453 = vunpack.c.l.b16 %v1373
        %v1454 = vunpack.c.l.b16 %v1374
        %v1455 = vunpack.c.l.b16 %v1375
        %v1456 = vunpack.c.l.b16 %v1376
        %v1457 = vunpack.c.l.b16 %v1377
        %v1458 = vunpack.c.l.b16 %v1378
        %v1459 = vunpack.c.l.b16 %v1379
        %v1460 = vunpack.c.l.b16 %v1380
        %v1461 = vunpack.c.l.b16 %v1381
        %v1462 = vunpack.c.l.b16 %v1382
        %v1463 = vunpack.c.l.b16 %v1383
        %v1464 = vunpack.c.l.b16 %v1384
        %v1465 = vunpack.c.l.b16 %v1385
        %v1466 = vunpack.c.l.b16 %v1386
        %v1467 = vunpack.c.l.b16 %v1387
        %v1468 = vunpack.c.l.b16 %v1388
        %v1469 = vunpack.c.l.b16 %v1389
        %v1470 = vunpack.c.l.b16 %v1390
        %v1471 = vunpack.c.l.b16 %v1391
        %v1472 = vunpack.c.l.b16 %v1392
        %v1473 = vunpack.c.l.b16 %v1393
        %v1474 = vunpack.c.l.b16 %v1394
        %v1475 = vunpack.c.l.b16 %v1395
        %v1476 = vunpack.c.l.b16 %v1396
        %v1477 = vunpack.c.l.b16 %v1397
        %v1478 = vunpack.c.l.b16 %v1398
        %v1479 = vunpack.c.l.b16 %v1399
        %v1480 = vunpack.c.l.b16 %v1400
        %v1481 = vunpack.c.l.b16 %v1401
        %v1482 = vpack.c.b16 %v1451, %v1450
        %v1483 = vpack.c.b16 %v1453, %v1452
        %v1484 = vpack.c.b16 %v1455, %v1454
        %v1485 = vpack.c.b16 %v1457, %v1456
        %v1486 = vpack.c.b16 %v1459, %v1458
        %v1487 = vpack.c.b16 %v1461, %v1460
        %v1488 = vpack.c.b16 %v1463, %v1462
        %v1489 = vpack.c.b16 %v1465, %v1464
        %v1490 = vpack.c.b16 %v1467, %v1466
        %v1491 = vpack.c.b16 %v1469, %v1468
        %v1492 = vpack.c.b16 %v1471, %v1470
        %v1493 = vpack.c.b16 %v1473, %v1472
        %v1494 = vpack.c.b16 %v1475, %v1474
        %v1495 = vpack.c.b16 %v1477, %v1476
        %v1496 = vpack.c.b16 %v1479, %v1478
        %v1497 = vpack.c.b16 %v1481, %v1480
        %1514 = vmatprep.subr.bf16.mxu0 0
        %1515 = vmatpush1.bf16.xpose.msra.mxu0 %v1409
        %1516 = vmatprep.subr.bf16.mxu0 0
        %1517 = vmatpush1.bf16.xpose.msra.mxu0 %v1408
        %1518 = vmatprep.subr.bf16.mxu0 0
        %1519 = vmatpush1.bf16.xpose.msra.mxu0 %v1407
        %1520 = vmatprep.subr.bf16.mxu0 0
        %1521 = vmatpush1.bf16.xpose.msra.mxu0 %v1406
        %1522 = vmatprep.subr.bf16.mxu0 0
        %1523 = vmatpush1.bf16.xpose.msra.mxu0 %v1405
        %1524 = vmatprep.subr.bf16.mxu0 0
        %1525 = vmatpush1.bf16.xpose.msra.mxu0 %v1404
        %1526 = vmatprep.subr.bf16.mxu0 0
        %1527 = vmatpush1.bf16.xpose.msra.mxu0 %v1403
        %1528 = vmatprep.subr.bf16.mxu0 0
        %1529 = vmatpush1.bf16.xpose.msra.mxu0 %v1402
        %1530 = vmatprep.subr.bf16.mxu0 0
        %1531 = vmatpush2.bf16.xpose.msra.mxu0 %v1417
        %1532 = vmatprep.subr.bf16.mxu0 0
        %1533 = vmatpush2.bf16.xpose.msra.mxu0 %v1416
        %1534 = vmatprep.subr.bf16.mxu0 0
        %1535 = vmatpush2.bf16.xpose.msra.mxu0 %v1415
        %1536 = vmatprep.subr.bf16.mxu0 0
        %1537 = vmatpush2.bf16.xpose.msra.mxu0 %v1414
        %1538 = vmatprep.subr.bf16.mxu0 0
        %1539 = vmatpush2.bf16.xpose.msra.mxu0 %v1413
        %1540 = vmatprep.subr.bf16.mxu0 0
        %1541 = vmatpush2.bf16.xpose.msra.mxu0 %v1412
        %1542 = vmatprep.subr.bf16.mxu0 0
        %1543 = vmatpush2.bf16.xpose.msra.mxu0 %v1411
        %1544 = vmatprep.subr.bf16.mxu0 0
        %1545 = vmatpush2.bf16.xpose.msra.mxu0 %v1410
        %1546 = vmatprep.mubr.bf16.mxu0 0
        %1547 = vmatmul.mubr.bf16.gmra.mxu0 %v1482
        %v1548 = vpop.f32.mrf.mxu0
        %v1549 = vadd.f32 0.0, %v1548
        %v1550 = vpop.f32.mrf.mxu0
        %v1551 = vadd.f32 0.0, %v1550
        %v1552 = vpop.f32.mrf.mxu0
        %v1553 = vadd.f32 0.0, %v1552
        %v1554 = vpop.f32.mrf.mxu0
        %v1555 = vadd.f32 0.0, %v1554
        %1556 = vmatprep.mubr.bf16.mxu0 0
        %1557 = vmatmul.mubr.bf16.gmra.mxu0 %v1483
        %v1558 = vpop.f32.mrf.mxu0
        %v1559 = vadd.f32 0.0, %v1558
        %v1560 = vpop.f32.mrf.mxu0
        %v1561 = vadd.f32 0.0, %v1560
        %v1562 = vpop.f32.mrf.mxu0
        %v1563 = vadd.f32 0.0, %v1562
        %v1564 = vpop.f32.mrf.mxu0
        %v1565 = vadd.f32 0.0, %v1564
        %1566 = vmatprep.mubr.bf16.mxu0 0
        %1567 = vmatmul.mubr.bf16.gmra.mxu0 %v1484
        %v1568 = vpop.f32.mrf.mxu0
        %v1569 = vadd.f32 0.0, %v1568
        %v1570 = vpop.f32.mrf.mxu0
        %v1571 = vadd.f32 0.0, %v1570
        %v1572 = vpop.f32.mrf.mxu0
        %v1573 = vadd.f32 0.0, %v1572
        %v1574 = vpop.f32.mrf.mxu0
        %v1575 = vadd.f32 0.0, %v1574
        %1576 = vmatprep.mubr.bf16.mxu0 0
        %1577 = vmatmul.mubr.bf16.gmra.mxu0 %v1485
        %v1578 = vpop.f32.mrf.mxu0
        %v1579 = vadd.f32 0.0, %v1578
        %v1580 = vpop.f32.mrf.mxu0
        %v1581 = vadd.f32 0.0, %v1580
        %v1582 = vpop.f32.mrf.mxu0
        %v1583 = vadd.f32 0.0, %v1582
        %v1584 = vpop.f32.mrf.mxu0
        %v1585 = vadd.f32 0.0, %v1584
        %1586 = vmatprep.mubr.bf16.mxu0 0
        %1587 = vmatmul.mubr.bf16.gmra.mxu0 %v1486
        %v1588 = vpop.f32.mrf.mxu0
        %v1589 = vadd.f32 0.0, %v1588
        %v1590 = vpop.f32.mrf.mxu0
        %v1591 = vadd.f32 0.0, %v1590
        %v1592 = vpop.f32.mrf.mxu0
        %v1593 = vadd.f32 0.0, %v1592
        %v1594 = vpop.f32.mrf.mxu0
        %v1595 = vadd.f32 0.0, %v1594
        %1596 = vmatprep.mubr.bf16.mxu0 0
        %1597 = vmatmul.mubr.bf16.gmra.mxu0 %v1487
        %v1598 = vpop.f32.mrf.mxu0
        %v1599 = vadd.f32 0.0, %v1598
        %v1600 = vpop.f32.mrf.mxu0
        %v1601 = vadd.f32 0.0, %v1600
        %v1602 = vpop.f32.mrf.mxu0
        %v1603 = vadd.f32 0.0, %v1602
        %v1604 = vpop.f32.mrf.mxu0
        %v1605 = vadd.f32 0.0, %v1604
        %1606 = vmatprep.mubr.bf16.mxu0 0
        %1607 = vmatmul.mubr.bf16.gmra.mxu0 %v1488
        %v1608 = vpop.f32.mrf.mxu0
        %v1609 = vadd.f32 0.0, %v1608
        %v1610 = vpop.f32.mrf.mxu0
        %v1611 = vadd.f32 0.0, %v1610
        %v1612 = vpop.f32.mrf.mxu0
        %v1613 = vadd.f32 0.0, %v1612
        %v1614 = vpop.f32.mrf.mxu0
        %v1615 = vadd.f32 0.0, %v1614
        %1616 = vmatprep.mubr.bf16.mxu0 0
        %1617 = vmatmul.mubr.bf16.gmra.mxu0 %v1489
        %v1618 = vpop.f32.mrf.mxu0
        %v1619 = vadd.f32 0.0, %v1618
        %v1620 = vpop.f32.mrf.mxu0
        %v1621 = vadd.f32 0.0, %v1620
        %v1622 = vpop.f32.mrf.mxu0
        %v1623 = vadd.f32 0.0, %v1622
        %v1624 = vpop.f32.mrf.mxu0
        %v1625 = vadd.f32 0.0, %v1624
        %1626 = vmatprep.mubr.bf16.mxu0 0
        %1627 = vmatmul.mubr.bf16.gmra.mxu0 %v1490
        %v1628 = vpop.f32.mrf.mxu0
        %v1629 = vadd.f32 0.0, %v1628
        %v1630 = vpop.f32.mrf.mxu0
        %v1631 = vadd.f32 0.0, %v1630
        %v1632 = vpop.f32.mrf.mxu0
        %v1633 = vadd.f32 0.0, %v1632
        %v1634 = vpop.f32.mrf.mxu0
        %v1635 = vadd.f32 0.0, %v1634
        %1636 = vmatprep.mubr.bf16.mxu0 0
        %1637 = vmatmul.mubr.bf16.gmra.mxu0 %v1491
        %v1638 = vpop.f32.mrf.mxu0
        %v1639 = vadd.f32 0.0, %v1638
        %v1640 = vpop.f32.mrf.mxu0
        %v1641 = vadd.f32 0.0, %v1640
        %v1642 = vpop.f32.mrf.mxu0
        %v1643 = vadd.f32 0.0, %v1642
        %v1644 = vpop.f32.mrf.mxu0
        %v1645 = vadd.f32 0.0, %v1644
        %1646 = vmatprep.mubr.bf16.mxu0 0
        %1647 = vmatmul.mubr.bf16.gmra.mxu0 %v1492
        %v1648 = vpop.f32.mrf.mxu0
        %v1649 = vadd.f32 0.0, %v1648
        %v1650 = vpop.f32.mrf.mxu0
        %v1651 = vadd.f32 0.0, %v1650
        %v1652 = vpop.f32.mrf.mxu0
        %v1653 = vadd.f32 0.0, %v1652
        %v1654 = vpop.f32.mrf.mxu0
        %v1655 = vadd.f32 0.0, %v1654
        %1656 = vmatprep.mubr.bf16.mxu0 0
        %1657 = vmatmul.mubr.bf16.gmra.mxu0 %v1493
        %v1658 = vpop.f32.mrf.mxu0
        %v1659 = vadd.f32 0.0, %v1658
        %v1660 = vpop.f32.mrf.mxu0
        %v1661 = vadd.f32 0.0, %v1660
        %v1662 = vpop.f32.mrf.mxu0
        %v1663 = vadd.f32 0.0, %v1662
        %v1664 = vpop.f32.mrf.mxu0
        %v1665 = vadd.f32 0.0, %v1664
        %1666 = vmatprep.mubr.bf16.mxu0 0
        %1667 = vmatmul.mubr.bf16.gmra.mxu0 %v1494
        %v1668 = vpop.f32.mrf.mxu0
        %v1669 = vadd.f32 0.0, %v1668
        %v1670 = vpop.f32.mrf.mxu0
        %v1671 = vadd.f32 0.0, %v1670
        %v1672 = vpop.f32.mrf.mxu0
        %v1673 = vadd.f32 0.0, %v1672
        %v1674 = vpop.f32.mrf.mxu0
        %v1675 = vadd.f32 0.0, %v1674
        %1676 = vmatprep.mubr.bf16.mxu0 0
        %1677 = vmatmul.mubr.bf16.gmra.mxu0 %v1495
        %v1678 = vpop.f32.mrf.mxu0
        %v1679 = vadd.f32 0.0, %v1678
        %v1680 = vpop.f32.mrf.mxu0
        %v1681 = vadd.f32 0.0, %v1680
        %v1682 = vpop.f32.mrf.mxu0
        %v1683 = vadd.f32 0.0, %v1682
        %v1684 = vpop.f32.mrf.mxu0
        %v1685 = vadd.f32 0.0, %v1684
        %1686 = vmatprep.mubr.bf16.mxu0 0
        %1687 = vmatmul.mubr.bf16.gmra.mxu0 %v1496
        %v1688 = vpop.f32.mrf.mxu0
        %v1689 = vadd.f32 0.0, %v1688
        %v1690 = vpop.f32.mrf.mxu0
        %v1691 = vadd.f32 0.0, %v1690
        %v1692 = vpop.f32.mrf.mxu0
        %v1693 = vadd.f32 0.0, %v1692
        %v1694 = vpop.f32.mrf.mxu0
        %v1695 = vadd.f32 0.0, %v1694
        %1696 = vmatprep.mubr.bf16.mxu0 0
        %1697 = vmatmul.mubr.bf16.gmra.mxu0 %v1497
        %v1698 = vpop.f32.mrf.mxu0
        %v1699 = vadd.f32 0.0, %v1698
        %v1700 = vpop.f32.mrf.mxu0
        %v1701 = vadd.f32 0.0, %v1700
        %v1702 = vpop.f32.mrf.mxu0
        %v1703 = vadd.f32 0.0, %v1702
        %v1704 = vpop.f32.mrf.mxu0
        %v1705 = vadd.f32 0.0, %v1704
        %1706 = vdwg.mxu0
        %v1707 = vld [vmem:[#allocation3] sm:$0xff]
        %v1708 = vld [vmem:[#allocation3 + $0x8] sm:$0xff]
        %v1709 = vld [vmem:[#allocation3 + $0x10] sm:$0xff]
        %v1710 = vld [vmem:[#allocation3 + $0x18] sm:$0xff]
        %v1711 = vld [vmem:[#allocation3 + $0x20] sm:$0xff]
        %v1712 = vld [vmem:[#allocation3 + $0x28] sm:$0xff]
        %v1713 = vld [vmem:[#allocation3 + $0x30] sm:$0xff]
        %v1714 = vld [vmem:[#allocation3 + $0x38] sm:$0xff]
        %v1715 = vld [vmem:[#allocation3 + $0x40] sm:$0xff]
        %v1716 = vld [vmem:[#allocation3 + $0x48] sm:$0xff]
        %v1717 = vld [vmem:[#allocation3 + $0x50] sm:$0xff]
        %v1718 = vld [vmem:[#allocation3 + $0x58] sm:$0xff]
        %v1719 = vld [vmem:[#allocation3 + $0x60] sm:$0xff]
        %v1720 = vld [vmem:[#allocation3 + $0x68] sm:$0xff]
        %v1721 = vld [vmem:[#allocation3 + $0x70] sm:$0xff]
        %v1722 = vld [vmem:[#allocation3 + $0x78] sm:$0xff]
        %v1723 = vld [vmem:[#allocation3 + $0x80] sm:$0xff]
        %v1724 = vld [vmem:[#allocation3 + $0x88] sm:$0xff]
        %v1725 = vld [vmem:[#allocation3 + $0x90] sm:$0xff]
        %v1726 = vld [vmem:[#allocation3 + $0x98] sm:$0xff]
        %v1727 = vld [vmem:[#allocation3 + $0xa0] sm:$0xff]
        %v1728 = vld [vmem:[#allocation3 + $0xa8] sm:$0xff]
        %v1729 = vld [vmem:[#allocation3 + $0xb0] sm:$0xff]
        %v1730 = vld [vmem:[#allocation3 + $0xb8] sm:$0xff]
        %v1731 = vld [vmem:[#allocation3 + $0xc0] sm:$0xff]
        %v1732 = vld [vmem:[#allocation3 + $0xc8] sm:$0xff]
        %v1733 = vld [vmem:[#allocation3 + $0xd0] sm:$0xff]
        %v1734 = vld [vmem:[#allocation3 + $0xd8] sm:$0xff]
        %v1735 = vld [vmem:[#allocation3 + $0xe0] sm:$0xff]
        %v1736 = vld [vmem:[#allocation3 + $0xe8] sm:$0xff]
        %v1737 = vld [vmem:[#allocation3 + $0xf0] sm:$0xff]
        %v1738 = vld [vmem:[#allocation3 + $0xf8] sm:$0xff]
        %v1739 = vmax.f32 %v1549, %v1551
        %1740 = vmax.xlane.f32.xlu0 %v1739
        %v1741 = vpop.xlane.xlu0 %1740
        %v1742 = vmax.f32 %v1553, %v1555
        %1743 = vmax.xlane.f32.xlu0 %v1742
        %v1744 = vpop.xlane.xlu0 %1743
        %v1745 = vmax.f32 %v1559, %v1561
        %1746 = vmax.xlane.f32.xlu0 %v1745
        %v1747 = vpop.xlane.xlu0 %1746
        %v1748 = vmax.f32 %v1563, %v1565
        %1749 = vmax.xlane.f32.xlu0 %v1748
        %v1750 = vpop.xlane.xlu0 %1749
        %v1751 = vmax.f32 %v1569, %v1571
        %1752 = vmax.xlane.f32.xlu0 %v1751
        %v1753 = vpop.xlane.xlu0 %1752
        %v1754 = vmax.f32 %v1573, %v1575
        %1755 = vmax.xlane.f32.xlu0 %v1754
        %v1756 = vpop.xlane.xlu0 %1755
        %v1757 = vmax.f32 %v1579, %v1581
        %1758 = vmax.xlane.f32.xlu0 %v1757
        %v1759 = vpop.xlane.xlu0 %1758
        %v1760 = vmax.f32 %v1583, %v1585
        %1761 = vmax.xlane.f32.xlu0 %v1760
        %v1762 = vpop.xlane.xlu0 %1761
        %v1763 = vmax.f32 %v1589, %v1591
        %1764 = vmax.xlane.f32.xlu0 %v1763
        %v1765 = vpop.xlane.xlu0 %1764
        %v1766 = vmax.f32 %v1593, %v1595
        %1767 = vmax.xlane.f32.xlu0 %v1766
        %v1768 = vpop.xlane.xlu0 %1767
        %v1769 = vmax.f32 %v1599, %v1601
        %1770 = vmax.xlane.f32.xlu0 %v1769
        %v1771 = vpop.xlane.xlu0 %1770
        %v1772 = vmax.f32 %v1603, %v1605
        %1773 = vmax.xlane.f32.xlu0 %v1772
        %v1774 = vpop.xlane.xlu0 %1773
        %v1775 = vmax.f32 %v1609, %v1611
        %1776 = vmax.xlane.f32.xlu0 %v1775
        %v1777 = vpop.xlane.xlu0 %1776
        %v1778 = vmax.f32 %v1613, %v1615
        %1779 = vmax.xlane.f32.xlu0 %v1778
        %v1780 = vpop.xlane.xlu0 %1779
        %v1781 = vmax.f32 %v1619, %v1621
        %1782 = vmax.xlane.f32.xlu0 %v1781
        %v1783 = vpop.xlane.xlu0 %1782
        %v1784 = vmax.f32 %v1623, %v1625
        %1785 = vmax.xlane.f32.xlu0 %v1784
        %v1786 = vpop.xlane.xlu0 %1785
        %v1787 = vmax.f32 %v1629, %v1631
        %1788 = vmax.xlane.f32.xlu0 %v1787
        %v1789 = vpop.xlane.xlu0 %1788
        %v1790 = vmax.f32 %v1633, %v1635
        %1791 = vmax.xlane.f32.xlu0 %v1790
        %v1792 = vpop.xlane.xlu0 %1791
        %v1793 = vmax.f32 %v1639, %v1641
        %1794 = vmax.xlane.f32.xlu0 %v1793
        %v1795 = vpop.xlane.xlu0 %1794
        %v1796 = vmax.f32 %v1643, %v1645
        %1797 = vmax.xlane.f32.xlu0 %v1796
        %v1798 = vpop.xlane.xlu0 %1797
        %v1799 = vmax.f32 %v1649, %v1651
        %1800 = vmax.xlane.f32.xlu0 %v1799
        %v1801 = vpop.xlane.xlu0 %1800
        %v1802 = vmax.f32 %v1653, %v1655
        %1803 = vmax.xlane.f32.xlu0 %v1802
        %v1804 = vpop.xlane.xlu0 %1803
        %v1805 = vmax.f32 %v1659, %v1661
        %1806 = vmax.xlane.f32.xlu0 %v1805
        %v1807 = vpop.xlane.xlu0 %1806
        %v1808 = vmax.f32 %v1663, %v1665
        %1809 = vmax.xlane.f32.xlu0 %v1808
        %v1810 = vpop.xlane.xlu0 %1809
        %v1811 = vmax.f32 %v1669, %v1671
        %1812 = vmax.xlane.f32.xlu0 %v1811
        %v1813 = vpop.xlane.xlu0 %1812
        %v1814 = vmax.f32 %v1673, %v1675
        %1815 = vmax.xlane.f32.xlu0 %v1814
        %v1816 = vpop.xlane.xlu0 %1815
        %v1817 = vmax.f32 %v1679, %v1681
        %1818 = vmax.xlane.f32.xlu0 %v1817
        %v1819 = vpop.xlane.xlu0 %1818
        %v1820 = vmax.f32 %v1683, %v1685
        %1821 = vmax.xlane.f32.xlu0 %v1820
        %v1822 = vpop.xlane.xlu0 %1821
        %v1823 = vmax.f32 %v1689, %v1691
        %1824 = vmax.xlane.f32.xlu0 %v1823
        %v1825 = vpop.xlane.xlu0 %1824
        %v1826 = vmax.f32 %v1693, %v1695
        %1827 = vmax.xlane.f32.xlu0 %v1826
        %v1828 = vpop.xlane.xlu0 %1827
        %v1829 = vmax.f32 %v1699, %v1701
        %1830 = vmax.xlane.f32.xlu0 %v1829
        %v1831 = vpop.xlane.xlu0 %1830
        %v1832 = vmax.f32 %v1703, %v1705
        %1833 = vmax.xlane.f32.xlu0 %v1832
        %v1834 = vpop.xlane.xlu0 %1833
        %v1835 = vmax.f32 %v1707, %v1741
        %v1836 = vmax.f32 %v1708, %v1744
        %v1837 = vmax.f32 %v1709, %v1747
        %v1838 = vmax.f32 %v1710, %v1750
        %v1839 = vmax.f32 %v1711, %v1753
        %v1840 = vmax.f32 %v1712, %v1756
        %v1841 = vmax.f32 %v1713, %v1759
        %v1842 = vmax.f32 %v1714, %v1762
        %v1843 = vmax.f32 %v1715, %v1765
        %v1844 = vmax.f32 %v1716, %v1768
        %v1845 = vmax.f32 %v1717, %v1771
        %v1846 = vmax.f32 %v1718, %v1774
        %v1847 = vmax.f32 %v1719, %v1777
        %v1848 = vmax.f32 %v1720, %v1780
        %v1849 = vmax.f32 %v1721, %v1783
        %v1850 = vmax.f32 %v1722, %v1786
        %v1851 = vmax.f32 %v1723, %v1789
        %v1852 = vmax.f32 %v1724, %v1792
        %v1853 = vmax.f32 %v1725, %v1795
        %v1854 = vmax.f32 %v1726, %v1798
        %v1855 = vmax.f32 %v1727, %v1801
        %v1856 = vmax.f32 %v1728, %v1804
        %v1857 = vmax.f32 %v1729, %v1807
        %v1858 = vmax.f32 %v1730, %v1810
        %v1859 = vmax.f32 %v1731, %v1813
        %v1860 = vmax.f32 %v1732, %v1816
        %v1861 = vmax.f32 %v1733, %v1819
        %v1862 = vmax.f32 %v1734, %v1822
        %v1863 = vmax.f32 %v1735, %v1825
        %v1864 = vmax.f32 %v1736, %v1828
        %v1865 = vmax.f32 %v1737, %v1831
        %v1866 = vmax.f32 %v1738, %v1834
        %v1867 = vsub.f32 %v1707, %v1835
        %v1868 = vsub.f32 %v1708, %v1836
        %v1869 = vsub.f32 %v1709, %v1837
        %v1870 = vsub.f32 %v1710, %v1838
        %v1871 = vsub.f32 %v1711, %v1839
        %v1872 = vsub.f32 %v1712, %v1840
        %v1873 = vsub.f32 %v1713, %v1841
        %v1874 = vsub.f32 %v1714, %v1842
        %v1875 = vsub.f32 %v1715, %v1843
        %v1876 = vsub.f32 %v1716, %v1844
        %v1877 = vsub.f32 %v1717, %v1845
        %v1878 = vsub.f32 %v1718, %v1846
        %v1879 = vsub.f32 %v1719, %v1847
        %v1880 = vsub.f32 %v1720, %v1848
        %v1881 = vsub.f32 %v1721, %v1849
        %v1882 = vsub.f32 %v1722, %v1850
        %v1883 = vsub.f32 %v1723, %v1851
        %v1884 = vsub.f32 %v1724, %v1852
        %v1885 = vsub.f32 %v1725, %v1853
        %v1886 = vsub.f32 %v1726, %v1854
        %v1887 = vsub.f32 %v1727, %v1855
        %v1888 = vsub.f32 %v1728, %v1856
        %v1889 = vsub.f32 %v1729, %v1857
        %v1890 = vsub.f32 %v1730, %v1858
        %v1891 = vsub.f32 %v1731, %v1859
        %v1892 = vsub.f32 %v1732, %v1860
        %v1893 = vsub.f32 %v1733, %v1861
        %v1894 = vsub.f32 %v1734, %v1862
        %v1895 = vsub.f32 %v1735, %v1863
        %v1896 = vsub.f32 %v1736, %v1864
        %v1897 = vsub.f32 %v1737, %v1865
        %v1898 = vsub.f32 %v1738, %v1866
        %v1899 = vmul.f32 %v1867, 1.442695
        %v1900 = vpow.pop %v1899
        %v1901 = vmul.f32 %v1868, 1.442695
        %v1902 = vpow.pop %v1901
        %v1903 = vmul.f32 %v1869, 1.442695
        %v1904 = vpow.pop %v1903
        %v1905 = vmul.f32 %v1870, 1.442695
        %v1906 = vpow.pop %v1905
        %v1907 = vmul.f32 %v1871, 1.442695
        %v1908 = vpow.pop %v1907
        %v1909 = vmul.f32 %v1872, 1.442695
        %v1910 = vpow.pop %v1909
        %v1911 = vmul.f32 %v1873, 1.442695
        %v1912 = vpow.pop %v1911
        %v1913 = vmul.f32 %v1874, 1.442695
        %v1914 = vpow.pop %v1913
        %v1915 = vmul.f32 %v1875, 1.442695
        %v1916 = vpow.pop %v1915
        %v1917 = vmul.f32 %v1876, 1.442695
        %v1918 = vpow.pop %v1917
        %v1919 = vmul.f32 %v1877, 1.442695
        %v1920 = vpow.pop %v1919
        %v1921 = vmul.f32 %v1878, 1.442695
        %v1922 = vpow.pop %v1921
        %v1923 = vmul.f32 %v1879, 1.442695
        %v1924 = vpow.pop %v1923
        %v1925 = vmul.f32 %v1880, 1.442695
        %v1926 = vpow.pop %v1925
        %v1927 = vmul.f32 %v1881, 1.442695
        %v1928 = vpow.pop %v1927
        %v1929 = vmul.f32 %v1882, 1.442695
        %v1930 = vpow.pop %v1929
        %v1931 = vmul.f32 %v1883, 1.442695
        %v1932 = vpow.pop %v1931
        %v1933 = vmul.f32 %v1884, 1.442695
        %v1934 = vpow.pop %v1933
        %v1935 = vmul.f32 %v1885, 1.442695
        %v1936 = vpow.pop %v1935
        %v1937 = vmul.f32 %v1886, 1.442695
        %v1938 = vpow.pop %v1937
        %v1939 = vmul.f32 %v1887, 1.442695
        %v1940 = vpow.pop %v1939
        %v1941 = vmul.f32 %v1888, 1.442695
        %v1942 = vpow.pop %v1941
        %v1943 = vmul.f32 %v1889, 1.442695
        %v1944 = vpow.pop %v1943
        %v1945 = vmul.f32 %v1890, 1.442695
        %v1946 = vpow.pop %v1945
        %v1947 = vmul.f32 %v1891, 1.442695
        %v1948 = vpow.pop %v1947
        %v1949 = vmul.f32 %v1892, 1.442695
        %v1950 = vpow.pop %v1949
        %v1951 = vmul.f32 %v1893, 1.442695
        %v1952 = vpow.pop %v1951
        %v1953 = vmul.f32 %v1894, 1.442695
        %v1954 = vpow.pop %v1953
        %v1955 = vmul.f32 %v1895, 1.442695
        %v1956 = vpow.pop %v1955
        %v1957 = vmul.f32 %v1896, 1.442695
        %v1958 = vpow.pop %v1957
        %v1959 = vmul.f32 %v1897, 1.442695
        %v1960 = vpow.pop %v1959
        %v1961 = vmul.f32 %v1898, 1.442695
        %v1962 = vpow.pop %v1961
        %1964 = vset.pattern.permute.xlu0 0
        %1965 = vperm.xlu0 %1964, %v1835
        %v1966 = vpop.permute.xlu0 %1965
        %1969 = vset.pattern.permute.xlu0 0
        %1970 = vperm.xlu0 %1969, %v1836
        %v1971 = vpop.permute.xlu0 %1970
        %1974 = vset.pattern.permute.xlu0 0
        %1975 = vperm.xlu0 %1974, %v1837
        %v1976 = vpop.permute.xlu0 %1975
        %1979 = vset.pattern.permute.xlu0 0
        %1980 = vperm.xlu0 %1979, %v1838
        %v1981 = vpop.permute.xlu0 %1980
        %1984 = vset.pattern.permute.xlu0 0
        %1985 = vperm.xlu0 %1984, %v1839
        %v1986 = vpop.permute.xlu0 %1985
        %1989 = vset.pattern.permute.xlu0 0
        %1990 = vperm.xlu0 %1989, %v1840
        %v1991 = vpop.permute.xlu0 %1990
        %1994 = vset.pattern.permute.xlu0 0
        %1995 = vperm.xlu0 %1994, %v1841
        %v1996 = vpop.permute.xlu0 %1995
        %1999 = vset.pattern.permute.xlu0 0
        %2000 = vperm.xlu0 %1999, %v1842
        %v2001 = vpop.permute.xlu0 %2000
        %2004 = vset.pattern.permute.xlu0 0
        %2005 = vperm.xlu0 %2004, %v1843
        %v2006 = vpop.permute.xlu0 %2005
        %2009 = vset.pattern.permute.xlu0 0
        %2010 = vperm.xlu0 %2009, %v1844
        %v2011 = vpop.permute.xlu0 %2010
        %2014 = vset.pattern.permute.xlu0 0
        %2015 = vperm.xlu0 %2014, %v1845
        %v2016 = vpop.permute.xlu0 %2015
        %2019 = vset.pattern.permute.xlu0 0
        %2020 = vperm.xlu0 %2019, %v1846
        %v2021 = vpop.permute.xlu0 %2020
        %2024 = vset.pattern.permute.xlu0 0
        %2025 = vperm.xlu0 %2024, %v1847
        %v2026 = vpop.permute.xlu0 %2025
        %2029 = vset.pattern.permute.xlu0 0
        %2030 = vperm.xlu0 %2029, %v1848
        %v2031 = vpop.permute.xlu0 %2030
        %2034 = vset.pattern.permute.xlu0 0
        %2035 = vperm.xlu0 %2034, %v1849
        %v2036 = vpop.permute.xlu0 %2035
        %2039 = vset.pattern.permute.xlu0 0
        %2040 = vperm.xlu0 %2039, %v1850
        %v2041 = vpop.permute.xlu0 %2040
        %2044 = vset.pattern.permute.xlu0 0
        %2045 = vperm.xlu0 %2044, %v1851
        %v2046 = vpop.permute.xlu0 %2045
        %2049 = vset.pattern.permute.xlu0 0
        %2050 = vperm.xlu0 %2049, %v1852
        %v2051 = vpop.permute.xlu0 %2050
        %2054 = vset.pattern.permute.xlu0 0
        %2055 = vperm.xlu0 %2054, %v1853
        %v2056 = vpop.permute.xlu0 %2055
        %2059 = vset.pattern.permute.xlu0 0
        %2060 = vperm.xlu0 %2059, %v1854
        %v2061 = vpop.permute.xlu0 %2060
        %2064 = vset.pattern.permute.xlu0 0
        %2065 = vperm.xlu0 %2064, %v1855
        %v2066 = vpop.permute.xlu0 %2065
        %2069 = vset.pattern.permute.xlu0 0
        %2070 = vperm.xlu0 %2069, %v1856
        %v2071 = vpop.permute.xlu0 %2070
        %2074 = vset.pattern.permute.xlu0 0
        %2075 = vperm.xlu0 %2074, %v1857
        %v2076 = vpop.permute.xlu0 %2075
        %2079 = vset.pattern.permute.xlu0 0
        %2080 = vperm.xlu0 %2079, %v1858
        %v2081 = vpop.permute.xlu0 %2080
        %2084 = vset.pattern.permute.xlu0 0
        %2085 = vperm.xlu0 %2084, %v1859
        %v2086 = vpop.permute.xlu0 %2085
        %2089 = vset.pattern.permute.xlu0 0
        %2090 = vperm.xlu0 %2089, %v1860
        %v2091 = vpop.permute.xlu0 %2090
        %2094 = vset.pattern.permute.xlu0 0
        %2095 = vperm.xlu0 %2094, %v1861
        %v2096 = vpop.permute.xlu0 %2095
        %2099 = vset.pattern.permute.xlu0 0
        %2100 = vperm.xlu0 %2099, %v1862
        %v2101 = vpop.permute.xlu0 %2100
        %2104 = vset.pattern.permute.xlu0 0
        %2105 = vperm.xlu0 %2104, %v1863
        %v2106 = vpop.permute.xlu0 %2105
        %2109 = vset.pattern.permute.xlu0 0
        %2110 = vperm.xlu0 %2109, %v1864
        %v2111 = vpop.permute.xlu0 %2110
        %2114 = vset.pattern.permute.xlu0 0
        %2115 = vperm.xlu0 %2114, %v1865
        %v2116 = vpop.permute.xlu0 %2115
        %2119 = vset.pattern.permute.xlu0 0
        %2120 = vperm.xlu0 %2119, %v1866
        %v2121 = vpop.permute.xlu0 %2120
        %v2123 = vsub.f32 %v1549, %v1966
        %v2124 = vsub.f32 %v1551, %v1966
        %v2125 = vsub.f32 %v1553, %v1971
        %v2126 = vsub.f32 %v1555, %v1971
        %v2127 = vsub.f32 %v1559, %v1976
        %v2128 = vsub.f32 %v1561, %v1976
        %v2129 = vsub.f32 %v1563, %v1981
        %v2130 = vsub.f32 %v1565, %v1981
        %v2131 = vsub.f32 %v1569, %v1986
        %v2132 = vsub.f32 %v1571, %v1986
        %v2133 = vsub.f32 %v1573, %v1991
        %v2134 = vsub.f32 %v1575, %v1991
        %v2135 = vsub.f32 %v1579, %v1996
        %v2136 = vsub.f32 %v1581, %v1996
        %v2137 = vsub.f32 %v1583, %v2001
        %v2138 = vsub.f32 %v1585, %v2001
        %v2139 = vsub.f32 %v1589, %v2006
        %v2140 = vsub.f32 %v1591, %v2006
        %v2141 = vsub.f32 %v1593, %v2011
        %v2142 = vsub.f32 %v1595, %v2011
        %v2143 = vsub.f32 %v1599, %v2016
        %v2144 = vsub.f32 %v1601, %v2016
        %v2145 = vsub.f32 %v1603, %v2021
        %v2146 = vsub.f32 %v1605, %v2021
        %v2147 = vsub.f32 %v1609, %v2026
        %v2148 = vsub.f32 %v1611, %v2026
        %v2149 = vsub.f32 %v1613, %v2031
        %v2150 = vsub.f32 %v1615, %v2031
        %v2151 = vsub.f32 %v1619, %v2036
        %v2152 = vsub.f32 %v1621, %v2036
        %v2153 = vsub.f32 %v1623, %v2041
        %v2154 = vsub.f32 %v1625, %v2041
        %v2155 = vsub.f32 %v1629, %v2046
        %v2156 = vsub.f32 %v1631, %v2046
        %v2157 = vsub.f32 %v1633, %v2051
        %v2158 = vsub.f32 %v1635, %v2051
        %v2159 = vsub.f32 %v1639, %v2056
        %v2160 = vsub.f32 %v1641, %v2056
        %v2161 = vsub.f32 %v1643, %v2061
        %v2162 = vsub.f32 %v1645, %v2061
        %v2163 = vsub.f32 %v1649, %v2066
        %v2164 = vsub.f32 %v1651, %v2066
        %v2165 = vsub.f32 %v1653, %v2071
        %v2166 = vsub.f32 %v1655, %v2071
        %v2167 = vsub.f32 %v1659, %v2076
        %v2168 = vsub.f32 %v1661, %v2076
        %v2169 = vsub.f32 %v1663, %v2081
        %v2170 = vsub.f32 %v1665, %v2081
        %v2171 = vsub.f32 %v1669, %v2086
        %v2172 = vsub.f32 %v1671, %v2086
        %v2173 = vsub.f32 %v1673, %v2091
        %v2174 = vsub.f32 %v1675, %v2091
        %v2175 = vsub.f32 %v1679, %v2096
        %v2176 = vsub.f32 %v1681, %v2096
        %v2177 = vsub.f32 %v1683, %v2101
        %v2178 = vsub.f32 %v1685, %v2101
        %v2179 = vsub.f32 %v1689, %v2106
        %v2180 = vsub.f32 %v1691, %v2106
        %v2181 = vsub.f32 %v1693, %v2111
        %v2182 = vsub.f32 %v1695, %v2111
        %v2183 = vsub.f32 %v1699, %v2116
        %v2184 = vsub.f32 %v1701, %v2116
        %v2185 = vsub.f32 %v1703, %v2121
        %v2186 = vsub.f32 %v1705, %v2121
        %v2187 = vmul.f32 %v2123, 1.442695
        %v2188 = vpow.pop %v2187
        %v2189 = vmul.f32 %v2124, 1.442695
        %v2190 = vpow.pop %v2189
        %v2191 = vmul.f32 %v2125, 1.442695
        %v2192 = vpow.pop %v2191
        %v2193 = vmul.f32 %v2126, 1.442695
        %v2194 = vpow.pop %v2193
        %v2195 = vmul.f32 %v2127, 1.442695
        %v2196 = vpow.pop %v2195
        %v2197 = vmul.f32 %v2128, 1.442695
        %v2198 = vpow.pop %v2197
        %v2199 = vmul.f32 %v2129, 1.442695
        %v2200 = vpow.pop %v2199
        %v2201 = vmul.f32 %v2130, 1.442695
        %v2202 = vpow.pop %v2201
        %v2203 = vmul.f32 %v2131, 1.442695
        %v2204 = vpow.pop %v2203
        %v2205 = vmul.f32 %v2132, 1.442695
        %v2206 = vpow.pop %v2205
        %v2207 = vmul.f32 %v2133, 1.442695
        %v2208 = vpow.pop %v2207
        %v2209 = vmul.f32 %v2134, 1.442695
        %v2210 = vpow.pop %v2209
        %v2211 = vmul.f32 %v2135, 1.442695
        %v2212 = vpow.pop %v2211
        %v2213 = vmul.f32 %v2136, 1.442695
        %v2214 = vpow.pop %v2213
        %v2215 = vmul.f32 %v2137, 1.442695
        %v2216 = vpow.pop %v2215
        %v2217 = vmul.f32 %v2138, 1.442695
        %v2218 = vpow.pop %v2217
        %v2219 = vmul.f32 %v2139, 1.442695
        %v2220 = vpow.pop %v2219
        %v2221 = vmul.f32 %v2140, 1.442695
        %v2222 = vpow.pop %v2221
        %v2223 = vmul.f32 %v2141, 1.442695
        %v2224 = vpow.pop %v2223
        %v2225 = vmul.f32 %v2142, 1.442695
        %v2226 = vpow.pop %v2225
        %v2227 = vmul.f32 %v2143, 1.442695
        %v2228 = vpow.pop %v2227
        %v2229 = vmul.f32 %v2144, 1.442695
        %v2230 = vpow.pop %v2229
        %v2231 = vmul.f32 %v2145, 1.442695
        %v2232 = vpow.pop %v2231
        %v2233 = vmul.f32 %v2146, 1.442695
        %v2234 = vpow.pop %v2233
        %v2235 = vmul.f32 %v2147, 1.442695
        %v2236 = vpow.pop %v2235
        %v2237 = vmul.f32 %v2148, 1.442695
        %v2238 = vpow.pop %v2237
        %v2239 = vmul.f32 %v2149, 1.442695
        %v2240 = vpow.pop %v2239
        %v2241 = vmul.f32 %v2150, 1.442695
        %v2242 = vpow.pop %v2241
        %v2243 = vmul.f32 %v2151, 1.442695
        %v2244 = vpow.pop %v2243
        %v2245 = vmul.f32 %v2152, 1.442695
        %v2246 = vpow.pop %v2245
        %v2247 = vmul.f32 %v2153, 1.442695
        %v2248 = vpow.pop %v2247
        %v2249 = vmul.f32 %v2154, 1.442695
        %v2250 = vpow.pop %v2249
        %v2251 = vmul.f32 %v2155, 1.442695
        %v2252 = vpow.pop %v2251
        %v2253 = vmul.f32 %v2156, 1.442695
        %v2254 = vpow.pop %v2253
        %v2255 = vmul.f32 %v2157, 1.442695
        %v2256 = vpow.pop %v2255
        %v2257 = vmul.f32 %v2158, 1.442695
        %v2258 = vpow.pop %v2257
        %v2259 = vmul.f32 %v2159, 1.442695
        %v2260 = vpow.pop %v2259
        %v2261 = vmul.f32 %v2160, 1.442695
        %v2262 = vpow.pop %v2261
        %v2263 = vmul.f32 %v2161, 1.442695
        %v2264 = vpow.pop %v2263
        %v2265 = vmul.f32 %v2162, 1.442695
        %v2266 = vpow.pop %v2265
        %v2267 = vmul.f32 %v2163, 1.442695
        %v2268 = vpow.pop %v2267
        %v2269 = vmul.f32 %v2164, 1.442695
        %v2270 = vpow.pop %v2269
        %v2271 = vmul.f32 %v2165, 1.442695
        %v2272 = vpow.pop %v2271
        %v2273 = vmul.f32 %v2166, 1.442695
        %v2274 = vpow.pop %v2273
        %v2275 = vmul.f32 %v2167, 1.442695
        %v2276 = vpow.pop %v2275
        %v2277 = vmul.f32 %v2168, 1.442695
        %v2278 = vpow.pop %v2277
        %v2279 = vmul.f32 %v2169, 1.442695
        %v2280 = vpow.pop %v2279
        %v2281 = vmul.f32 %v2170, 1.442695
        %v2282 = vpow.pop %v2281
        %v2283 = vmul.f32 %v2171, 1.442695
        %v2284 = vpow.pop %v2283
        %v2285 = vmul.f32 %v2172, 1.442695
        %v2286 = vpow.pop %v2285
        %v2287 = vmul.f32 %v2173, 1.442695
        %v2288 = vpow.pop %v2287
        %v2289 = vmul.f32 %v2174, 1.442695
        %v2290 = vpow.pop %v2289
        %v2291 = vmul.f32 %v2175, 1.442695
        %v2292 = vpow.pop %v2291
        %v2293 = vmul.f32 %v2176, 1.442695
        %v2294 = vpow.pop %v2293
        %v2295 = vmul.f32 %v2177, 1.442695
        %v2296 = vpow.pop %v2295
        %v2297 = vmul.f32 %v2178, 1.442695
        %v2298 = vpow.pop %v2297
        %v2299 = vmul.f32 %v2179, 1.442695
        %v2300 = vpow.pop %v2299
        %v2301 = vmul.f32 %v2180, 1.442695
        %v2302 = vpow.pop %v2301
        %v2303 = vmul.f32 %v2181, 1.442695
        %v2304 = vpow.pop %v2303
        %v2305 = vmul.f32 %v2182, 1.442695
        %v2306 = vpow.pop %v2305
        %v2307 = vmul.f32 %v2183, 1.442695
        %v2308 = vpow.pop %v2307
        %v2309 = vmul.f32 %v2184, 1.442695
        %v2310 = vpow.pop %v2309
        %v2311 = vmul.f32 %v2185, 1.442695
        %v2312 = vpow.pop %v2311
        %v2313 = vmul.f32 %v2186, 1.442695
        %v2314 = vpow.pop %v2313
        %v2315 = vld [vmem:[#allocation4] sm:$0xff]
        %v2316 = vld [vmem:[#allocation4 + $0x8] sm:$0xff]
        %v2317 = vld [vmem:[#allocation4 + $0x10] sm:$0xff]
        %v2318 = vld [vmem:[#allocation4 + $0x18] sm:$0xff]
        %v2319 = vld [vmem:[#allocation4 + $0x20] sm:$0xff]
        %v2320 = vld [vmem:[#allocation4 + $0x28] sm:$0xff]
        %v2321 = vld [vmem:[#allocation4 + $0x30] sm:$0xff]
        %v2322 = vld [vmem:[#allocation4 + $0x38] sm:$0xff]
        %v2323 = vld [vmem:[#allocation4 + $0x40] sm:$0xff]
        %v2324 = vld [vmem:[#allocation4 + $0x48] sm:$0xff]
        %v2325 = vld [vmem:[#allocation4 + $0x50] sm:$0xff]
        %v2326 = vld [vmem:[#allocation4 + $0x58] sm:$0xff]
        %v2327 = vld [vmem:[#allocation4 + $0x60] sm:$0xff]
        %v2328 = vld [vmem:[#allocation4 + $0x68] sm:$0xff]
        %v2329 = vld [vmem:[#allocation4 + $0x70] sm:$0xff]
        %v2330 = vld [vmem:[#allocation4 + $0x78] sm:$0xff]
        %v2331 = vld [vmem:[#allocation4 + $0x80] sm:$0xff]
        %v2332 = vld [vmem:[#allocation4 + $0x88] sm:$0xff]
        %v2333 = vld [vmem:[#allocation4 + $0x90] sm:$0xff]
        %v2334 = vld [vmem:[#allocation4 + $0x98] sm:$0xff]
        %v2335 = vld [vmem:[#allocation4 + $0xa0] sm:$0xff]
        %v2336 = vld [vmem:[#allocation4 + $0xa8] sm:$0xff]
        %v2337 = vld [vmem:[#allocation4 + $0xb0] sm:$0xff]
        %v2338 = vld [vmem:[#allocation4 + $0xb8] sm:$0xff]
        %v2339 = vld [vmem:[#allocation4 + $0xc0] sm:$0xff]
        %v2340 = vld [vmem:[#allocation4 + $0xc8] sm:$0xff]
        %v2341 = vld [vmem:[#allocation4 + $0xd0] sm:$0xff]
        %v2342 = vld [vmem:[#allocation4 + $0xd8] sm:$0xff]
        %v2343 = vld [vmem:[#allocation4 + $0xe0] sm:$0xff]
        %v2344 = vld [vmem:[#allocation4 + $0xe8] sm:$0xff]
        %v2345 = vld [vmem:[#allocation4 + $0xf0] sm:$0xff]
        %v2346 = vld [vmem:[#allocation4 + $0xf8] sm:$0xff]
        %v2347 = vmul.f32 %v1900, %v2315
        %v2348 = vmul.f32 %v1902, %v2316
        %v2349 = vmul.f32 %v1904, %v2317
        %v2350 = vmul.f32 %v1906, %v2318
        %v2351 = vmul.f32 %v1908, %v2319
        %v2352 = vmul.f32 %v1910, %v2320
        %v2353 = vmul.f32 %v1912, %v2321
        %v2354 = vmul.f32 %v1914, %v2322
        %v2355 = vmul.f32 %v1916, %v2323
        %v2356 = vmul.f32 %v1918, %v2324
        %v2357 = vmul.f32 %v1920, %v2325
        %v2358 = vmul.f32 %v1922, %v2326
        %v2359 = vmul.f32 %v1924, %v2327
        %v2360 = vmul.f32 %v1926, %v2328
        %v2361 = vmul.f32 %v1928, %v2329
        %v2362 = vmul.f32 %v1930, %v2330
        %v2363 = vmul.f32 %v1932, %v2331
        %v2364 = vmul.f32 %v1934, %v2332
        %v2365 = vmul.f32 %v1936, %v2333
        %v2366 = vmul.f32 %v1938, %v2334
        %v2367 = vmul.f32 %v1940, %v2335
        %v2368 = vmul.f32 %v1942, %v2336
        %v2369 = vmul.f32 %v1944, %v2337
        %v2370 = vmul.f32 %v1946, %v2338
        %v2371 = vmul.f32 %v1948, %v2339
        %v2372 = vmul.f32 %v1950, %v2340
        %v2373 = vmul.f32 %v1952, %v2341
        %v2374 = vmul.f32 %v1954, %v2342
        %v2375 = vmul.f32 %v1956, %v2343
        %v2376 = vmul.f32 %v1958, %v2344
        %v2377 = vmul.f32 %v1960, %v2345
        %v2378 = vmul.f32 %v1962, %v2346
        %v2379 = vadd.f32 %v2188, %v2190
        %2380 = vadd.xlane.f32.xlu0 %v2379
        %v2381 = vpop.xlane.xlu0 %2380
        %v2382 = vadd.f32 %v2192, %v2194
        %2383 = vadd.xlane.f32.xlu0 %v2382
        %v2384 = vpop.xlane.xlu0 %2383
        %v2385 = vadd.f32 %v2196, %v2198
        %2386 = vadd.xlane.f32.xlu0 %v2385
        %v2387 = vpop.xlane.xlu0 %2386
        %v2388 = vadd.f32 %v2200, %v2202
        %2389 = vadd.xlane.f32.xlu0 %v2388
        %v2390 = vpop.xlane.xlu0 %2389
        %v2391 = vadd.f32 %v2204, %v2206
        %2392 = vadd.xlane.f32.xlu0 %v2391
        %v2393 = vpop.xlane.xlu0 %2392
        %v2394 = vadd.f32 %v2208, %v2210
        %2395 = vadd.xlane.f32.xlu0 %v2394
        %v2396 = vpop.xlane.xlu0 %2395
        %v2397 = vadd.f32 %v2212, %v2214
        %2398 = vadd.xlane.f32.xlu0 %v2397
        %v2399 = vpop.xlane.xlu0 %2398
        %v2400 = vadd.f32 %v2216, %v2218
        %2401 = vadd.xlane.f32.xlu0 %v2400
        %v2402 = vpop.xlane.xlu0 %2401
        %v2403 = vadd.f32 %v2220, %v2222
        %2404 = vadd.xlane.f32.xlu0 %v2403
        %v2405 = vpop.xlane.xlu0 %2404
        %v2406 = vadd.f32 %v2224, %v2226
        %2407 = vadd.xlane.f32.xlu0 %v2406
        %v2408 = vpop.xlane.xlu0 %2407
        %v2409 = vadd.f32 %v2228, %v2230
        %2410 = vadd.xlane.f32.xlu0 %v2409
        %v2411 = vpop.xlane.xlu0 %2410
        %v2412 = vadd.f32 %v2232, %v2234
        %2413 = vadd.xlane.f32.xlu0 %v2412
        %v2414 = vpop.xlane.xlu0 %2413
        %v2415 = vadd.f32 %v2236, %v2238
        %2416 = vadd.xlane.f32.xlu0 %v2415
        %v2417 = vpop.xlane.xlu0 %2416
        %v2418 = vadd.f32 %v2240, %v2242
        %2419 = vadd.xlane.f32.xlu0 %v2418
        %v2420 = vpop.xlane.xlu0 %2419
        %v2421 = vadd.f32 %v2244, %v2246
        %2422 = vadd.xlane.f32.xlu0 %v2421
        %v2423 = vpop.xlane.xlu0 %2422
        %v2424 = vadd.f32 %v2248, %v2250
        %2425 = vadd.xlane.f32.xlu0 %v2424
        %v2426 = vpop.xlane.xlu0 %2425
        %v2427 = vadd.f32 %v2252, %v2254
        %2428 = vadd.xlane.f32.xlu0 %v2427
        %v2429 = vpop.xlane.xlu0 %2428
        %v2430 = vadd.f32 %v2256, %v2258
        %2431 = vadd.xlane.f32.xlu0 %v2430
        %v2432 = vpop.xlane.xlu0 %2431
        %v2433 = vadd.f32 %v2260, %v2262
        %2434 = vadd.xlane.f32.xlu0 %v2433
        %v2435 = vpop.xlane.xlu0 %2434
        %v2436 = vadd.f32 %v2264, %v2266
        %2437 = vadd.xlane.f32.xlu0 %v2436
        %v2438 = vpop.xlane.xlu0 %2437
        %v2439 = vadd.f32 %v2268, %v2270
        %2440 = vadd.xlane.f32.xlu0 %v2439
        %v2441 = vpop.xlane.xlu0 %2440
        %v2442 = vadd.f32 %v2272, %v2274
        %2443 = vadd.xlane.f32.xlu0 %v2442
        %v2444 = vpop.xlane.xlu0 %2443
        %v2445 = vadd.f32 %v2276, %v2278
        %2446 = vadd.xlane.f32.xlu0 %v2445
        %v2447 = vpop.xlane.xlu0 %2446
        %v2448 = vadd.f32 %v2280, %v2282
        %2449 = vadd.xlane.f32.xlu0 %v2448
        %v2450 = vpop.xlane.xlu0 %2449
        %v2451 = vadd.f32 %v2284, %v2286
        %2452 = vadd.xlane.f32.xlu0 %v2451
        %v2453 = vpop.xlane.xlu0 %2452
        %v2454 = vadd.f32 %v2288, %v2290
        %2455 = vadd.xlane.f32.xlu0 %v2454
        %v2456 = vpop.xlane.xlu0 %2455
        %v2457 = vadd.f32 %v2292, %v2294
        %2458 = vadd.xlane.f32.xlu0 %v2457
        %v2459 = vpop.xlane.xlu0 %2458
        %v2460 = vadd.f32 %v2296, %v2298
        %2461 = vadd.xlane.f32.xlu0 %v2460
        %v2462 = vpop.xlane.xlu0 %2461
        %v2463 = vadd.f32 %v2300, %v2302
        %2464 = vadd.xlane.f32.xlu0 %v2463
        %v2465 = vpop.xlane.xlu0 %2464
        %v2466 = vadd.f32 %v2304, %v2306
        %2467 = vadd.xlane.f32.xlu0 %v2466
        %v2468 = vpop.xlane.xlu0 %2467
        %v2469 = vadd.f32 %v2308, %v2310
        %2470 = vadd.xlane.f32.xlu0 %v2469
        %v2471 = vpop.xlane.xlu0 %2470
        %v2472 = vadd.f32 %v2312, %v2314
        %2473 = vadd.xlane.f32.xlu0 %v2472
        %v2474 = vpop.xlane.xlu0 %2473
        %v2475 = vadd.f32 %v2347, %v2381
        %v2476 = vadd.f32 %v2348, %v2384
        %v2477 = vadd.f32 %v2349, %v2387
        %v2478 = vadd.f32 %v2350, %v2390
        %v2479 = vadd.f32 %v2351, %v2393
        %v2480 = vadd.f32 %v2352, %v2396
        %v2481 = vadd.f32 %v2353, %v2399
        %v2482 = vadd.f32 %v2354, %v2402
        %v2483 = vadd.f32 %v2355, %v2405
        %v2484 = vadd.f32 %v2356, %v2408
        %v2485 = vadd.f32 %v2357, %v2411
        %v2486 = vadd.f32 %v2358, %v2414
        %v2487 = vadd.f32 %v2359, %v2417
        %v2488 = vadd.f32 %v2360, %v2420
        %v2489 = vadd.f32 %v2361, %v2423
        %v2490 = vadd.f32 %v2362, %v2426
        %v2491 = vadd.f32 %v2363, %v2429
        %v2492 = vadd.f32 %v2364, %v2432
        %v2493 = vadd.f32 %v2365, %v2435
        %v2494 = vadd.f32 %v2366, %v2438
        %v2495 = vadd.f32 %v2367, %v2441
        %v2496 = vadd.f32 %v2368, %v2444
        %v2497 = vadd.f32 %v2369, %v2447
        %v2498 = vadd.f32 %v2370, %v2450
        %v2499 = vadd.f32 %v2371, %v2453
        %v2500 = vadd.f32 %v2372, %v2456
        %v2501 = vadd.f32 %v2373, %v2459
        %v2502 = vadd.f32 %v2374, %v2462
        %v2503 = vadd.f32 %v2375, %v2465
        %v2504 = vadd.f32 %v2376, %v2468
        %v2505 = vadd.f32 %v2377, %v2471
        %v2506 = vadd.f32 %v2378, %v2474
        %vm2507 = vcmask 7168
        %2508 = vst.msk [vmem:[#allocation4] sm:$0xff] %vm2507, %v2475
        %2509 = vst.msk [vmem:[#allocation4 + $0x8] sm:$0xff] %vm2507, %v2476
        %2510 = vst.msk [vmem:[#allocation4 + $0x10] sm:$0xff] %vm2507, %v2477
        %2511 = vst.msk [vmem:[#allocation4 + $0x18] sm:$0xff] %vm2507, %v2478
        %2512 = vst.msk [vmem:[#allocation4 + $0x20] sm:$0xff] %vm2507, %v2479
        %2513 = vst.msk [vmem:[#allocation4 + $0x28] sm:$0xff] %vm2507, %v2480
        %2514 = vst.msk [vmem:[#allocation4 + $0x30] sm:$0xff] %vm2507, %v2481
        %2515 = vst.msk [vmem:[#allocation4 + $0x38] sm:$0xff] %vm2507, %v2482
        %2516 = vst.msk [vmem:[#allocation4 + $0x40] sm:$0xff] %vm2507, %v2483
        %2517 = vst.msk [vmem:[#allocation4 + $0x48] sm:$0xff] %vm2507, %v2484
        %2518 = vst.msk [vmem:[#allocation4 + $0x50] sm:$0xff] %vm2507, %v2485
        %2519 = vst.msk [vmem:[#allocation4 + $0x58] sm:$0xff] %vm2507, %v2486
        %2520 = vst.msk [vmem:[#allocation4 + $0x60] sm:$0xff] %vm2507, %v2487
        %2521 = vst.msk [vmem:[#allocation4 + $0x68] sm:$0xff] %vm2507, %v2488
        %2522 = vst.msk [vmem:[#allocation4 + $0x70] sm:$0xff] %vm2507, %v2489
        %2523 = vst.msk [vmem:[#allocation4 + $0x78] sm:$0xff] %vm2507, %v2490
        %2524 = vst.msk [vmem:[#allocation4 + $0x80] sm:$0xff] %vm2507, %v2491
        %2525 = vst.msk [vmem:[#allocation4 + $0x88] sm:$0xff] %vm2507, %v2492
        %2526 = vst.msk [vmem:[#allocation4 + $0x90] sm:$0xff] %vm2507, %v2493
        %2527 = vst.msk [vmem:[#allocation4 + $0x98] sm:$0xff] %vm2507, %v2494
        %2528 = vst.msk [vmem:[#allocation4 + $0xa0] sm:$0xff] %vm2507, %v2495
        %2529 = vst.msk [vmem:[#allocation4 + $0xa8] sm:$0xff] %vm2507, %v2496
        %2530 = vst.msk [vmem:[#allocation4 + $0xb0] sm:$0xff] %vm2507, %v2497
        %2531 = vst.msk [vmem:[#allocation4 + $0xb8] sm:$0xff] %vm2507, %v2498
        %2532 = vst.msk [vmem:[#allocation4 + $0xc0] sm:$0xff] %vm2507, %v2499
        %2533 = vst.msk [vmem:[#allocation4 + $0xc8] sm:$0xff] %vm2507, %v2500
        %2534 = vst.msk [vmem:[#allocation4 + $0xd0] sm:$0xff] %vm2507, %v2501
        %2535 = vst.msk [vmem:[#allocation4 + $0xd8] sm:$0xff] %vm2507, %v2502
        %2536 = vst.msk [vmem:[#allocation4 + $0xe0] sm:$0xff] %vm2507, %v2503
        %2537 = vst.msk [vmem:[#allocation4 + $0xe8] sm:$0xff] %vm2507, %v2504
        %2538 = vst.msk [vmem:[#allocation4 + $0xf0] sm:$0xff] %vm2507, %v2505
        %2539 = vst.msk [vmem:[#allocation4 + $0xf8] sm:$0xff] %vm2507, %v2506
        %v2540 = vld [vmem:[#allocation5] sm:$0xff]
        %v2541 = vld [vmem:[#allocation5 + $0x8] sm:$0xff]
        %v2542 = vld [vmem:[#allocation5 + $0x10] sm:$0xff]
        %v2543 = vld [vmem:[#allocation5 + $0x18] sm:$0xff]
        %v2544 = vld [vmem:[#allocation5 + $0x20] sm:$0xff]
        %v2545 = vld [vmem:[#allocation5 + $0x28] sm:$0xff]
        %v2546 = vld [vmem:[#allocation5 + $0x30] sm:$0xff]
        %v2547 = vld [vmem:[#allocation5 + $0x38] sm:$0xff]
        %v2548 = vld [vmem:[#allocation5 + $0x40] sm:$0xff]
        %v2549 = vld [vmem:[#allocation5 + $0x48] sm:$0xff]
        %v2550 = vld [vmem:[#allocation5 + $0x50] sm:$0xff]
        %v2551 = vld [vmem:[#allocation5 + $0x58] sm:$0xff]
        %v2552 = vld [vmem:[#allocation5 + $0x60] sm:$0xff]
        %v2553 = vld [vmem:[#allocation5 + $0x68] sm:$0xff]
        %v2554 = vld [vmem:[#allocation5 + $0x70] sm:$0xff]
        %v2555 = vld [vmem:[#allocation5 + $0x78] sm:$0xff]
        %v2556 = vld [vmem:[#allocation5 + $0x80] sm:$0xff]
        %v2557 = vld [vmem:[#allocation5 + $0x88] sm:$0xff]
        %v2558 = vld [vmem:[#allocation5 + $0x90] sm:$0xff]
        %v2559 = vld [vmem:[#allocation5 + $0x98] sm:$0xff]
        %v2560 = vld [vmem:[#allocation5 + $0xa0] sm:$0xff]
        %v2561 = vld [vmem:[#allocation5 + $0xa8] sm:$0xff]
        %v2562 = vld [vmem:[#allocation5 + $0xb0] sm:$0xff]
        %v2563 = vld [vmem:[#allocation5 + $0xb8] sm:$0xff]
        %v2564 = vld [vmem:[#allocation5 + $0xc0] sm:$0xff]
        %v2565 = vld [vmem:[#allocation5 + $0xc8] sm:$0xff]
        %v2566 = vld [vmem:[#allocation5 + $0xd0] sm:$0xff]
        %v2567 = vld [vmem:[#allocation5 + $0xd8] sm:$0xff]
        %v2568 = vld [vmem:[#allocation5 + $0xe0] sm:$0xff]
        %v2569 = vld [vmem:[#allocation5 + $0xe8] sm:$0xff]
        %v2570 = vld [vmem:[#allocation5 + $0xf0] sm:$0xff]
        %v2571 = vld [vmem:[#allocation5 + $0xf8] sm:$0xff]
        %2573 = vset.pattern.permute.xlu0 0
        %2574 = vperm.xlu0 %2573, %v1900
        %v2575 = vpop.permute.xlu0 %2574
        %2578 = vset.pattern.permute.xlu0 0
        %2579 = vperm.xlu0 %2578, %v1902
        %v2580 = vpop.permute.xlu0 %2579
        %2583 = vset.pattern.permute.xlu0 0
        %2584 = vperm.xlu0 %2583, %v1904
        %v2585 = vpop.permute.xlu0 %2584
        %2588 = vset.pattern.permute.xlu0 0
        %2589 = vperm.xlu0 %2588, %v1906
        %v2590 = vpop.permute.xlu0 %2589
        %2593 = vset.pattern.permute.xlu0 0
        %2594 = vperm.xlu0 %2593, %v1908
        %v2595 = vpop.permute.xlu0 %2594
        %2598 = vset.pattern.permute.xlu0 0
        %2599 = vperm.xlu0 %2598, %v1910
        %v2600 = vpop.permute.xlu0 %2599
        %2603 = vset.pattern.permute.xlu0 0
        %2604 = vperm.xlu0 %2603, %v1912
        %v2605 = vpop.permute.xlu0 %2604
        %2608 = vset.pattern.permute.xlu0 0
        %2609 = vperm.xlu0 %2608, %v1914
        %v2610 = vpop.permute.xlu0 %2609
        %2613 = vset.pattern.permute.xlu0 0
        %2614 = vperm.xlu0 %2613, %v1916
        %v2615 = vpop.permute.xlu0 %2614
        %2618 = vset.pattern.permute.xlu0 0
        %2619 = vperm.xlu0 %2618, %v1918
        %v2620 = vpop.permute.xlu0 %2619
        %2623 = vset.pattern.permute.xlu0 0
        %2624 = vperm.xlu0 %2623, %v1920
        %v2625 = vpop.permute.xlu0 %2624
        %2628 = vset.pattern.permute.xlu0 0
        %2629 = vperm.xlu0 %2628, %v1922
        %v2630 = vpop.permute.xlu0 %2629
        %2633 = vset.pattern.permute.xlu0 0
        %2634 = vperm.xlu0 %2633, %v1924
        %v2635 = vpop.permute.xlu0 %2634
        %2638 = vset.pattern.permute.xlu0 0
        %2639 = vperm.xlu0 %2638, %v1926
        %v2640 = vpop.permute.xlu0 %2639
        %2643 = vset.pattern.permute.xlu0 0
        %2644 = vperm.xlu0 %2643, %v1928
        %v2645 = vpop.permute.xlu0 %2644
        %2648 = vset.pattern.permute.xlu0 0
        %2649 = vperm.xlu0 %2648, %v1930
        %v2650 = vpop.permute.xlu0 %2649
        %2653 = vset.pattern.permute.xlu0 0
        %2654 = vperm.xlu0 %2653, %v1932
        %v2655 = vpop.permute.xlu0 %2654
        %2658 = vset.pattern.permute.xlu0 0
        %2659 = vperm.xlu0 %2658, %v1934
        %v2660 = vpop.permute.xlu0 %2659
        %2663 = vset.pattern.permute.xlu0 0
        %2664 = vperm.xlu0 %2663, %v1936
        %v2665 = vpop.permute.xlu0 %2664
        %2668 = vset.pattern.permute.xlu0 0
        %2669 = vperm.xlu0 %2668, %v1938
        %v2670 = vpop.permute.xlu0 %2669
        %2673 = vset.pattern.permute.xlu0 0
        %2674 = vperm.xlu0 %2673, %v1940
        %v2675 = vpop.permute.xlu0 %2674
        %2678 = vset.pattern.permute.xlu0 0
        %2679 = vperm.xlu0 %2678, %v1942
        %v2680 = vpop.permute.xlu0 %2679
        %2683 = vset.pattern.permute.xlu0 0
        %2684 = vperm.xlu0 %2683, %v1944
        %v2685 = vpop.permute.xlu0 %2684
        %2688 = vset.pattern.permute.xlu0 0
        %2689 = vperm.xlu0 %2688, %v1946
        %v2690 = vpop.permute.xlu0 %2689
        %2693 = vset.pattern.permute.xlu0 0
        %2694 = vperm.xlu0 %2693, %v1948
        %v2695 = vpop.permute.xlu0 %2694
        %2698 = vset.pattern.permute.xlu0 0
        %2699 = vperm.xlu0 %2698, %v1950
        %v2700 = vpop.permute.xlu0 %2699
        %2703 = vset.pattern.permute.xlu0 0
        %2704 = vperm.xlu0 %2703, %v1952
        %v2705 = vpop.permute.xlu0 %2704
        %2708 = vset.pattern.permute.xlu0 0
        %2709 = vperm.xlu0 %2708, %v1954
        %v2710 = vpop.permute.xlu0 %2709
        %2713 = vset.pattern.permute.xlu0 0
        %2714 = vperm.xlu0 %2713, %v1956
        %v2715 = vpop.permute.xlu0 %2714
        %2718 = vset.pattern.permute.xlu0 0
        %2719 = vperm.xlu0 %2718, %v1958
        %v2720 = vpop.permute.xlu0 %2719
        %2723 = vset.pattern.permute.xlu0 0
        %2724 = vperm.xlu0 %2723, %v1960
        %v2725 = vpop.permute.xlu0 %2724
        %2728 = vset.pattern.permute.xlu0 0
        %2729 = vperm.xlu0 %2728, %v1962
        %v2730 = vpop.permute.xlu0 %2729
        %v2732 = vmul.f32 %v2575, %v2540
        %v2733 = vmul.f32 %v2580, %v2541
        %v2734 = vmul.f32 %v2585, %v2542
        %v2735 = vmul.f32 %v2590, %v2543
        %v2736 = vmul.f32 %v2595, %v2544
        %v2737 = vmul.f32 %v2600, %v2545
        %v2738 = vmul.f32 %v2605, %v2546
        %v2739 = vmul.f32 %v2610, %v2547
        %v2740 = vmul.f32 %v2615, %v2548
        %v2741 = vmul.f32 %v2620, %v2549
        %v2742 = vmul.f32 %v2625, %v2550
        %v2743 = vmul.f32 %v2630, %v2551
        %v2744 = vmul.f32 %v2635, %v2552
        %v2745 = vmul.f32 %v2640, %v2553
        %v2746 = vmul.f32 %v2645, %v2554
        %v2747 = vmul.f32 %v2650, %v2555
        %v2748 = vmul.f32 %v2655, %v2556
        %v2749 = vmul.f32 %v2660, %v2557
        %v2750 = vmul.f32 %v2665, %v2558
        %v2751 = vmul.f32 %v2670, %v2559
        %v2752 = vmul.f32 %v2675, %v2560
        %v2753 = vmul.f32 %v2680, %v2561
        %v2754 = vmul.f32 %v2685, %v2562
        %v2755 = vmul.f32 %v2690, %v2563
        %v2756 = vmul.f32 %v2695, %v2564
        %v2757 = vmul.f32 %v2700, %v2565
        %v2758 = vmul.f32 %v2705, %v2566
        %v2759 = vmul.f32 %v2710, %v2567
        %v2760 = vmul.f32 %v2715, %v2568
        %v2761 = vmul.f32 %v2720, %v2569
        %v2762 = vmul.f32 %v2725, %v2570
        %v2763 = vmul.f32 %v2730, %v2571
        %v2764 = vpack.c.bf16 %v2192, %v2188
        %v2765 = vpack.c.bf16 %v2194, %v2190
        %v2766 = vpack.c.bf16 %v2200, %v2196
        %v2767 = vpack.c.bf16 %v2202, %v2198
        %v2768 = vpack.c.bf16 %v2208, %v2204
        %v2769 = vpack.c.bf16 %v2210, %v2206
        %v2770 = vpack.c.bf16 %v2216, %v2212
        %v2771 = vpack.c.bf16 %v2218, %v2214
        %v2772 = vpack.c.bf16 %v2224, %v2220
        %v2773 = vpack.c.bf16 %v2226, %v2222
        %v2774 = vpack.c.bf16 %v2232, %v2228
        %v2775 = vpack.c.bf16 %v2234, %v2230
        %v2776 = vpack.c.bf16 %v2240, %v2236
        %v2777 = vpack.c.bf16 %v2242, %v2238
        %v2778 = vpack.c.bf16 %v2248, %v2244
        %v2779 = vpack.c.bf16 %v2250, %v2246
        %v2780 = vpack.c.bf16 %v2256, %v2252
        %v2781 = vpack.c.bf16 %v2258, %v2254
        %v2782 = vpack.c.bf16 %v2264, %v2260
        %v2783 = vpack.c.bf16 %v2266, %v2262
        %v2784 = vpack.c.bf16 %v2272, %v2268
        %v2785 = vpack.c.bf16 %v2274, %v2270
        %v2786 = vpack.c.bf16 %v2280, %v2276
        %v2787 = vpack.c.bf16 %v2282, %v2278
        %v2788 = vpack.c.bf16 %v2288, %v2284
        %v2789 = vpack.c.bf16 %v2290, %v2286
        %v2790 = vpack.c.bf16 %v2296, %v2292
        %v2791 = vpack.c.bf16 %v2298, %v2294
        %v2792 = vpack.c.bf16 %v2304, %v2300
        %v2793 = vpack.c.bf16 %v2306, %v2302
        %v2794 = vpack.c.bf16 %v2312, %v2308
        %v2795 = vpack.c.bf16 %v2314, %v2310
        %v2796 = vpack.c.bf16 %v1218, %v1214
        %v2797 = vpack.c.bf16 %v1228, %v1224
        %v2798 = vpack.c.bf16 %v1238, %v1234
        %v2799 = vpack.c.bf16 %v1248, %v1244
        %v2800 = vpack.c.bf16 %v1258, %v1254
        %v2801 = vpack.c.bf16 %v1268, %v1264
        %v2802 = vpack.c.bf16 %v1278, %v1274
        %v2803 = vpack.c.bf16 %v1288, %v1284
        %v2804 = vpack.c.bf16 %v1298, %v1294
        %v2805 = vpack.c.bf16 %v1308, %v1304
        %v2806 = vpack.c.bf16 %v1318, %v1314
        %v2807 = vpack.c.bf16 %v1328, %v1324
        %v2808 = vpack.c.bf16 %v1338, %v1334
        %v2809 = vpack.c.bf16 %v1348, %v1344
        %v2810 = vpack.c.bf16 %v1358, %v1354
        %v2811 = vpack.c.bf16 %v1368, %v1364
        %2812 = vmatprep.subr.bf16.mxu0 0
        %2813 = vmatpush1.bf16.msra.mxu0 %v2803
        %2814 = vmatprep.subr.bf16.mxu0 0
        %2815 = vmatpush1.bf16.msra.mxu0 %v2802
        %2816 = vmatprep.subr.bf16.mxu0 0
        %2817 = vmatpush1.bf16.msra.mxu0 %v2801
        %2818 = vmatprep.subr.bf16.mxu0 0
        %2819 = vmatpush1.bf16.msra.mxu0 %v2800
        %2820 = vmatprep.subr.bf16.mxu0 0
        %2821 = vmatpush1.bf16.msra.mxu0 %v2799
        %2822 = vmatprep.subr.bf16.mxu0 0
        %2823 = vmatpush1.bf16.msra.mxu0 %v2798
        %2824 = vmatprep.subr.bf16.mxu0 0
        %2825 = vmatpush1.bf16.msra.mxu0 %v2797
        %2826 = vmatprep.subr.bf16.mxu0 0
        %2827 = vmatpush1.bf16.msra.mxu0 %v2796
        %2828 = vmatprep.subr.bf16.mxu0 0
        %2829 = vmatpush2.bf16.msra.mxu0 %v2811
        %2830 = vmatprep.subr.bf16.mxu0 0
        %2831 = vmatpush2.bf16.msra.mxu0 %v2810
        %2832 = vmatprep.subr.bf16.mxu0 0
        %2833 = vmatpush2.bf16.msra.mxu0 %v2809
        %2834 = vmatprep.subr.bf16.mxu0 0
        %2835 = vmatpush2.bf16.msra.mxu0 %v2808
        %2836 = vmatprep.subr.bf16.mxu0 0
        %2837 = vmatpush2.bf16.msra.mxu0 %v2807
        %2838 = vmatprep.subr.bf16.mxu0 0
        %2839 = vmatpush2.bf16.msra.mxu0 %v2806
        %2840 = vmatprep.subr.bf16.mxu0 0
        %2841 = vmatpush2.bf16.msra.mxu0 %v2805
        %2842 = vmatprep.subr.bf16.mxu0 0
        %2843 = vmatpush2.bf16.msra.mxu0 %v2804
        %2844 = vmatprep.mubr.bf16.mxu0 %v2765
        %2845 = vmatmul.mubr.bf16.gmra.mxu0 %v2764
        %v2846 = vpop.f32.mrf.mxu0
        %v2847 = vadd.f32 0.0, %v2846
        %v2848 = vpop.f32.mrf.mxu0
        %v2849 = vpop.f32.mrf.mxu0
        %v2850 = vadd.f32 0.0, %v2849
        %v2851 = vpop.f32.mrf.mxu0
        %2852 = vmatprep.mubr.bf16.mxu0 %v2767
        %2853 = vmatmul.mubr.bf16.gmra.mxu0 %v2766
        %v2854 = vpop.f32.mrf.mxu0
        %v2855 = vadd.f32 0.0, %v2854
        %v2856 = vpop.f32.mrf.mxu0
        %v2857 = vpop.f32.mrf.mxu0
        %v2858 = vadd.f32 0.0, %v2857
        %v2859 = vpop.f32.mrf.mxu0
        %2860 = vmatprep.mubr.bf16.mxu0 %v2769
        %2861 = vmatmul.mubr.bf16.gmra.mxu0 %v2768
        %v2862 = vpop.f32.mrf.mxu0
        %v2863 = vadd.f32 0.0, %v2862
        %v2864 = vpop.f32.mrf.mxu0
        %v2865 = vpop.f32.mrf.mxu0
        %v2866 = vadd.f32 0.0, %v2865
        %v2867 = vpop.f32.mrf.mxu0
        %2868 = vmatprep.mubr.bf16.mxu0 %v2771
        %2869 = vmatmul.mubr.bf16.gmra.mxu0 %v2770
        %v2870 = vpop.f32.mrf.mxu0
        %v2871 = vadd.f32 0.0, %v2870
        %v2872 = vpop.f32.mrf.mxu0
        %v2873 = vpop.f32.mrf.mxu0
        %v2874 = vadd.f32 0.0, %v2873
        %v2875 = vpop.f32.mrf.mxu0
        %2876 = vmatprep.mubr.bf16.mxu0 %v2773
        %2877 = vmatmul.mubr.bf16.gmra.mxu0 %v2772
        %v2878 = vpop.f32.mrf.mxu0
        %v2879 = vadd.f32 0.0, %v2878
        %v2880 = vpop.f32.mrf.mxu0
        %v2881 = vpop.f32.mrf.mxu0
        %v2882 = vadd.f32 0.0, %v2881
        %v2883 = vpop.f32.mrf.mxu0
        %2884 = vmatprep.mubr.bf16.mxu0 %v2775
        %2885 = vmatmul.mubr.bf16.gmra.mxu0 %v2774
        %v2886 = vpop.f32.mrf.mxu0
        %v2887 = vadd.f32 0.0, %v2886
        %v2888 = vpop.f32.mrf.mxu0
        %v2889 = vpop.f32.mrf.mxu0
        %v2890 = vadd.f32 0.0, %v2889
        %v2891 = vpop.f32.mrf.mxu0
        %2892 = vmatprep.mubr.bf16.mxu0 %v2777
        %2893 = vmatmul.mubr.bf16.gmra.mxu0 %v2776
        %v2894 = vpop.f32.mrf.mxu0
        %v2895 = vadd.f32 0.0, %v2894
        %v2896 = vpop.f32.mrf.mxu0
        %v2897 = vpop.f32.mrf.mxu0
        %v2898 = vadd.f32 0.0, %v2897
        %v2899 = vpop.f32.mrf.mxu0
        %2900 = vmatprep.mubr.bf16.mxu0 %v2779
        %2901 = vmatmul.mubr.bf16.gmra.mxu0 %v2778
        %v2902 = vpop.f32.mrf.mxu0
        %v2903 = vadd.f32 0.0, %v2902
        %v2904 = vpop.f32.mrf.mxu0
        %v2905 = vpop.f32.mrf.mxu0
        %v2906 = vadd.f32 0.0, %v2905
        %v2907 = vpop.f32.mrf.mxu0
        %2908 = vmatprep.mubr.bf16.mxu0 %v2781
        %2909 = vmatmul.mubr.bf16.gmra.mxu0 %v2780
        %v2910 = vpop.f32.mrf.mxu0
        %v2911 = vadd.f32 0.0, %v2910
        %v2912 = vpop.f32.mrf.mxu0
        %v2913 = vpop.f32.mrf.mxu0
        %v2914 = vadd.f32 0.0, %v2913
        %v2915 = vpop.f32.mrf.mxu0
        %2916 = vmatprep.mubr.bf16.mxu0 %v2783
        %2917 = vmatmul.mubr.bf16.gmra.mxu0 %v2782
        %v2918 = vpop.f32.mrf.mxu0
        %v2919 = vadd.f32 0.0, %v2918
        %v2920 = vpop.f32.mrf.mxu0
        %v2921 = vpop.f32.mrf.mxu0
        %v2922 = vadd.f32 0.0, %v2921
        %v2923 = vpop.f32.mrf.mxu0
        %2924 = vmatprep.mubr.bf16.mxu0 %v2785
        %2925 = vmatmul.mubr.bf16.gmra.mxu0 %v2784
        %v2926 = vpop.f32.mrf.mxu0
        %v2927 = vadd.f32 0.0, %v2926
        %v2928 = vpop.f32.mrf.mxu0
        %v2929 = vpop.f32.mrf.mxu0
        %v2930 = vadd.f32 0.0, %v2929
        %v2931 = vpop.f32.mrf.mxu0
        %2932 = vmatprep.mubr.bf16.mxu0 %v2787
        %2933 = vmatmul.mubr.bf16.gmra.mxu0 %v2786
        %v2934 = vpop.f32.mrf.mxu0
        %v2935 = vadd.f32 0.0, %v2934
        %v2936 = vpop.f32.mrf.mxu0
        %v2937 = vpop.f32.mrf.mxu0
        %v2938 = vadd.f32 0.0, %v2937
        %v2939 = vpop.f32.mrf.mxu0
        %2940 = vmatprep.mubr.bf16.mxu0 %v2789
        %2941 = vmatmul.mubr.bf16.gmra.mxu0 %v2788
        %v2942 = vpop.f32.mrf.mxu0
        %v2943 = vadd.f32 0.0, %v2942
        %v2944 = vpop.f32.mrf.mxu0
        %v2945 = vpop.f32.mrf.mxu0
        %v2946 = vadd.f32 0.0, %v2945
        %v2947 = vpop.f32.mrf.mxu0
        %2948 = vmatprep.mubr.bf16.mxu0 %v2791
        %2949 = vmatmul.mubr.bf16.gmra.mxu0 %v2790
        %v2950 = vpop.f32.mrf.mxu0
        %v2951 = vadd.f32 0.0, %v2950
        %v2952 = vpop.f32.mrf.mxu0
        %v2953 = vpop.f32.mrf.mxu0
        %v2954 = vadd.f32 0.0, %v2953
        %v2955 = vpop.f32.mrf.mxu0
        %2956 = vmatprep.mubr.bf16.mxu0 %v2793
        %2957 = vmatmul.mubr.bf16.gmra.mxu0 %v2792
        %v2958 = vpop.f32.mrf.mxu0
        %v2959 = vadd.f32 0.0, %v2958
        %v2960 = vpop.f32.mrf.mxu0
        %v2961 = vpop.f32.mrf.mxu0
        %v2962 = vadd.f32 0.0, %v2961
        %v2963 = vpop.f32.mrf.mxu0
        %2964 = vmatprep.mubr.bf16.mxu0 %v2795
        %2965 = vmatmul.mubr.bf16.gmra.mxu0 %v2794
        %v2966 = vpop.f32.mrf.mxu0
        %v2967 = vadd.f32 0.0, %v2966
        %v2968 = vpop.f32.mrf.mxu0
        %v2969 = vpop.f32.mrf.mxu0
        %v2970 = vadd.f32 0.0, %v2969
        %v2971 = vpop.f32.mrf.mxu0
        %2972 = vdwg.mxu0
        %v2973 = vadd.f32 %v2732, %v2847
        %v2974 = vadd.f32 %v2733, %v2850
        %v2975 = vadd.f32 %v2734, %v2855
        %v2976 = vadd.f32 %v2735, %v2858
        %v2977 = vadd.f32 %v2736, %v2863
        %v2978 = vadd.f32 %v2737, %v2866
        %v2979 = vadd.f32 %v2738, %v2871
        %v2980 = vadd.f32 %v2739, %v2874
        %v2981 = vadd.f32 %v2740, %v2879
        %v2982 = vadd.f32 %v2741, %v2882
        %v2983 = vadd.f32 %v2742, %v2887
        %v2984 = vadd.f32 %v2743, %v2890
        %v2985 = vadd.f32 %v2744, %v2895
        %v2986 = vadd.f32 %v2745, %v2898
        %v2987 = vadd.f32 %v2746, %v2903
        %v2988 = vadd.f32 %v2747, %v2906
        %v2989 = vadd.f32 %v2748, %v2911
        %v2990 = vadd.f32 %v2749, %v2914
        %v2991 = vadd.f32 %v2750, %v2919
        %v2992 = vadd.f32 %v2751, %v2922
        %v2993 = vadd.f32 %v2752, %v2927
        %v2994 = vadd.f32 %v2753, %v2930
        %v2995 = vadd.f32 %v2754, %v2935
        %v2996 = vadd.f32 %v2755, %v2938
        %v2997 = vadd.f32 %v2756, %v2943
        %v2998 = vadd.f32 %v2757, %v2946
        %v2999 = vadd.f32 %v2758, %v2951
        %v3000 = vadd.f32 %v2759, %v2954
        %v3001 = vadd.f32 %v2760, %v2959
        %v3002 = vadd.f32 %v2761, %v2962
        %v3003 = vadd.f32 %v2762, %v2967
        %v3004 = vadd.f32 %v2763, %v2970
        %3005 = vst [vmem:[#allocation5] sm:$0xff] %v2973
        %3006 = vst [vmem:[#allocation5 + $0x8] sm:$0xff] %v2974
        %3007 = vst [vmem:[#allocation5 + $0x10] sm:$0xff] %v2975
        %3008 = vst [vmem:[#allocation5 + $0x18] sm:$0xff] %v2976
        %3009 = vst [vmem:[#allocation5 + $0x20] sm:$0xff] %v2977
        %3010 = vst [vmem:[#allocation5 + $0x28] sm:$0xff] %v2978
        %3011 = vst [vmem:[#allocation5 + $0x30] sm:$0xff] %v2979
        %3012 = vst [vmem:[#allocation5 + $0x38] sm:$0xff] %v2980
        %3013 = vst [vmem:[#allocation5 + $0x40] sm:$0xff] %v2981
        %3014 = vst [vmem:[#allocation5 + $0x48] sm:$0xff] %v2982
        %3015 = vst [vmem:[#allocation5 + $0x50] sm:$0xff] %v2983
        %3016 = vst [vmem:[#allocation5 + $0x58] sm:$0xff] %v2984
        %3017 = vst [vmem:[#allocation5 + $0x60] sm:$0xff] %v2985
        %3018 = vst [vmem:[#allocation5 + $0x68] sm:$0xff] %v2986
        %3019 = vst [vmem:[#allocation5 + $0x70] sm:$0xff] %v2987
        %3020 = vst [vmem:[#allocation5 + $0x78] sm:$0xff] %v2988
        %3021 = vst [vmem:[#allocation5 + $0x80] sm:$0xff] %v2989
        %3022 = vst [vmem:[#allocation5 + $0x88] sm:$0xff] %v2990
        %3023 = vst [vmem:[#allocation5 + $0x90] sm:$0xff] %v2991
        %3024 = vst [vmem:[#allocation5 + $0x98] sm:$0xff] %v2992
        %3025 = vst [vmem:[#allocation5 + $0xa0] sm:$0xff] %v2993
        %3026 = vst [vmem:[#allocation5 + $0xa8] sm:$0xff] %v2994
        %3027 = vst [vmem:[#allocation5 + $0xb0] sm:$0xff] %v2995
        %3028 = vst [vmem:[#allocation5 + $0xb8] sm:$0xff] %v2996
        %3029 = vst [vmem:[#allocation5 + $0xc0] sm:$0xff] %v2997
        %3030 = vst [vmem:[#allocation5 + $0xc8] sm:$0xff] %v2998
        %3031 = vst [vmem:[#allocation5 + $0xd0] sm:$0xff] %v2999
        %3032 = vst [vmem:[#allocation5 + $0xd8] sm:$0xff] %v3000
        %3033 = vst [vmem:[#allocation5 + $0xe0] sm:$0xff] %v3001
        %3034 = vst [vmem:[#allocation5 + $0xe8] sm:$0xff] %v3002
        %3035 = vst [vmem:[#allocation5 + $0xf0] sm:$0xff] %v3003
        %3036 = vst [vmem:[#allocation5 + $0xf8] sm:$0xff] %v3004
        %3037 = vst.msk [vmem:[#allocation3] sm:$0xff] %vm2507, %v1835
        %3038 = vst.msk [vmem:[#allocation3 + $0x8] sm:$0xff] %vm2507, %v1836
        %3039 = vst.msk [vmem:[#allocation3 + $0x10] sm:$0xff] %vm2507, %v1837
        %3040 = vst.msk [vmem:[#allocation3 + $0x18] sm:$0xff] %vm2507, %v1838
        %3041 = vst.msk [vmem:[#allocation3 + $0x20] sm:$0xff] %vm2507, %v1839
        %3042 = vst.msk [vmem:[#allocation3 + $0x28] sm:$0xff] %vm2507, %v1840
        %3043 = vst.msk [vmem:[#allocation3 + $0x30] sm:$0xff] %vm2507, %v1841
        %3044 = vst.msk [vmem:[#allocation3 + $0x38] sm:$0xff] %vm2507, %v1842
        %3045 = vst.msk [vmem:[#allocation3 + $0x40] sm:$0xff] %vm2507, %v1843
        %3046 = vst.msk [vmem:[#allocation3 + $0x48] sm:$0xff] %vm2507, %v1844
        %3047 = vst.msk [vmem:[#allocation3 + $0x50] sm:$0xff] %vm2507, %v1845
        %3048 = vst.msk [vmem:[#allocation3 + $0x58] sm:$0xff] %vm2507, %v1846
        %3049 = vst.msk [vmem:[#allocation3 + $0x60] sm:$0xff] %vm2507, %v1847
        %3050 = vst.msk [vmem:[#allocation3 + $0x68] sm:$0xff] %vm2507, %v1848
        %3051 = vst.msk [vmem:[#allocation3 + $0x70] sm:$0xff] %vm2507, %v1849
        %3052 = vst.msk [vmem:[#allocation3 + $0x78] sm:$0xff] %vm2507, %v1850
        %3053 = vst.msk [vmem:[#allocation3 + $0x80] sm:$0xff] %vm2507, %v1851
        %3054 = vst.msk [vmem:[#allocation3 + $0x88] sm:$0xff] %vm2507, %v1852
        %3055 = vst.msk [vmem:[#allocation3 + $0x90] sm:$0xff] %vm2507, %v1853
        %3056 = vst.msk [vmem:[#allocation3 + $0x98] sm:$0xff] %vm2507, %v1854
        %3057 = vst.msk [vmem:[#allocation3 + $0xa0] sm:$0xff] %vm2507, %v1855
        %3058 = vst.msk [vmem:[#allocation3 + $0xa8] sm:$0xff] %vm2507, %v1856
        %3059 = vst.msk [vmem:[#allocation3 + $0xb0] sm:$0xff] %vm2507, %v1857
        %3060 = vst.msk [vmem:[#allocation3 + $0xb8] sm:$0xff] %vm2507, %v1858
        %3061 = vst.msk [vmem:[#allocation3 + $0xc0] sm:$0xff] %vm2507, %v1859
        %3062 = vst.msk [vmem:[#allocation3 + $0xc8] sm:$0xff] %vm2507, %v1860
        %3063 = vst.msk [vmem:[#allocation3 + $0xd0] sm:$0xff] %vm2507, %v1861
        %3064 = vst.msk [vmem:[#allocation3 + $0xd8] sm:$0xff] %vm2507, %v1862
        %3065 = vst.msk [vmem:[#allocation3 + $0xe0] sm:$0xff] %vm2507, %v1863
        %3066 = vst.msk [vmem:[#allocation3 + $0xe8] sm:$0xff] %vm2507, %v1864
        %3067 = vst.msk [vmem:[#allocation3 + $0xf0] sm:$0xff] %vm2507, %v1865
        %3068 = vst.msk [vmem:[#allocation3 + $0xf8] sm:$0xff] %vm2507, %v1866
        // Predicated region
        $region69: #{tpu_custom_call.1} parent=47 // pred_check
          %p3069 = pneg %p400
        $region70: #{tpu_custom_call.1} parent=47 // pred_check_branch
          %3071 = sbr.rel (%p3069) target = $region72
        $region71: #{tpu_custom_call.1} parent=47 // pred_region
          %v3072 = vld [vmem:[#allocation4] sm:$0xff]
          %v3073 = vld [vmem:[#allocation4 + $0x8] sm:$0xff]
          %v3074 = vld [vmem:[#allocation4 + $0x10] sm:$0xff]
          %v3075 = vld [vmem:[#allocation4 + $0x18] sm:$0xff]
          %v3076 = vld [vmem:[#allocation4 + $0x20] sm:$0xff]
          %v3077 = vld [vmem:[#allocation4 + $0x28] sm:$0xff]
          %v3078 = vld [vmem:[#allocation4 + $0x30] sm:$0xff]
          %v3079 = vld [vmem:[#allocation4 + $0x38] sm:$0xff]
          %v3080 = vld [vmem:[#allocation4 + $0x40] sm:$0xff]
          %v3081 = vld [vmem:[#allocation4 + $0x48] sm:$0xff]
          %v3082 = vld [vmem:[#allocation4 + $0x50] sm:$0xff]
          %v3083 = vld [vmem:[#allocation4 + $0x58] sm:$0xff]
          %v3084 = vld [vmem:[#allocation4 + $0x60] sm:$0xff]
          %v3085 = vld [vmem:[#allocation4 + $0x68] sm:$0xff]
          %v3086 = vld [vmem:[#allocation4 + $0x70] sm:$0xff]
          %v3087 = vld [vmem:[#allocation4 + $0x78] sm:$0xff]
          %v3088 = vld [vmem:[#allocation4 + $0x80] sm:$0xff]
          %v3089 = vld [vmem:[#allocation4 + $0x88] sm:$0xff]
          %v3090 = vld [vmem:[#allocation4 + $0x90] sm:$0xff]
          %v3091 = vld [vmem:[#allocation4 + $0x98] sm:$0xff]
          %v3092 = vld [vmem:[#allocation4 + $0xa0] sm:$0xff]
          %v3093 = vld [vmem:[#allocation4 + $0xa8] sm:$0xff]
          %v3094 = vld [vmem:[#allocation4 + $0xb0] sm:$0xff]
          %v3095 = vld [vmem:[#allocation4 + $0xb8] sm:$0xff]
          %v3096 = vld [vmem:[#allocation4 + $0xc0] sm:$0xff]
          %v3097 = vld [vmem:[#allocation4 + $0xc8] sm:$0xff]
          %v3098 = vld [vmem:[#allocation4 + $0xd0] sm:$0xff]
          %v3099 = vld [vmem:[#allocation4 + $0xd8] sm:$0xff]
          %v3100 = vld [vmem:[#allocation4 + $0xe0] sm:$0xff]
          %v3101 = vld [vmem:[#allocation4 + $0xe8] sm:$0xff]
          %v3102 = vld [vmem:[#allocation4 + $0xf0] sm:$0xff]
          %v3103 = vld [vmem:[#allocation4 + $0xf8] sm:$0xff]
          %v3104 = vrcp.pop %v3072
          %v3105 = vrcp.pop %v3073
          %v3106 = vrcp.pop %v3074
          %v3107 = vrcp.pop %v3075
          %v3108 = vrcp.pop %v3076
          %v3109 = vrcp.pop %v3077
          %v3110 = vrcp.pop %v3078
          %v3111 = vrcp.pop %v3079
          %v3112 = vrcp.pop %v3080
          %v3113 = vrcp.pop %v3081
          %v3114 = vrcp.pop %v3082
          %v3115 = vrcp.pop %v3083
          %v3116 = vrcp.pop %v3084
          %v3117 = vrcp.pop %v3085
          %v3118 = vrcp.pop %v3086
          %v3119 = vrcp.pop %v3087
          %v3120 = vrcp.pop %v3088
          %v3121 = vrcp.pop %v3089
          %v3122 = vrcp.pop %v3090
          %v3123 = vrcp.pop %v3091
          %v3124 = vrcp.pop %v3092
          %v3125 = vrcp.pop %v3093
          %v3126 = vrcp.pop %v3094
          %v3127 = vrcp.pop %v3095
          %v3128 = vrcp.pop %v3096
          %v3129 = vrcp.pop %v3097
          %v3130 = vrcp.pop %v3098
          %v3131 = vrcp.pop %v3099
          %v3132 = vrcp.pop %v3100
          %v3133 = vrcp.pop %v3101
          %v3134 = vrcp.pop %v3102
          %v3135 = vrcp.pop %v3103
          %s3136 = sld [smem:[#allocation6]]
          %v3137 = vld [vmem:[#allocation5] sm:$0xff]
          %v3138 = vld [vmem:[#allocation5 + $0x8] sm:$0xff]
          %v3139 = vld [vmem:[#allocation5 + $0x10] sm:$0xff]
          %v3140 = vld [vmem:[#allocation5 + $0x18] sm:$0xff]
          %v3141 = vld [vmem:[#allocation5 + $0x20] sm:$0xff]
          %v3142 = vld [vmem:[#allocation5 + $0x28] sm:$0xff]
          %v3143 = vld [vmem:[#allocation5 + $0x30] sm:$0xff]
          %v3144 = vld [vmem:[#allocation5 + $0x38] sm:$0xff]
          %v3145 = vld [vmem:[#allocation5 + $0x40] sm:$0xff]
          %v3146 = vld [vmem:[#allocation5 + $0x48] sm:$0xff]
          %v3147 = vld [vmem:[#allocation5 + $0x50] sm:$0xff]
          %v3148 = vld [vmem:[#allocation5 + $0x58] sm:$0xff]
          %v3149 = vld [vmem:[#allocation5 + $0x60] sm:$0xff]
          %v3150 = vld [vmem:[#allocation5 + $0x68] sm:$0xff]
          %v3151 = vld [vmem:[#allocation5 + $0x70] sm:$0xff]
          %v3152 = vld [vmem:[#allocation5 + $0x78] sm:$0xff]
          %v3153 = vld [vmem:[#allocation5 + $0x80] sm:$0xff]
          %v3154 = vld [vmem:[#allocation5 + $0x88] sm:$0xff]
          %v3155 = vld [vmem:[#allocation5 + $0x90] sm:$0xff]
          %v3156 = vld [vmem:[#allocation5 + $0x98] sm:$0xff]
          %v3157 = vld [vmem:[#allocation5 + $0xa0] sm:$0xff]
          %v3158 = vld [vmem:[#allocation5 + $0xa8] sm:$0xff]
          %v3159 = vld [vmem:[#allocation5 + $0xb0] sm:$0xff]
          %v3160 = vld [vmem:[#allocation5 + $0xb8] sm:$0xff]
          %v3161 = vld [vmem:[#allocation5 + $0xc0] sm:$0xff]
          %v3162 = vld [vmem:[#allocation5 + $0xc8] sm:$0xff]
          %v3163 = vld [vmem:[#allocation5 + $0xd0] sm:$0xff]
          %v3164 = vld [vmem:[#allocation5 + $0xd8] sm:$0xff]
          %v3165 = vld [vmem:[#allocation5 + $0xe0] sm:$0xff]
          %v3166 = vld [vmem:[#allocation5 + $0xe8] sm:$0xff]
          %v3167 = vld [vmem:[#allocation5 + $0xf0] sm:$0xff]
          %v3168 = vld [vmem:[#allocation5 + $0xf8] sm:$0xff]
          %3170 = vset.pattern.permute.xlu0 0
          %3171 = vperm.xlu0 %3170, %v3104
          %v3172 = vpop.permute.xlu0 %3171
          %3175 = vset.pattern.permute.xlu0 0
          %3176 = vperm.xlu0 %3175, %v3105
          %v3177 = vpop.permute.xlu0 %3176
          %3180 = vset.pattern.permute.xlu0 0
          %3181 = vperm.xlu0 %3180, %v3106
          %v3182 = vpop.permute.xlu0 %3181
          %3185 = vset.pattern.permute.xlu0 0
          %3186 = vperm.xlu0 %3185, %v3107
          %v3187 = vpop.permute.xlu0 %3186
          %3190 = vset.pattern.permute.xlu0 0
          %3191 = vperm.xlu0 %3190, %v3108
          %v3192 = vpop.permute.xlu0 %3191
          %3195 = vset.pattern.permute.xlu0 0
          %3196 = vperm.xlu0 %3195, %v3109
          %v3197 = vpop.permute.xlu0 %3196
          %3200 = vset.pattern.permute.xlu0 0
          %3201 = vperm.xlu0 %3200, %v3110
          %v3202 = vpop.permute.xlu0 %3201
          %3205 = vset.pattern.permute.xlu0 0
          %3206 = vperm.xlu0 %3205, %v3111
          %v3207 = vpop.permute.xlu0 %3206
          %3210 = vset.pattern.permute.xlu0 0
          %3211 = vperm.xlu0 %3210, %v3112
          %v3212 = vpop.permute.xlu0 %3211
          %3215 = vset.pattern.permute.xlu0 0
          %3216 = vperm.xlu0 %3215, %v3113
          %v3217 = vpop.permute.xlu0 %3216
          %3220 = vset.pattern.permute.xlu0 0
          %3221 = vperm.xlu0 %3220, %v3114
          %v3222 = vpop.permute.xlu0 %3221
          %3225 = vset.pattern.permute.xlu0 0
          %3226 = vperm.xlu0 %3225, %v3115
          %v3227 = vpop.permute.xlu0 %3226
          %3230 = vset.pattern.permute.xlu0 0
          %3231 = vperm.xlu0 %3230, %v3116
          %v3232 = vpop.permute.xlu0 %3231
          %3235 = vset.pattern.permute.xlu0 0
          %3236 = vperm.xlu0 %3235, %v3117
          %v3237 = vpop.permute.xlu0 %3236
          %3240 = vset.pattern.permute.xlu0 0
          %3241 = vperm.xlu0 %3240, %v3118
          %v3242 = vpop.permute.xlu0 %3241
          %3245 = vset.pattern.permute.xlu0 0
          %3246 = vperm.xlu0 %3245, %v3119
          %v3247 = vpop.permute.xlu0 %3246
          %3250 = vset.pattern.permute.xlu0 0
          %3251 = vperm.xlu0 %3250, %v3120
          %v3252 = vpop.permute.xlu0 %3251
          %3255 = vset.pattern.permute.xlu0 0
          %3256 = vperm.xlu0 %3255, %v3121
          %v3257 = vpop.permute.xlu0 %3256
          %3260 = vset.pattern.permute.xlu0 0
          %3261 = vperm.xlu0 %3260, %v3122
          %v3262 = vpop.permute.xlu0 %3261
          %3265 = vset.pattern.permute.xlu0 0
          %3266 = vperm.xlu0 %3265, %v3123
          %v3267 = vpop.permute.xlu0 %3266
          %3270 = vset.pattern.permute.xlu0 0
          %3271 = vperm.xlu0 %3270, %v3124
          %v3272 = vpop.permute.xlu0 %3271
          %3275 = vset.pattern.permute.xlu0 0
          %3276 = vperm.xlu0 %3275, %v3125
          %v3277 = vpop.permute.xlu0 %3276
          %3280 = vset.pattern.permute.xlu0 0
          %3281 = vperm.xlu0 %3280, %v3126
          %v3282 = vpop.permute.xlu0 %3281
          %3285 = vset.pattern.permute.xlu0 0
          %3286 = vperm.xlu0 %3285, %v3127
          %v3287 = vpop.permute.xlu0 %3286
          %3290 = vset.pattern.permute.xlu0 0
          %3291 = vperm.xlu0 %3290, %v3128
          %v3292 = vpop.permute.xlu0 %3291
          %3295 = vset.pattern.permute.xlu0 0
          %3296 = vperm.xlu0 %3295, %v3129
          %v3297 = vpop.permute.xlu0 %3296
          %3300 = vset.pattern.permute.xlu0 0
          %3301 = vperm.xlu0 %3300, %v3130
          %v3302 = vpop.permute.xlu0 %3301
          %3305 = vset.pattern.permute.xlu0 0
          %3306 = vperm.xlu0 %3305, %v3131
          %v3307 = vpop.permute.xlu0 %3306
          %3310 = vset.pattern.permute.xlu0 0
          %3311 = vperm.xlu0 %3310, %v3132
          %v3312 = vpop.permute.xlu0 %3311
          %3315 = vset.pattern.permute.xlu0 0
          %3316 = vperm.xlu0 %3315, %v3133
          %v3317 = vpop.permute.xlu0 %3316
          %3320 = vset.pattern.permute.xlu0 0
          %3321 = vperm.xlu0 %3320, %v3134
          %v3322 = vpop.permute.xlu0 %3321
          %3325 = vset.pattern.permute.xlu0 0
          %3326 = vperm.xlu0 %3325, %v3135
          %v3327 = vpop.permute.xlu0 %3326
          %v3329 = vmul.f32 %v3137, %v3172
          %v3330 = vmul.f32 %v3138, %v3177
          %v3331 = vmul.f32 %v3139, %v3182
          %v3332 = vmul.f32 %v3140, %v3187
          %v3333 = vmul.f32 %v3141, %v3192
          %v3334 = vmul.f32 %v3142, %v3197
          %v3335 = vmul.f32 %v3143, %v3202
          %v3336 = vmul.f32 %v3144, %v3207
          %v3337 = vmul.f32 %v3145, %v3212
          %v3338 = vmul.f32 %v3146, %v3217
          %v3339 = vmul.f32 %v3147, %v3222
          %v3340 = vmul.f32 %v3148, %v3227
          %v3341 = vmul.f32 %v3149, %v3232
          %v3342 = vmul.f32 %v3150, %v3237
          %v3343 = vmul.f32 %v3151, %v3242
          %v3344 = vmul.f32 %v3152, %v3247
          %v3345 = vmul.f32 %v3153, %v3252
          %v3346 = vmul.f32 %v3154, %v3257
          %v3347 = vmul.f32 %v3155, %v3262
          %v3348 = vmul.f32 %v3156, %v3267
          %v3349 = vmul.f32 %v3157, %v3272
          %v3350 = vmul.f32 %v3158, %v3277
          %v3351 = vmul.f32 %v3159, %v3282
          %v3352 = vmul.f32 %v3160, %v3287
          %v3353 = vmul.f32 %v3161, %v3292
          %v3354 = vmul.f32 %v3162, %v3297
          %v3355 = vmul.f32 %v3163, %v3302
          %v3356 = vmul.f32 %v3164, %v3307
          %v3357 = vmul.f32 %v3165, %v3312
          %v3358 = vmul.f32 %v3166, %v3317
          %v3359 = vmul.f32 %v3167, %v3322
          %v3360 = vmul.f32 %v3168, %v3327
          %v3361 = vstv %s3136
          %v3362 = vmul.f32 %v3361, %v3329
          %v3363 = vmul.f32 %v3361, %v3330
          %v3364 = vmul.f32 %v3361, %v3331
          %v3365 = vmul.f32 %v3361, %v3332
          %v3366 = vmul.f32 %v3361, %v3333
          %v3367 = vmul.f32 %v3361, %v3334
          %v3368 = vmul.f32 %v3361, %v3335
          %v3369 = vmul.f32 %v3361, %v3336
          %v3370 = vmul.f32 %v3361, %v3337
          %v3371 = vmul.f32 %v3361, %v3338
          %v3372 = vmul.f32 %v3361, %v3339
          %v3373 = vmul.f32 %v3361, %v3340
          %v3374 = vmul.f32 %v3361, %v3341
          %v3375 = vmul.f32 %v3361, %v3342
          %v3376 = vmul.f32 %v3361, %v3343
          %v3377 = vmul.f32 %v3361, %v3344
          %v3378 = vmul.f32 %v3361, %v3345
          %v3379 = vmul.f32 %v3361, %v3346
          %v3380 = vmul.f32 %v3361, %v3347
          %v3381 = vmul.f32 %v3361, %v3348
          %v3382 = vmul.f32 %v3361, %v3349
          %v3383 = vmul.f32 %v3361, %v3350
          %v3384 = vmul.f32 %v3361, %v3351
          %v3385 = vmul.f32 %v3361, %v3352
          %v3386 = vmul.f32 %v3361, %v3353
          %v3387 = vmul.f32 %v3361, %v3354
          %v3388 = vmul.f32 %v3361, %v3355
          %v3389 = vmul.f32 %v3361, %v3356
          %v3390 = vmul.f32 %v3361, %v3357
          %v3391 = vmul.f32 %v3361, %v3358
          %v3392 = vmul.f32 %v3361, %v3359
          %v3393 = vmul.f32 %v3361, %v3360
          %v3394 = vld [vmem:[%s343] sm:$0xff]
          %v3395 = vld [vmem:[%s343 + $0x8] sm:$0xff]
          %v3396 = vld [vmem:[%s343 + $0x10] sm:$0xff]
          %v3397 = vld [vmem:[%s343 + $0x18] sm:$0xff]
          %v3398 = vld [vmem:[%s343 + $0x20] sm:$0xff]
          %v3399 = vld [vmem:[%s343 + $0x28] sm:$0xff]
          %v3400 = vld [vmem:[%s343 + $0x30] sm:$0xff]
          %v3401 = vld [vmem:[%s343 + $0x38] sm:$0xff]
          %v3402 = vld [vmem:[%s343 + $0x40] sm:$0xff]
          %v3403 = vld [vmem:[%s343 + $0x48] sm:$0xff]
          %v3404 = vld [vmem:[%s343 + $0x50] sm:$0xff]
          %v3405 = vld [vmem:[%s343 + $0x58] sm:$0xff]
          %v3406 = vld [vmem:[%s343 + $0x60] sm:$0xff]
          %v3407 = vld [vmem:[%s343 + $0x68] sm:$0xff]
          %v3408 = vld [vmem:[%s343 + $0x70] sm:$0xff]
          %v3409 = vld [vmem:[%s343 + $0x78] sm:$0xff]
          %v3410 = vld [vmem:[%s343 + $0x80] sm:$0xff]
          %v3411 = vld [vmem:[%s343 + $0x88] sm:$0xff]
          %v3412 = vld [vmem:[%s343 + $0x90] sm:$0xff]
          %v3413 = vld [vmem:[%s343 + $0x98] sm:$0xff]
          %v3414 = vld [vmem:[%s343 + $0xa0] sm:$0xff]
          %v3415 = vld [vmem:[%s343 + $0xa8] sm:$0xff]
          %v3416 = vld [vmem:[%s343 + $0xb0] sm:$0xff]
          %v3417 = vld [vmem:[%s343 + $0xb8] sm:$0xff]
          %v3418 = vld [vmem:[%s343 + $0xc0] sm:$0xff]
          %v3419 = vld [vmem:[%s343 + $0xc8] sm:$0xff]
          %v3420 = vld [vmem:[%s343 + $0xd0] sm:$0xff]
          %v3421 = vld [vmem:[%s343 + $0xd8] sm:$0xff]
          %v3422 = vld [vmem:[%s343 + $0xe0] sm:$0xff]
          %v3423 = vld [vmem:[%s343 + $0xe8] sm:$0xff]
          %v3424 = vld [vmem:[%s343 + $0xf0] sm:$0xff]
          %v3425 = vld [vmem:[%s343 + $0xf8] sm:$0xff]
          %v3426 = vadd.f32 %v3362, %v3394
          %v3427 = vadd.f32 %v3363, %v3395
          %v3428 = vadd.f32 %v3364, %v3396
          %v3429 = vadd.f32 %v3365, %v3397
          %v3430 = vadd.f32 %v3366, %v3398
          %v3431 = vadd.f32 %v3367, %v3399
          %v3432 = vadd.f32 %v3368, %v3400
          %v3433 = vadd.f32 %v3369, %v3401
          %v3434 = vadd.f32 %v3370, %v3402
          %v3435 = vadd.f32 %v3371, %v3403
          %v3436 = vadd.f32 %v3372, %v3404
          %v3437 = vadd.f32 %v3373, %v3405
          %v3438 = vadd.f32 %v3374, %v3406
          %v3439 = vadd.f32 %v3375, %v3407
          %v3440 = vadd.f32 %v3376, %v3408
          %v3441 = vadd.f32 %v3377, %v3409
          %v3442 = vadd.f32 %v3378, %v3410
          %v3443 = vadd.f32 %v3379, %v3411
          %v3444 = vadd.f32 %v3380, %v3412
          %v3445 = vadd.f32 %v3381, %v3413
          %v3446 = vadd.f32 %v3382, %v3414
          %v3447 = vadd.f32 %v3383, %v3415
          %v3448 = vadd.f32 %v3384, %v3416
          %v3449 = vadd.f32 %v3385, %v3417
          %v3450 = vadd.f32 %v3386, %v3418
          %v3451 = vadd.f32 %v3387, %v3419
          %v3452 = vadd.f32 %v3388, %v3420
          %v3453 = vadd.f32 %v3389, %v3421
          %v3454 = vadd.f32 %v3390, %v3422
          %v3455 = vadd.f32 %v3391, %v3423
          %v3456 = vadd.f32 %v3392, %v3424
          %v3457 = vadd.f32 %v3393, %v3425
          %3458 = vst [vmem:[%s395] sm:$0xff] %v3426
          %3459 = vst [vmem:[%s395 + $0x8] sm:$0xff] %v3427
          %3460 = vst [vmem:[%s395 + $0x10] sm:$0xff] %v3428
          %3461 = vst [vmem:[%s395 + $0x18] sm:$0xff] %v3429
          %3462 = vst [vmem:[%s395 + $0x20] sm:$0xff] %v3430
          %3463 = vst [vmem:[%s395 + $0x28] sm:$0xff] %v3431
          %3464 = vst [vmem:[%s395 + $0x30] sm:$0xff] %v3432
          %3465 = vst [vmem:[%s395 + $0x38] sm:$0xff] %v3433
          %3466 = vst [vmem:[%s395 + $0x40] sm:$0xff] %v3434
          %3467 = vst [vmem:[%s395 + $0x48] sm:$0xff] %v3435
          %3468 = vst [vmem:[%s395 + $0x50] sm:$0xff] %v3436
          %3469 = vst [vmem:[%s395 + $0x58] sm:$0xff] %v3437
          %3470 = vst [vmem:[%s395 + $0x60] sm:$0xff] %v3438
          %3471 = vst [vmem:[%s395 + $0x68] sm:$0xff] %v3439
          %3472 = vst [vmem:[%s395 + $0x70] sm:$0xff] %v3440
          %3473 = vst [vmem:[%s395 + $0x78] sm:$0xff] %v3441
          %3474 = vst [vmem:[%s395 + $0x80] sm:$0xff] %v3442
          %3475 = vst [vmem:[%s395 + $0x88] sm:$0xff] %v3443
          %3476 = vst [vmem:[%s395 + $0x90] sm:$0xff] %v3444
          %3477 = vst [vmem:[%s395 + $0x98] sm:$0xff] %v3445
          %3478 = vst [vmem:[%s395 + $0xa0] sm:$0xff] %v3446
          %3479 = vst [vmem:[%s395 + $0xa8] sm:$0xff] %v3447
          %3480 = vst [vmem:[%s395 + $0xb0] sm:$0xff] %v3448
          %3481 = vst [vmem:[%s395 + $0xb8] sm:$0xff] %v3449
          %3482 = vst [vmem:[%s395 + $0xc0] sm:$0xff] %v3450
          %3483 = vst [vmem:[%s395 + $0xc8] sm:$0xff] %v3451
          %3484 = vst [vmem:[%s395 + $0xd0] sm:$0xff] %v3452
          %3485 = vst [vmem:[%s395 + $0xd8] sm:$0xff] %v3453
          %3486 = vst [vmem:[%s395 + $0xe0] sm:$0xff] %v3454
          %3487 = vst [vmem:[%s395 + $0xe8] sm:$0xff] %v3455
          %3488 = vst [vmem:[%s395 + $0xf0] sm:$0xff] %v3456
          %3489 = vst [vmem:[%s395 + $0xf8] sm:$0xff] %v3457
        $region72: #{tpu_custom_call.1} parent=47 // pred_fallthru
          _
        %s3490 = sand.u32 %s219, 1
        %s3491 = scalar_lea.sflag [#allocation9], %s3490
        %s3492 = sand.u32 %s219, 1
        %s3493 = smul.addr %s3492, 256
        %s3494 = scalar_lea.vmem [#allocation15], %s3493
        // Predicated region
        $region73: #{tpu_custom_call.1} parent=47 // pred_check
          %p3495 = pneg %p229
        $region74: #{tpu_custom_call.1} parent=47 // pred_check_branch
          %3497 = sbr.rel (%p3495) target = $region76
        $region75: #{tpu_custom_call.1} parent=47 // pred_region
          %s3498 = smul.u32 32, %s35
          %s3500 = ssub.s32 4096, 4096
          %3501 = vsyncadd %s3491, %s3500
          %s3502 = smul.addr %s34, 32
          %s3503 = sadd.s32 %s3498, %s3502
          %s3504 = smul.addr %s3503, 128
          %s3505 = scalar_lea.hbm %s7, %s3504
          %s3506 = sshll.u32 %s3494, 4
          %s3507 = int_to_ptr.vmem [resolvable:$true] %s3506
          %3512 = dma.vmem_to_hbm [thread:$0]  %s3507, 4096, %s3505, %s3491, 128, 128, 8
        $region76: #{tpu_custom_call.1} parent=47 // pred_fallthru
          _
      $region48: #{tpu_custom_call.1} parent=5 // pred_fallthru
        _
      %p3513 = scmp.le.s32.totalorder 2, %s24
      // Predicated region
      $region77: #{tpu_custom_call.1} parent=5 // pred_check
        %p3514 = pneg %p3513
      $region78: #{tpu_custom_call.1} parent=5 // pred_check_branch
        %3516 = sbr.rel (%p3514) target = $region80
      $region79: #{tpu_custom_call.1} parent=5 // pred_region
        %s3517 = ssub.s32 %s24, 2
        // Predicated region
        $region81: #{tpu_custom_call.1} parent=79 // pred_check
          %p3518 = pneg %p235
        $region82: #{tpu_custom_call.1} parent=79 // pred_check_branch
          %3520 = sbr.rel (%p3518) target = $region84
        $region83: #{tpu_custom_call.1} parent=79 // pred_region
          %s3521 = sand.u32 %s220, 1
          %s3522 = scalar_lea.sflag [#allocation9], %s3521
          %s3523 = sand.u32 %s220, 1
          %s3524 = smul.addr %s3523, 256
          %s3525 = scalar_lea.vmem [#allocation15], %s3524
          %3526 = dma.done %s3522, 4096
        $region84: #{tpu_custom_call.1} parent=79 // pred_fallthru
          _
      $region80: #{tpu_custom_call.1} parent=5 // pred_fallthru
        _
    $region6: #{tpu_custom_call.1} parent=1 // loop_footer
      %s28 = sadd.s32 1, %s24
    $region7: #{tpu_custom_call.1} parent=1 // loop_footer_branch
      %23 = sbr.rel target = $region3
    $region8: #{tpu_custom_call.1} parent=1 // loop_exit
      _
    %3527 = vsyncpa [#allocation8], 1
    %s3528 = scalar_lea.sflag [#allocation8], 1
    %3529 = vsyncpa %s3528, 1
    %3530 = vsyncpa [#allocation11], 1
    %s3531 = scalar_lea.sflag [#allocation11], 1
    %3532 = vsyncpa %s3531, 1
    %3533 = vsyncpa [#allocation14], 1
    %3534 = vsyncpa [#allocation9], 1
    %s3535 = scalar_lea.sflag [#allocation9], 1
    %3536 = vsyncpa %s3535, 1

</llo_original>
